<compile_context>
chip_gen: v7x
topology: tpu7x:2x2x1
jax: 0.10.0
libtpu: 0.0.40
codegen_flags: <defaults>
</compile_context>

<pallas_src>
import functools
import math

import jax
import jax.numpy as jnp
from jax.experimental import pallas as pl
from jax.experimental.pallas import tpu as pltpu


def _sigmoid(x):
    # sigma(x) = 0.5 * (1 + tanh(x/2)) — single EUP tanh, no VPU divide chain.
    return 0.5 * jnp.tanh(0.5 * x) + 0.5


# ----------------------------------------------------------------------------
# Fused kernel: LSTM stack -> LayerNorm -> MHA -> residual -> pooling -> MLP
# ----------------------------------------------------------------------------
def lstm_attention_kernel(
        x_ref,                                   # (B, T, F)
        wih0_ref,                                # (F, 4*L*H)  layer-0 W_ih, gate-major cols
        wcomb_ref,                               # (L*H, 4*L*H) wavefront block matrix
        bias_ref,                                # (1, 4*L*H)  b_ih + b_hh, gate-major
        ln1_g_ref, ln1_b_ref,                    # (1, H)
        wqkv_ref, bqkv_ref,                      # (H, 3H), (1, 3H)
        wo_ref, bo_ref,                          # (H, H), (1, H)
        pool_ref,                                # (H, 1)
        fc1_w_ref, fc1_b_ref,                    # (H, H), (1, H)
        ln2_g_ref, ln2_b_ref,                    # (1, H)
        fc2_w_ref, fc2_b_ref,                    # (H, O), (1, O)
        out_ref,                                 # (B, O)
        seq_sc,                                  # VMEM (B, T, H) last-layer hidden sequence
        *, num_heads):
    B, T, F = x_ref.shape
    LH = wcomb_ref.shape[0]
    H = ln1_g_ref.shape[1]
    L = LH // H
    nh = num_heads
    hd = H // nh
    eps = 1e-5

    # ------------------- LSTM stack: wavefront over layers ------------------
    # Hoisted layer-0 input projection (one matmul covers every timestep);
    # columns are already scattered to the gate-major layout, so adding it to
    # the per-step gates is a full-width VPU add (no per-gate slicing).
    x_rows = x_ref[...].reshape(B * T, F)
    xg_bt = jnp.dot(x_rows, wih0_ref[...],
                    preferred_element_type=jnp.float32).reshape(B, T, 4 * LH)

    w_comb = wcomb_ref[...]                       # (L*H, 4*L*H)
    bias_all = bias_ref[...]                      # (1, 4*L*H)
    col = jax.lax.broadcasted_iota(jnp.int32, (1, LH), 1)   # hoisted lane iota

    h_state = jnp.zeros((B, LH), jnp.float32)     # [h_l for l in 0..L-1] layer-major
    c_state = jnp.zeros((B, LH), jnp.float32)

    for s in range(T + L - 1):                    # wavefront step (static)
        # One fat MXU pass computes, for every layer l, both the recurrent
        # term h_{l,t-1} @ W_hh_l and the input term h_{l-1,t} @ W_ih_l.
        g = jnp.dot(h_state, w_comb,
                    preferred_element_type=jnp.float32) + bias_all
        if s < T:                                 # layer-0 sees x at time s
            g = g + xg_bt[:, s, :]

        # Gate-major layout: [i | f | g | o], each block (B, L*H), vreg-aligned.
        sg_if = _sigmoid(g[:, 0:2 * LH])
        g_g = jnp.tanh(g[:, 2 * LH:3 * LH])
        o_g = _sigmoid(g[:, 3 * LH:4 * LH])
        i_g = sg_if[:, 0:LH]
        f_g = sg_if[:, LH:2 * LH]
        c_new = f_g * c_state + i_g * g_g
        h_new = o_g * jnp.tanh(c_new)

        # Only layers with 0 <= s - l < T are active this step (contiguous
        # range [lo, hi]); hold the others (not yet started / already done).
        lo = max(0, s - (T - 1))
        hi = min(L - 1, s)
        if lo == 0 and hi == L - 1:
            h_state, c_state = h_new, c_new
        else:
            act = (col >= lo * H) & (col < (hi + 1) * H)
            h_state = jnp.where(act, h_new, h_state)
            c_state = jnp.where(act, c_new, c_state)

        # Record the last layer's output for timestep t = s - (L-1),
        # directly in batch-major order (no post-loop reshuffle).
        if s >= L - 1:
            t = s - (L - 1)
            seq_sc[:, t:t + 1, :] = h_new[:, (L - 1) * H:L * H].reshape(B, 1, H)

    # --------------- Head: LayerNorm -> MHA -> residual -> pool -> MLP ------
    y = seq_sc[...].reshape(B * T, H)             # batch-major rows

    mu = jnp.mean(y, axis=-1, keepdims=True)
    var = jnp.mean((y - mu) ** 2, axis=-1, keepdims=True)
    xn = (y - mu) * jax.lax.rsqrt(var + eps) * ln1_g_ref[...] + ln1_b_ref[...]

    # Fused QKV projection: one lane-dense matmul for all heads.
    qkv = jnp.dot(xn, wqkv_ref[...],
                  preferred_element_type=jnp.float32) + bqkv_ref[...]  # (B*T, 3H)

    scale = 1.0 / math.sqrt(hd)
    ctx_parts = []
    for hh in range(nh):
        q_h = qkv[:, 0 * H + hh * hd:0 * H + (hh + 1) * hd].reshape(B, T, hd)
        k_h = qkv[:, 1 * H + hh * hd:1 * H + (hh + 1) * hd].reshape(B, T, hd)
        v_h = qkv[:, 2 * H + hh * hd:2 * H + (hh + 1) * hd].reshape(B, T, hd)
        s_bh = jnp.einsum('bqd,bkd->bqk', q_h, k_h,
                          preferred_element_type=jnp.float32) * scale   # (B,T,T)
        s_bh = s_bh - jnp.max(s_bh, axis=-1, keepdims=True)
        e = jnp.exp(s_bh)
        p = e / jnp.sum(e, axis=-1, keepdims=True)                      # exact
        ctx = jnp.einsum('bqk,bkd->bqd', p, v_h,
                         preferred_element_type=jnp.float32)            # (B,T,hd)
        ctx_parts.append(ctx.reshape(B * T, hd))
    ctx_all = jnp.concatenate(ctx_parts, axis=1)                        # (B*T, H)

    # Fused per-head output projections: one (B*T,H) x (H,H) matmul.
    attn = jnp.dot(ctx_all, wo_ref[...],
                   preferred_element_type=jnp.float32) + bo_ref[...]

    # Residual onto the LayerNorm output (matches the reference module).
    yr = xn + attn                                                       # (B*T, H)

    # Attention pooling over the sequence axis, batched over B.
    sc = jnp.dot(yr, pool_ref[...],
                 preferred_element_type=jnp.float32).reshape(B, T, 1)
    sc = sc - jnp.max(sc, axis=1, keepdims=True)
    e = jnp.exp(sc)
    w = e / jnp.sum(e, axis=1, keepdims=True)                            # exact
    pooled = jnp.sum(yr.reshape(B, T, H) * w, axis=1)                    # (B, H)

    # MLP head: Linear -> LayerNorm -> ReLU -> (Dropout = identity) -> Linear
    h1 = jnp.dot(pooled, fc1_w_ref[...],
                 preferred_element_type=jnp.float32) + fc1_b_ref[...]
    mu2 = jnp.mean(h1, axis=-1, keepdims=True)
    var2 = jnp.mean((h1 - mu2) ** 2, axis=-1, keepdims=True)
    h1 = (h1 - mu2) * jax.lax.rsqrt(var2 + eps) * ln2_g_ref[...] + ln2_b_ref[...]
    h1 = jnp.maximum(h1, 0.0)
    out_ref[...] = (jnp.dot(h1, fc2_w_ref[...],
                            preferred_element_type=jnp.float32) + fc2_b_ref[...])


# ----------------------------------------------------------------------------
# Wrapper: one pallas_call for the whole forward pass
# ----------------------------------------------------------------------------
def lstm_attention_forward(params, x):
    x = x.astype(jnp.float32)                 # matches x.to(torch.float32)
    B, T, Fin = x.shape
    LH = params["w_comb"].shape[0]
    H = params["ln1_g"].shape[1]
    L = LH // H
    nh = int(params["num_heads"])
    hd = H // nh
    O = params["fc2_w_t"].shape[1]

    flops = int(
        2 * B * T * Fin * 4 * LH                      # hoisted layer-0 proj
        + (T + L - 1) * 2 * B * LH * 4 * LH           # wavefront recurrence
        + 2 * B * T * H * 3 * H                       # fused QKV
        + nh * 4 * B * T * T * hd                     # scores + contexts
        + 2 * B * T * H * H                           # fused out-proj
        + 2 * B * T * H                               # pooling scores
        + 2 * B * H * H + 2 * B * H * O)              # MLP
    transcendentals = int((T + L - 1) * B * 6 * LH + nh * B * T * T + B * T)
    param_bytes = sum(int(v.size) * 4 for k, v in params.items()
                      if k != "num_heads")
    bytes_accessed = int(x.size * 4 + param_bytes + B * O * 4)

    kernel = functools.partial(lstm_attention_kernel, num_heads=nh)
    return pl.pallas_call(
        kernel,
        out_shape=jax.ShapeDtypeStruct((B, O), jnp.float32),
        scratch_shapes=[pltpu.VMEM((B, T, H), jnp.float32)],
        cost_estimate=pl.CostEstimate(flops=flops,
                                      transcendentals=transcendentals,
                                      bytes_accessed=bytes_accessed),
    )(x,
      params["w_ih0"], params["w_comb"], params["bias"],
      params["ln1_g"], params["ln1_b"],
      params["w_qkv"], params["b_qkv"], params["w_o"], params["b_o"],
      params["pool_w"],
      params["fc1_w_t"], params["fc1_b"],
      params["ln2_g"], params["ln2_b"],
      params["fc2_w_t"], params["fc2_b"])


# ----------------------------------------------------------------------------
# Deterministic parameter initialization (mirrors the module's __init__) and
# host-side packing into the wavefront / fused-head layouts.
# ----------------------------------------------------------------------------
def _xavier_uniform(key, out_features, in_features):
    a = math.sqrt(6.0 / (in_features + out_features))
    return jax.random.uniform(key, (out_features, in_features),
                              jnp.float32, -a, a)


def init_params(key, feature_size, hidden_size, num_layers, num_heads,
                output_dim):
    F, H, L, nh = feature_size, hidden_size, num_layers, num_heads
    LH = L * H
    keys = iter(jax.random.split(key, 2 * L + 8))
    orth = jax.nn.initializers.orthogonal()

    # Gate-major packing: combined gate column block k (0=i,1=f,2=g,3=o) spans
    # [k*LH, (k+1)*LH); within it, layer l occupies [l*H, (l+1)*H).
    w_comb = jnp.zeros((LH, 4 * LH), jnp.float32)
    w_ih0 = jnp.zeros((F, 4 * LH), jnp.float32)
    for l in range(L):
        in_size = F if l == 0 else H
        w_ih_t = _xavier_uniform(next(keys), 4 * H, in_size).T    # (in, 4H)
        w_hh_t = orth(next(keys), (4 * H, H), jnp.float32).T      # (H, 4H)
        for k in range(4):
            dst = slice(k * LH + l * H, k * LH + (l + 1) * H)
            src = slice(k * H, (k + 1) * H)
            w_comb = w_comb.at[l * H:(l + 1) * H, dst].set(w_hh_t[:, src])
            if l == 0:
                w_ih0 = w_ih0.at[:, dst].set(w_ih_t[:, src])
            else:
                w_comb = w_comb.at[(l - 1) * H:l * H, dst].set(w_ih_t[:, src])
    # b_ih + b_hh: both zero except the forget-gate quarter = 1.0 each -> 2.0.
    bias_all = jnp.zeros((1, 4 * LH), jnp.float32).at[:, LH:2 * LH].set(2.0)

    E = H
    in_proj = _xavier_uniform(next(keys), 3 * E, E)               # (3E, E) [q;k;v]
    w_qkv = in_proj.T                                             # (E, 3E)
    b_qkv = jnp.zeros((1, 3 * E), jnp.float32)
    out_proj = _xavier_uniform(next(keys), E, E)                  # (E, E)
    w_o = out_proj.T
    b_o = jnp.zeros((1, E), jnp.float32)

    pool_w = _xavier_uniform(next(keys), E, 1)                    # (E, 1)
    bound = 1.0 / math.sqrt(E)
    fc1_w = _xavier_uniform(next(keys), E, E)
    fc1_b = jax.random.uniform(next(keys), (1, E), jnp.float32, -bound, bound)
    fc2_w = _xavier_uniform(next(keys), output_dim, E)
    fc2_b = jax.random.uniform(next(keys), (1, output_dim), jnp.float32,
                               -bound, bound)

    return dict(
        w_ih0=w_ih0, w_comb=w_comb, bias=bias_all,
        ln1_g=jnp.ones((1, E), jnp.float32),
        ln1_b=jnp.zeros((1, E), jnp.float32),
        w_qkv=w_qkv, b_qkv=b_qkv, w_o=w_o, b_o=b_o,
        pool_w=pool_w,
        fc1_w_t=fc1_w.T, fc1_b=fc1_b,
        ln2_g=jnp.ones((1, E), jnp.float32),
        ln2_b=jnp.zeros((1, E), jnp.float32),
        fc2_w_t=fc2_w.T, fc2_b=fc2_b,
        num_heads=nh,
    )


if __name__ == "__main__":
    # small shapes consistent with the module's forward
    B, T, F = 2, 8, 16          # batch, sequence, feature_size
    H, L = 32, 4                # hidden_size, num_layers
    num_heads = min(8, L)       # = 4 (as in the module)
    out_dim = 2

    key = jax.random.PRNGKey(0)
    pkey, xkey = jax.random.split(key)
    params = init_params(pkey, F, H, L, num_heads, out_dim)
    x = jax.random.normal(xkey, (B, T, F), jnp.float32)

    out = lstm_attention_forward(params, x)
    out = jax.block_until_ready(out)

    assert out.shape == (B, out_dim), out.shape
    assert bool(jnp.all(jnp.isfinite(out)))
    print("KERNEL_OK")
</pallas_src>

<mosaic_0001>
module attributes {stable_mosaic.version = 11 : i64} {
  func.func @lstm_attention_kernel(%arg0: memref<2x8x16xf32, #tpu.memory_space<vmem>>, %arg1: memref<16x512xf32, #tpu.memory_space<vmem>>, %arg2: memref<128x512xf32, #tpu.memory_space<vmem>>, %arg3: memref<1x512xf32, #tpu.memory_space<vmem>>, %arg4: memref<1x32xf32, #tpu.memory_space<vmem>>, %arg5: memref<1x32xf32, #tpu.memory_space<vmem>>, %arg6: memref<32x96xf32, #tpu.memory_space<vmem>>, %arg7: memref<1x96xf32, #tpu.memory_space<vmem>>, %arg8: memref<32x32xf32, #tpu.memory_space<vmem>>, %arg9: memref<1x32xf32, #tpu.memory_space<vmem>>, %arg10: memref<32x1xf32, #tpu.memory_space<vmem>>, %arg11: memref<32x32xf32, #tpu.memory_space<vmem>>, %arg12: memref<1x32xf32, #tpu.memory_space<vmem>>, %arg13: memref<1x32xf32, #tpu.memory_space<vmem>>, %arg14: memref<1x32xf32, #tpu.memory_space<vmem>>, %arg15: memref<32x2xf32, #tpu.memory_space<vmem>>, %arg16: memref<1x2xf32, #tpu.memory_space<vmem>>, %arg17: memref<2x2xf32, #tpu.memory_space<vmem>>, %arg18: memref<2x8x32xf32, #tpu.memory_space<vmem>>) attributes {dimension_semantics = [], scalar_prefetch = 0 : i64, scratch_operands = 1 : i64, tpu.core_type = #tpu.core_type<tc>} {
    %c0 = arith.constant 0 : index
    %c0_0 = arith.constant 0 : index
    %c0_1 = arith.constant 0 : index
    %0 = vector.load %arg0[%c0, %c0_0, %c0_1] : memref<2x8x16xf32, #tpu.memory_space<vmem>>, vector<2x8x16xf32>
    %1 = vector.shape_cast %0 : vector<2x8x16xf32> to vector<16x16xf32>
    %c0_2 = arith.constant 0 : index
    %c0_3 = arith.constant 0 : index
    %2 = vector.load %arg1[%c0_2, %c0_3] : memref<16x512xf32, #tpu.memory_space<vmem>>, vector<16x512xf32>
    %cst = arith.constant dense<0.000000e+00> : vector<16x512xf32>
    %3 = tpu.matmul %1, %2, %cst {dimension_numbers = #tpu.dot_dimension_numbers<[1], [0], [0], [1], [0, 0, 1, 1], [], []>} : vector<16x16xf32>, vector<16x512xf32>, vector<16x512xf32> -> vector<16x512xf32>
    %4 = vector.shape_cast %3 : vector<16x512xf32> to vector<2x8x512xf32>
    %c0_4 = arith.constant 0 : index
    %c0_5 = arith.constant 0 : index
    %5 = vector.load %arg2[%c0_4, %c0_5] : memref<128x512xf32, #tpu.memory_space<vmem>>, vector<128x512xf32>
    %c0_6 = arith.constant 0 : index
    %c0_7 = arith.constant 0 : index
    %6 = vector.load %arg3[%c0_6, %c0_7] : memref<1x512xf32, #tpu.memory_space<vmem>>, vector<1x512xf32>
    %7 = tpu.iota {dimensions = array<i32: 1>} : vector<1x128xi32>
    %cst_8 = arith.constant 0.000000e+00 : f32
    %8 = vector.broadcast %cst_8 : f32 to vector<2x128xf32>
    %cst_9 = arith.constant 0.000000e+00 : f32
    %9 = vector.broadcast %cst_9 : f32 to vector<2x128xf32>
    %cst_10 = arith.constant dense<0.000000e+00> : vector<2x512xf32>
    %10 = tpu.matmul %8, %5, %cst_10 {dimension_numbers = #tpu.dot_dimension_numbers<[1], [0], [0], [1], [0, 0, 1, 1], [], []>} : vector<2x128xf32>, vector<128x512xf32>, vector<2x512xf32> -> vector<2x512xf32>
    %11 = vector.broadcast %6 : vector<1x512xf32> to vector<2x512xf32>
    %12 = arith.addf %10, %11 : vector<2x512xf32>
    %13 = vector.extract_strided_slice %4 {offsets = [0, 0, 0], sizes = [2, 1, 512], strides = [1, 1, 1]} : vector<2x8x512xf32> to vector<2x1x512xf32>
    %14 = vector.shape_cast %13 : vector<2x1x512xf32> to vector<2x512xf32>
    %15 = arith.addf %12, %14 : vector<2x512xf32>
    %16 = vector.extract_strided_slice %15 {offsets = [0, 0], sizes = [2, 256], strides = [1, 1]} : vector<2x512xf32> to vector<2x256xf32>
    %cst_11 = arith.constant 5.000000e-01 : f32
    %17 = vector.broadcast %cst_11 : f32 to vector<2x256xf32>
    %18 = arith.mulf %17, %16 : vector<2x256xf32>
    %19 = math.tanh %18 : vector<2x256xf32>
    %cst_12 = arith.constant 5.000000e-01 : f32
    %20 = vector.broadcast %cst_12 : f32 to vector<2x256xf32>
    %21 = arith.mulf %20, %19 : vector<2x256xf32>
    %cst_13 = arith.constant 5.000000e-01 : f32
    %22 = vector.broadcast %cst_13 : f32 to vector<2x256xf32>
    %23 = arith.addf %21, %22 : vector<2x256xf32>
    %24 = vector.extract_strided_slice %15 {offsets = [0, 256], sizes = [2, 128], strides = [1, 1]} : vector<2x512xf32> to vector<2x128xf32>
    %25 = math.tanh %24 : vector<2x128xf32>
    %26 = vector.extract_strided_slice %15 {offsets = [0, 384], sizes = [2, 128], strides = [1, 1]} : vector<2x512xf32> to vector<2x128xf32>
    %cst_14 = arith.constant 5.000000e-01 : f32
    %27 = vector.broadcast %cst_14 : f32 to vector<2x128xf32>
    %28 = arith.mulf %27, %26 : vector<2x128xf32>
    %29 = math.tanh %28 : vector<2x128xf32>
    %cst_15 = arith.constant 5.000000e-01 : f32
    %30 = vector.broadcast %cst_15 : f32 to vector<2x128xf32>
    %31 = arith.mulf %30, %29 : vector<2x128xf32>
    %cst_16 = arith.constant 5.000000e-01 : f32
    %32 = vector.broadcast %cst_16 : f32 to vector<2x128xf32>
    %33 = arith.addf %31, %32 : vector<2x128xf32>
    %34 = vector.extract_strided_slice %23 {offsets = [0, 0], sizes = [2, 128], strides = [1, 1]} : vector<2x256xf32> to vector<2x128xf32>
    %35 = vector.extract_strided_slice %23 {offsets = [0, 128], sizes = [2, 128], strides = [1, 1]} : vector<2x256xf32> to vector<2x128xf32>
    %36 = arith.mulf %35, %9 : vector<2x128xf32>
    %37 = arith.mulf %34, %25 : vector<2x128xf32>
    %38 = arith.addf %36, %37 : vector<2x128xf32>
    %39 = math.tanh %38 : vector<2x128xf32>
    %40 = arith.mulf %33, %39 : vector<2x128xf32>
    %c0_i32 = arith.constant 0 : i32
    %41 = vector.broadcast %c0_i32 : i32 to vector<1x128xi32>
    %42 = arith.cmpi sge, %7, %41 : vector<1x128xi32>
    %c32_i32 = arith.constant 32 : i32
    %43 = vector.broadcast %c32_i32 : i32 to vector<1x128xi32>
    %44 = arith.cmpi slt, %7, %43 : vector<1x128xi32>
    %45 = arith.andi %42, %44 : vector<1x128xi1>
    %46 = vector.shape_cast %45 : vector<1x128xi1> to vector<1x128xi1>
    %47 = vector.broadcast %46 : vector<1x128xi1> to vector<2x128xi1>
    %48 = arith.select %47, %40, %8 : vector<2x128xi1>, vector<2x128xf32>
    %49 = vector.shape_cast %45 : vector<1x128xi1> to vector<1x128xi1>
    %50 = vector.broadcast %49 : vector<1x128xi1> to vector<2x128xi1>
    %51 = arith.select %50, %38, %9 : vector<2x128xi1>, vector<2x128xf32>
    %cst_17 = arith.constant dense<0.000000e+00> : vector<2x512xf32>
    %52 = tpu.matmul %48, %5, %cst_17 {dimension_numbers = #tpu.dot_dimension_numbers<[1], [0], [0], [1], [0, 0, 1, 1], [], []>} : vector<2x128xf32>, vector<128x512xf32>, vector<2x512xf32> -> vector<2x512xf32>
    %53 = vector.broadcast %6 : vector<1x512xf32> to vector<2x512xf32>
    %54 = arith.addf %52, %53 : vector<2x512xf32>
    %55 = vector.extract_strided_slice %4 {offsets = [0, 1, 0], sizes = [2, 1, 512], strides = [1, 1, 1]} : vector<2x8x512xf32> to vector<2x1x512xf32>
    %56 = vector.shape_cast %55 : vector<2x1x512xf32> to vector<2x512xf32>
    %57 = arith.addf %54, %56 : vector<2x512xf32>
    %58 = vector.extract_strided_slice %57 {offsets = [0, 0], sizes = [2, 256], strides = [1, 1]} : vector<2x512xf32> to vector<2x256xf32>
    %cst_18 = arith.constant 5.000000e-01 : f32
    %59 = vector.broadcast %cst_18 : f32 to vector<2x256xf32>
    %60 = arith.mulf %59, %58 : vector<2x256xf32>
    %61 = math.tanh %60 : vector<2x256xf32>
    %cst_19 = arith.constant 5.000000e-01 : f32
    %62 = vector.broadcast %cst_19 : f32 to vector<2x256xf32>
    %63 = arith.mulf %62, %61 : vector<2x256xf32>
    %cst_20 = arith.constant 5.000000e-01 : f32
    %64 = vector.broadcast %cst_20 : f32 to vector<2x256xf32>
    %65 = arith.addf %63, %64 : vector<2x256xf32>
    %66 = vector.extract_strided_slice %57 {offsets = [0, 256], sizes = [2, 128], strides = [1, 1]} : vector<2x512xf32> to vector<2x128xf32>
    %67 = math.tanh %66 : vector<2x128xf32>
    %68 = vector.extract_strided_slice %57 {offsets = [0, 384], sizes = [2, 128], strides = [1, 1]} : vector<2x512xf32> to vector<2x128xf32>
    %cst_21 = arith.constant 5.000000e-01 : f32
    %69 = vector.broadcast %cst_21 : f32 to vector<2x128xf32>
    %70 = arith.mulf %69, %68 : vector<2x128xf32>
    %71 = math.tanh %70 : vector<2x128xf32>
    %cst_22 = arith.constant 5.000000e-01 : f32
    %72 = vector.broadcast %cst_22 : f32 to vector<2x128xf32>
    %73 = arith.mulf %72, %71 : vector<2x128xf32>
    %cst_23 = arith.constant 5.000000e-01 : f32
    %74 = vector.broadcast %cst_23 : f32 to vector<2x128xf32>
    %75 = arith.addf %73, %74 : vector<2x128xf32>
    %76 = vector.extract_strided_slice %65 {offsets = [0, 0], sizes = [2, 128], strides = [1, 1]} : vector<2x256xf32> to vector<2x128xf32>
    %77 = vector.extract_strided_slice %65 {offsets = [0, 128], sizes = [2, 128], strides = [1, 1]} : vector<2x256xf32> to vector<2x128xf32>
    %78 = arith.mulf %77, %51 : vector<2x128xf32>
    %79 = arith.mulf %76, %67 : vector<2x128xf32>
    %80 = arith.addf %78, %79 : vector<2x128xf32>
    %81 = math.tanh %80 : vector<2x128xf32>
    %82 = arith.mulf %75, %81 : vector<2x128xf32>
    %c0_i32_24 = arith.constant 0 : i32
    %83 = vector.broadcast %c0_i32_24 : i32 to vector<1x128xi32>
    %84 = arith.cmpi sge, %7, %83 : vector<1x128xi32>
    %c64_i32 = arith.constant 64 : i32
    %85 = vector.broadcast %c64_i32 : i32 to vector<1x128xi32>
    %86 = arith.cmpi slt, %7, %85 : vector<1x128xi32>
    %87 = arith.andi %84, %86 : vector<1x128xi1>
    %88 = vector.shape_cast %87 : vector<1x128xi1> to vector<1x128xi1>
    %89 = vector.broadcast %88 : vector<1x128xi1> to vector<2x128xi1>
    %90 = arith.select %89, %82, %48 : vector<2x128xi1>, vector<2x128xf32>
    %91 = vector.shape_cast %87 : vector<1x128xi1> to vector<1x128xi1>
    %92 = vector.broadcast %91 : vector<1x128xi1> to vector<2x128xi1>
    %93 = arith.select %92, %80, %51 : vector<2x128xi1>, vector<2x128xf32>
    %cst_25 = arith.constant dense<0.000000e+00> : vector<2x512xf32>
    %94 = tpu.matmul %90, %5, %cst_25 {dimension_numbers = #tpu.dot_dimension_numbers<[1], [0], [0], [1], [0, 0, 1, 1], [], []>} : vector<2x128xf32>, vector<128x512xf32>, vector<2x512xf32> -> vector<2x512xf32>
    %95 = vector.broadcast %6 : vector<1x512xf32> to vector<2x512xf32>
    %96 = arith.addf %94, %95 : vector<2x512xf32>
    %97 = vector.extract_strided_slice %4 {offsets = [0, 2, 0], sizes = [2, 1, 512], strides = [1, 1, 1]} : vector<2x8x512xf32> to vector<2x1x512xf32>
    %98 = vector.shape_cast %97 : vector<2x1x512xf32> to vector<2x512xf32>
    %99 = arith.addf %96, %98 : vector<2x512xf32>
    %100 = vector.extract_strided_slice %99 {offsets = [0, 0], sizes = [2, 256], strides = [1, 1]} : vector<2x512xf32> to vector<2x256xf32>
    %cst_26 = arith.constant 5.000000e-01 : f32
    %101 = vector.broadcast %cst_26 : f32 to vector<2x256xf32>
    %102 = arith.mulf %101, %100 : vector<2x256xf32>
    %103 = math.tanh %102 : vector<2x256xf32>
    %cst_27 = arith.constant 5.000000e-01 : f32
    %104 = vector.broadcast %cst_27 : f32 to vector<2x256xf32>
    %105 = arith.mulf %104, %103 : vector<2x256xf32>
    %cst_28 = arith.constant 5.000000e-01 : f32
    %106 = vector.broadcast %cst_28 : f32 to vector<2x256xf32>
    %107 = arith.addf %105, %106 : vector<2x256xf32>
    %108 = vector.extract_strided_slice %99 {offsets = [0, 256], sizes = [2, 128], strides = [1, 1]} : vector<2x512xf32> to vector<2x128xf32>
    %109 = math.tanh %108 : vector<2x128xf32>
    %110 = vector.extract_strided_slice %99 {offsets = [0, 384], sizes = [2, 128], strides = [1, 1]} : vector<2x512xf32> to vector<2x128xf32>
    %cst_29 = arith.constant 5.000000e-01 : f32
    %111 = vector.broadcast %cst_29 : f32 to vector<2x128xf32>
    %112 = arith.mulf %111, %110 : vector<2x128xf32>
    %113 = math.tanh %112 : vector<2x128xf32>
    %cst_30 = arith.constant 5.000000e-01 : f32
    %114 = vector.broadcast %cst_30 : f32 to vector<2x128xf32>
    %115 = arith.mulf %114, %113 : vector<2x128xf32>
    %cst_31 = arith.constant 5.000000e-01 : f32
    %116 = vector.broadcast %cst_31 : f32 to vector<2x128xf32>
    %117 = arith.addf %115, %116 : vector<2x128xf32>
    %118 = vector.extract_strided_slice %107 {offsets = [0, 0], sizes = [2, 128], strides = [1, 1]} : vector<2x256xf32> to vector<2x128xf32>
    %119 = vector.extract_strided_slice %107 {offsets = [0, 128], sizes = [2, 128], strides = [1, 1]} : vector<2x256xf32> to vector<2x128xf32>
    %120 = arith.mulf %119, %93 : vector<2x128xf32>
    %121 = arith.mulf %118, %109 : vector<2x128xf32>
    %122 = arith.addf %120, %121 : vector<2x128xf32>
    %123 = math.tanh %122 : vector<2x128xf32>
    %124 = arith.mulf %117, %123 : vector<2x128xf32>
    %c0_i32_32 = arith.constant 0 : i32
    %125 = vector.broadcast %c0_i32_32 : i32 to vector<1x128xi32>
    %126 = arith.cmpi sge, %7, %125 : vector<1x128xi32>
    %c96_i32 = arith.constant 96 : i32
    %127 = vector.broadcast %c96_i32 : i32 to vector<1x128xi32>
    %128 = arith.cmpi slt, %7, %127 : vector<1x128xi32>
    %129 = arith.andi %126, %128 : vector<1x128xi1>
    %130 = vector.shape_cast %129 : vector<1x128xi1> to vector<1x128xi1>
    %131 = vector.broadcast %130 : vector<1x128xi1> to vector<2x128xi1>
    %132 = arith.select %131, %124, %90 : vector<2x128xi1>, vector<2x128xf32>
    %133 = vector.shape_cast %129 : vector<1x128xi1> to vector<1x128xi1>
    %134 = vector.broadcast %133 : vector<1x128xi1> to vector<2x128xi1>
    %135 = arith.select %134, %122, %93 : vector<2x128xi1>, vector<2x128xf32>
    %cst_33 = arith.constant dense<0.000000e+00> : vector<2x512xf32>
    %136 = tpu.matmul %132, %5, %cst_33 {dimension_numbers = #tpu.dot_dimension_numbers<[1], [0], [0], [1], [0, 0, 1, 1], [], []>} : vector<2x128xf32>, vector<128x512xf32>, vector<2x512xf32> -> vector<2x512xf32>
    %137 = vector.broadcast %6 : vector<1x512xf32> to vector<2x512xf32>
    %138 = arith.addf %136, %137 : vector<2x512xf32>
    %139 = vector.extract_strided_slice %4 {offsets = [0, 3, 0], sizes = [2, 1, 512], strides = [1, 1, 1]} : vector<2x8x512xf32> to vector<2x1x512xf32>
    %140 = vector.shape_cast %139 : vector<2x1x512xf32> to vector<2x512xf32>
    %141 = arith.addf %138, %140 : vector<2x512xf32>
    %142 = vector.extract_strided_slice %141 {offsets = [0, 0], sizes = [2, 256], strides = [1, 1]} : vector<2x512xf32> to vector<2x256xf32>
    %cst_34 = arith.constant 5.000000e-01 : f32
    %143 = vector.broadcast %cst_34 : f32 to vector<2x256xf32>
    %144 = arith.mulf %143, %142 : vector<2x256xf32>
    %145 = math.tanh %144 : vector<2x256xf32>
    %cst_35 = arith.constant 5.000000e-01 : f32
    %146 = vector.broadcast %cst_35 : f32 to vector<2x256xf32>
    %147 = arith.mulf %146, %145 : vector<2x256xf32>
    %cst_36 = arith.constant 5.000000e-01 : f32
    %148 = vector.broadcast %cst_36 : f32 to vector<2x256xf32>
    %149 = arith.addf %147, %148 : vector<2x256xf32>
    %150 = vector.extract_strided_slice %141 {offsets = [0, 256], sizes = [2, 128], strides = [1, 1]} : vector<2x512xf32> to vector<2x128xf32>
    %151 = math.tanh %150 : vector<2x128xf32>
    %152 = vector.extract_strided_slice %141 {offsets = [0, 384], sizes = [2, 128], strides = [1, 1]} : vector<2x512xf32> to vector<2x128xf32>
    %cst_37 = arith.constant 5.000000e-01 : f32
    %153 = vector.broadcast %cst_37 : f32 to vector<2x128xf32>
    %154 = arith.mulf %153, %152 : vector<2x128xf32>
    %155 = math.tanh %154 : vector<2x128xf32>
    %cst_38 = arith.constant 5.000000e-01 : f32
    %156 = vector.broadcast %cst_38 : f32 to vector<2x128xf32>
    %157 = arith.mulf %156, %155 : vector<2x128xf32>
    %cst_39 = arith.constant 5.000000e-01 : f32
    %158 = vector.broadcast %cst_39 : f32 to vector<2x128xf32>
    %159 = arith.addf %157, %158 : vector<2x128xf32>
    %160 = vector.extract_strided_slice %149 {offsets = [0, 0], sizes = [2, 128], strides = [1, 1]} : vector<2x256xf32> to vector<2x128xf32>
    %161 = vector.extract_strided_slice %149 {offsets = [0, 128], sizes = [2, 128], strides = [1, 1]} : vector<2x256xf32> to vector<2x128xf32>
    %162 = arith.mulf %161, %135 : vector<2x128xf32>
    %163 = arith.mulf %160, %151 : vector<2x128xf32>
    %164 = arith.addf %162, %163 : vector<2x128xf32>
    %165 = math.tanh %164 : vector<2x128xf32>
    %166 = arith.mulf %159, %165 : vector<2x128xf32>
    %167 = vector.extract_strided_slice %166 {offsets = [0, 96], sizes = [2, 32], strides = [1, 1]} : vector<2x128xf32> to vector<2x32xf32>
    %168 = vector.shape_cast %167 : vector<2x32xf32> to vector<2x1x32xf32>
    %c0_40 = arith.constant 0 : index
    %c0_41 = arith.constant 0 : index
    %c0_42 = arith.constant 0 : index
    %169 = vector.load %arg18[%c0_40, %c0_41, %c0_42] : memref<2x8x32xf32, #tpu.memory_space<vmem>>, vector<2x1x32xf32>
    tpu.vector_store %arg18[%c0_40, %c0_41, %c0_42], %168 {strides = array<i32>} : memref<2x8x32xf32, #tpu.memory_space<vmem>>, vector<2x1x32xf32>,
    %cst_43 = arith.constant dense<0.000000e+00> : vector<2x512xf32>
    %170 = tpu.matmul %166, %5, %cst_43 {dimension_numbers = #tpu.dot_dimension_numbers<[1], [0], [0], [1], [0, 0, 1, 1], [], []>} : vector<2x128xf32>, vector<128x512xf32>, vector<2x512xf32> -> vector<2x512xf32>
    %171 = vector.broadcast %6 : vector<1x512xf32> to vector<2x512xf32>
    %172 = arith.addf %170, %171 : vector<2x512xf32>
    %173 = vector.extract_strided_slice %4 {offsets = [0, 4, 0], sizes = [2, 1, 512], strides = [1, 1, 1]} : vector<2x8x512xf32> to vector<2x1x512xf32>
    %174 = vector.shape_cast %173 : vector<2x1x512xf32> to vector<2x512xf32>
    %175 = arith.addf %172, %174 : vector<2x512xf32>
    %176 = vector.extract_strided_slice %175 {offsets = [0, 0], sizes = [2, 256], strides = [1, 1]} : vector<2x512xf32> to vector<2x256xf32>
    %cst_44 = arith.constant 5.000000e-01 : f32
    %177 = vector.broadcast %cst_44 : f32 to vector<2x256xf32>
    %178 = arith.mulf %177, %176 : vector<2x256xf32>
    %179 = math.tanh %178 : vector<2x256xf32>
    %cst_45 = arith.constant 5.000000e-01 : f32
    %180 = vector.broadcast %cst_45 : f32 to vector<2x256xf32>
    %181 = arith.mulf %180, %179 : vector<2x256xf32>
    %cst_46 = arith.constant 5.000000e-01 : f32
    %182 = vector.broadcast %cst_46 : f32 to vector<2x256xf32>
    %183 = arith.addf %181, %182 : vector<2x256xf32>
    %184 = vector.extract_strided_slice %175 {offsets = [0, 256], sizes = [2, 128], strides = [1, 1]} : vector<2x512xf32> to vector<2x128xf32>
    %185 = math.tanh %184 : vector<2x128xf32>
    %186 = vector.extract_strided_slice %175 {offsets = [0, 384], sizes = [2, 128], strides = [1, 1]} : vector<2x512xf32> to vector<2x128xf32>
    %cst_47 = arith.constant 5.000000e-01 : f32
    %187 = vector.broadcast %cst_47 : f32 to vector<2x128xf32>
    %188 = arith.mulf %187, %186 : vector<2x128xf32>
    %189 = math.tanh %188 : vector<2x128xf32>
    %cst_48 = arith.constant 5.000000e-01 : f32
    %190 = vector.broadcast %cst_48 : f32 to vector<2x128xf32>
    %191 = arith.mulf %190, %189 : vector<2x128xf32>
    %cst_49 = arith.constant 5.000000e-01 : f32
    %192 = vector.broadcast %cst_49 : f32 to vector<2x128xf32>
    %193 = arith.addf %191, %192 : vector<2x128xf32>
    %194 = vector.extract_strided_slice %183 {offsets = [0, 0], sizes = [2, 128], strides = [1, 1]} : vector<2x256xf32> to vector<2x128xf32>
    %195 = vector.extract_strided_slice %183 {offsets = [0, 128], sizes = [2, 128], strides = [1, 1]} : vector<2x256xf32> to vector<2x128xf32>
    %196 = arith.mulf %195, %164 : vector<2x128xf32>
    %197 = arith.mulf %194, %185 : vector<2x128xf32>
    %198 = arith.addf %196, %197 : vector<2x128xf32>
    %199 = math.tanh %198 : vector<2x128xf32>
    %200 = arith.mulf %193, %199 : vector<2x128xf32>
    %201 = vector.extract_strided_slice %200 {offsets = [0, 96], sizes = [2, 32], strides = [1, 1]} : vector<2x128xf32> to vector<2x32xf32>
    %202 = vector.shape_cast %201 : vector<2x32xf32> to vector<2x1x32xf32>
    %c0_50 = arith.constant 0 : index
    %c1 = arith.constant 1 : index
    %c0_51 = arith.constant 0 : index
    %203 = vector.load %arg18[%c0_50, %c1, %c0_51] : memref<2x8x32xf32, #tpu.memory_space<vmem>>, vector<2x1x32xf32>
    tpu.vector_store %arg18[%c0_50, %c1, %c0_51], %202 {strides = array<i32>} : memref<2x8x32xf32, #tpu.memory_space<vmem>>, vector<2x1x32xf32>,
    %cst_52 = arith.constant dense<0.000000e+00> : vector<2x512xf32>
    %204 = tpu.matmul %200, %5, %cst_52 {dimension_numbers = #tpu.dot_dimension_numbers<[1], [0], [0], [1], [0, 0, 1, 1], [], []>} : vector<2x128xf32>, vector<128x512xf32>, vector<2x512xf32> -> vector<2x512xf32>
    %205 = vector.broadcast %6 : vector<1x512xf32> to vector<2x512xf32>
    %206 = arith.addf %204, %205 : vector<2x512xf32>
    %207 = vector.extract_strided_slice %4 {offsets = [0, 5, 0], sizes = [2, 1, 512], strides = [1, 1, 1]} : vector<2x8x512xf32> to vector<2x1x512xf32>
    %208 = vector.shape_cast %207 : vector<2x1x512xf32> to vector<2x512xf32>
    %209 = arith.addf %206, %208 : vector<2x512xf32>
    %210 = vector.extract_strided_slice %209 {offsets = [0, 0], sizes = [2, 256], strides = [1, 1]} : vector<2x512xf32> to vector<2x256xf32>
    %cst_53 = arith.constant 5.000000e-01 : f32
    %211 = vector.broadcast %cst_53 : f32 to vector<2x256xf32>
    %212 = arith.mulf %211, %210 : vector<2x256xf32>
    %213 = math.tanh %212 : vector<2x256xf32>
    %cst_54 = arith.constant 5.000000e-01 : f32
    %214 = vector.broadcast %cst_54 : f32 to vector<2x256xf32>
    %215 = arith.mulf %214, %213 : vector<2x256xf32>
    %cst_55 = arith.constant 5.000000e-01 : f32
    %216 = vector.broadcast %cst_55 : f32 to vector<2x256xf32>
    %217 = arith.addf %215, %216 : vector<2x256xf32>
    %218 = vector.extract_strided_slice %209 {offsets = [0, 256], sizes = [2, 128], strides = [1, 1]} : vector<2x512xf32> to vector<2x128xf32>
    %219 = math.tanh %218 : vector<2x128xf32>
    %220 = vector.extract_strided_slice %209 {offsets = [0, 384], sizes = [2, 128], strides = [1, 1]} : vector<2x512xf32> to vector<2x128xf32>
    %cst_56 = arith.constant 5.000000e-01 : f32
    %221 = vector.broadcast %cst_56 : f32 to vector<2x128xf32>
    %222 = arith.mulf %221, %220 : vector<2x128xf32>
    %223 = math.tanh %222 : vector<2x128xf32>
    %cst_57 = arith.constant 5.000000e-01 : f32
    %224 = vector.broadcast %cst_57 : f32 to vector<2x128xf32>
    %225 = arith.mulf %224, %223 : vector<2x128xf32>
    %cst_58 = arith.constant 5.000000e-01 : f32
    %226 = vector.broadcast %cst_58 : f32 to vector<2x128xf32>
    %227 = arith.addf %225, %226 : vector<2x128xf32>
    %228 = vector.extract_strided_slice %217 {offsets = [0, 0], sizes = [2, 128], strides = [1, 1]} : vector<2x256xf32> to vector<2x128xf32>
    %229 = vector.extract_strided_slice %217 {offsets = [0, 128], sizes = [2, 128], strides = [1, 1]} : vector<2x256xf32> to vector<2x128xf32>
    %230 = arith.mulf %229, %198 : vector<2x128xf32>
    %231 = arith.mulf %228, %219 : vector<2x128xf32>
    %232 = arith.addf %230, %231 : vector<2x128xf32>
    %233 = math.tanh %232 : vector<2x128xf32>
    %234 = arith.mulf %227, %233 : vector<2x128xf32>
    %235 = vector.extract_strided_slice %234 {offsets = [0, 96], sizes = [2, 32], strides = [1, 1]} : vector<2x128xf32> to vector<2x32xf32>
    %236 = vector.shape_cast %235 : vector<2x32xf32> to vector<2x1x32xf32>
    %c0_59 = arith.constant 0 : index
    %c2 = arith.constant 2 : index
    %c0_60 = arith.constant 0 : index
    %237 = vector.load %arg18[%c0_59, %c2, %c0_60] : memref<2x8x32xf32, #tpu.memory_space<vmem>>, vector<2x1x32xf32>
    tpu.vector_store %arg18[%c0_59, %c2, %c0_60], %236 {strides = array<i32>} : memref<2x8x32xf32, #tpu.memory_space<vmem>>, vector<2x1x32xf32>,
    %cst_61 = arith.constant dense<0.000000e+00> : vector<2x512xf32>
    %238 = tpu.matmul %234, %5, %cst_61 {dimension_numbers = #tpu.dot_dimension_numbers<[1], [0], [0], [1], [0, 0, 1, 1], [], []>} : vector<2x128xf32>, vector<128x512xf32>, vector<2x512xf32> -> vector<2x512xf32>
    %239 = vector.broadcast %6 : vector<1x512xf32> to vector<2x512xf32>
    %240 = arith.addf %238, %239 : vector<2x512xf32>
    %241 = vector.extract_strided_slice %4 {offsets = [0, 6, 0], sizes = [2, 1, 512], strides = [1, 1, 1]} : vector<2x8x512xf32> to vector<2x1x512xf32>
    %242 = vector.shape_cast %241 : vector<2x1x512xf32> to vector<2x512xf32>
    %243 = arith.addf %240, %242 : vector<2x512xf32>
    %244 = vector.extract_strided_slice %243 {offsets = [0, 0], sizes = [2, 256], strides = [1, 1]} : vector<2x512xf32> to vector<2x256xf32>
    %cst_62 = arith.constant 5.000000e-01 : f32
    %245 = vector.broadcast %cst_62 : f32 to vector<2x256xf32>
    %246 = arith.mulf %245, %244 : vector<2x256xf32>
    %247 = math.tanh %246 : vector<2x256xf32>
    %cst_63 = arith.constant 5.000000e-01 : f32
    %248 = vector.broadcast %cst_63 : f32 to vector<2x256xf32>
    %249 = arith.mulf %248, %247 : vector<2x256xf32>
    %cst_64 = arith.constant 5.000000e-01 : f32
    %250 = vector.broadcast %cst_64 : f32 to vector<2x256xf32>
    %251 = arith.addf %249, %250 : vector<2x256xf32>
    %252 = vector.extract_strided_slice %243 {offsets = [0, 256], sizes = [2, 128], strides = [1, 1]} : vector<2x512xf32> to vector<2x128xf32>
    %253 = math.tanh %252 : vector<2x128xf32>
    %254 = vector.extract_strided_slice %243 {offsets = [0, 384], sizes = [2, 128], strides = [1, 1]} : vector<2x512xf32> to vector<2x128xf32>
    %cst_65 = arith.constant 5.000000e-01 : f32
    %255 = vector.broadcast %cst_65 : f32 to vector<2x128xf32>
    %256 = arith.mulf %255, %254 : vector<2x128xf32>
    %257 = math.tanh %256 : vector<2x128xf32>
    %cst_66 = arith.constant 5.000000e-01 : f32
    %258 = vector.broadcast %cst_66 : f32 to vector<2x128xf32>
    %259 = arith.mulf %258, %257 : vector<2x128xf32>
    %cst_67 = arith.constant 5.000000e-01 : f32
    %260 = vector.broadcast %cst_67 : f32 to vector<2x128xf32>
    %261 = arith.addf %259, %260 : vector<2x128xf32>
    %262 = vector.extract_strided_slice %251 {offsets = [0, 0], sizes = [2, 128], strides = [1, 1]} : vector<2x256xf32> to vector<2x128xf32>
    %263 = vector.extract_strided_slice %251 {offsets = [0, 128], sizes = [2, 128], strides = [1, 1]} : vector<2x256xf32> to vector<2x128xf32>
    %264 = arith.mulf %263, %232 : vector<2x128xf32>
    %265 = arith.mulf %262, %253 : vector<2x128xf32>
    %266 = arith.addf %264, %265 : vector<2x128xf32>
    %267 = math.tanh %266 : vector<2x128xf32>
    %268 = arith.mulf %261, %267 : vector<2x128xf32>
    %269 = vector.extract_strided_slice %268 {offsets = [0, 96], sizes = [2, 32], strides = [1, 1]} : vector<2x128xf32> to vector<2x32xf32>
    %270 = vector.shape_cast %269 : vector<2x32xf32> to vector<2x1x32xf32>
    %c0_68 = arith.constant 0 : index
    %c3 = arith.constant 3 : index
    %c0_69 = arith.constant 0 : index
    %271 = vector.load %arg18[%c0_68, %c3, %c0_69] : memref<2x8x32xf32, #tpu.memory_space<vmem>>, vector<2x1x32xf32>
    tpu.vector_store %arg18[%c0_68, %c3, %c0_69], %270 {strides = array<i32>} : memref<2x8x32xf32, #tpu.memory_space<vmem>>, vector<2x1x32xf32>,
    %cst_70 = arith.constant dense<0.000000e+00> : vector<2x512xf32>
    %272 = tpu.matmul %268, %5, %cst_70 {dimension_numbers = #tpu.dot_dimension_numbers<[1], [0], [0], [1], [0, 0, 1, 1], [], []>} : vector<2x128xf32>, vector<128x512xf32>, vector<2x512xf32> -> vector<2x512xf32>
    %273 = vector.broadcast %6 : vector<1x512xf32> to vector<2x512xf32>
    %274 = arith.addf %272, %273 : vector<2x512xf32>
    %275 = vector.extract_strided_slice %4 {offsets = [0, 7, 0], sizes = [2, 1, 512], strides = [1, 1, 1]} : vector<2x8x512xf32> to vector<2x1x512xf32>
    %276 = vector.shape_cast %275 : vector<2x1x512xf32> to vector<2x512xf32>
    %277 = arith.addf %274, %276 : vector<2x512xf32>
    %278 = vector.extract_strided_slice %277 {offsets = [0, 0], sizes = [2, 256], strides = [1, 1]} : vector<2x512xf32> to vector<2x256xf32>
    %cst_71 = arith.constant 5.000000e-01 : f32
    %279 = vector.broadcast %cst_71 : f32 to vector<2x256xf32>
    %280 = arith.mulf %279, %278 : vector<2x256xf32>
    %281 = math.tanh %280 : vector<2x256xf32>
    %cst_72 = arith.constant 5.000000e-01 : f32
    %282 = vector.broadcast %cst_72 : f32 to vector<2x256xf32>
    %283 = arith.mulf %282, %281 : vector<2x256xf32>
    %cst_73 = arith.constant 5.000000e-01 : f32
    %284 = vector.broadcast %cst_73 : f32 to vector<2x256xf32>
    %285 = arith.addf %283, %284 : vector<2x256xf32>
    %286 = vector.extract_strided_slice %277 {offsets = [0, 256], sizes = [2, 128], strides = [1, 1]} : vector<2x512xf32> to vector<2x128xf32>
    %287 = math.tanh %286 : vector<2x128xf32>
    %288 = vector.extract_strided_slice %277 {offsets = [0, 384], sizes = [2, 128], strides = [1, 1]} : vector<2x512xf32> to vector<2x128xf32>
    %cst_74 = arith.constant 5.000000e-01 : f32
    %289 = vector.broadcast %cst_74 : f32 to vector<2x128xf32>
    %290 = arith.mulf %289, %288 : vector<2x128xf32>
    %291 = math.tanh %290 : vector<2x128xf32>
    %cst_75 = arith.constant 5.000000e-01 : f32
    %292 = vector.broadcast %cst_75 : f32 to vector<2x128xf32>
    %293 = arith.mulf %292, %291 : vector<2x128xf32>
    %cst_76 = arith.constant 5.000000e-01 : f32
    %294 = vector.broadcast %cst_76 : f32 to vector<2x128xf32>
    %295 = arith.addf %293, %294 : vector<2x128xf32>
    %296 = vector.extract_strided_slice %285 {offsets = [0, 0], sizes = [2, 128], strides = [1, 1]} : vector<2x256xf32> to vector<2x128xf32>
    %297 = vector.extract_strided_slice %285 {offsets = [0, 128], sizes = [2, 128], strides = [1, 1]} : vector<2x256xf32> to vector<2x128xf32>
    %298 = arith.mulf %297, %266 : vector<2x128xf32>
    %299 = arith.mulf %296, %287 : vector<2x128xf32>
    %300 = arith.addf %298, %299 : vector<2x128xf32>
    %301 = math.tanh %300 : vector<2x128xf32>
    %302 = arith.mulf %295, %301 : vector<2x128xf32>
    %303 = vector.extract_strided_slice %302 {offsets = [0, 96], sizes = [2, 32], strides = [1, 1]} : vector<2x128xf32> to vector<2x32xf32>
    %304 = vector.shape_cast %303 : vector<2x32xf32> to vector<2x1x32xf32>
    %c0_77 = arith.constant 0 : index
    %c4 = arith.constant 4 : index
    %c0_78 = arith.constant 0 : index
    %305 = vector.load %arg18[%c0_77, %c4, %c0_78] : memref<2x8x32xf32, #tpu.memory_space<vmem>>, vector<2x1x32xf32>
    tpu.vector_store %arg18[%c0_77, %c4, %c0_78], %304 {strides = array<i32>} : memref<2x8x32xf32, #tpu.memory_space<vmem>>, vector<2x1x32xf32>,
    %cst_79 = arith.constant dense<0.000000e+00> : vector<2x512xf32>
    %306 = tpu.matmul %302, %5, %cst_79 {dimension_numbers = #tpu.dot_dimension_numbers<[1], [0], [0], [1], [0, 0, 1, 1], [], []>} : vector<2x128xf32>, vector<128x512xf32>, vector<2x512xf32> -> vector<2x512xf32>
    %307 = vector.broadcast %6 : vector<1x512xf32> to vector<2x512xf32>
    %308 = arith.addf %306, %307 : vector<2x512xf32>
    %309 = vector.extract_strided_slice %308 {offsets = [0, 0], sizes = [2, 256], strides = [1, 1]} : vector<2x512xf32> to vector<2x256xf32>
    %cst_80 = arith.constant 5.000000e-01 : f32
    %310 = vector.broadcast %cst_80 : f32 to vector<2x256xf32>
    %311 = arith.mulf %310, %309 : vector<2x256xf32>
    %312 = math.tanh %311 : vector<2x256xf32>
    %cst_81 = arith.constant 5.000000e-01 : f32
    %313 = vector.broadcast %cst_81 : f32 to vector<2x256xf32>
    %314 = arith.mulf %313, %312 : vector<2x256xf32>
    %cst_82 = arith.constant 5.000000e-01 : f32
    %315 = vector.broadcast %cst_82 : f32 to vector<2x256xf32>
    %316 = arith.addf %314, %315 : vector<2x256xf32>
    %317 = vector.extract_strided_slice %308 {offsets = [0, 256], sizes = [2, 128], strides = [1, 1]} : vector<2x512xf32> to vector<2x128xf32>
    %318 = math.tanh %317 : vector<2x128xf32>
    %319 = vector.extract_strided_slice %308 {offsets = [0, 384], sizes = [2, 128], strides = [1, 1]} : vector<2x512xf32> to vector<2x128xf32>
    %cst_83 = arith.constant 5.000000e-01 : f32
    %320 = vector.broadcast %cst_83 : f32 to vector<2x128xf32>
    %321 = arith.mulf %320, %319 : vector<2x128xf32>
    %322 = math.tanh %321 : vector<2x128xf32>
    %cst_84 = arith.constant 5.000000e-01 : f32
    %323 = vector.broadcast %cst_84 : f32 to vector<2x128xf32>
    %324 = arith.mulf %323, %322 : vector<2x128xf32>
    %cst_85 = arith.constant 5.000000e-01 : f32
    %325 = vector.broadcast %cst_85 : f32 to vector<2x128xf32>
    %326 = arith.addf %324, %325 : vector<2x128xf32>
    %327 = vector.extract_strided_slice %316 {offsets = [0, 0], sizes = [2, 128], strides = [1, 1]} : vector<2x256xf32> to vector<2x128xf32>
    %328 = vector.extract_strided_slice %316 {offsets = [0, 128], sizes = [2, 128], strides = [1, 1]} : vector<2x256xf32> to vector<2x128xf32>
    %329 = arith.mulf %328, %300 : vector<2x128xf32>
    %330 = arith.mulf %327, %318 : vector<2x128xf32>
    %331 = arith.addf %329, %330 : vector<2x128xf32>
    %332 = math.tanh %331 : vector<2x128xf32>
    %333 = arith.mulf %326, %332 : vector<2x128xf32>
    %c32_i32_86 = arith.constant 32 : i32
    %334 = vector.broadcast %c32_i32_86 : i32 to vector<1x128xi32>
    %335 = arith.cmpi sge, %7, %334 : vector<1x128xi32>
    %c128_i32 = arith.constant 128 : i32
    %336 = vector.broadcast %c128_i32 : i32 to vector<1x128xi32>
    %337 = arith.cmpi slt, %7, %336 : vector<1x128xi32>
    %338 = arith.andi %335, %337 : vector<1x128xi1>
    %339 = vector.shape_cast %338 : vector<1x128xi1> to vector<1x128xi1>
    %340 = vector.broadcast %339 : vector<1x128xi1> to vector<2x128xi1>
    %341 = arith.select %340, %333, %302 : vector<2x128xi1>, vector<2x128xf32>
    %342 = vector.shape_cast %338 : vector<1x128xi1> to vector<1x128xi1>
    %343 = vector.broadcast %342 : vector<1x128xi1> to vector<2x128xi1>
    %344 = arith.select %343, %331, %300 : vector<2x128xi1>, vector<2x128xf32>
    %345 = vector.extract_strided_slice %333 {offsets = [0, 96], sizes = [2, 32], strides = [1, 1]} : vector<2x128xf32> to vector<2x32xf32>
    %346 = vector.shape_cast %345 : vector<2x32xf32> to vector<2x1x32xf32>
    %c0_87 = arith.constant 0 : index
    %c5 = arith.constant 5 : index
    %c0_88 = arith.constant 0 : index
    %347 = vector.load %arg18[%c0_87, %c5, %c0_88] : memref<2x8x32xf32, #tpu.memory_space<vmem>>, vector<2x1x32xf32>
    tpu.vector_store %arg18[%c0_87, %c5, %c0_88], %346 {strides = array<i32>} : memref<2x8x32xf32, #tpu.memory_space<vmem>>, vector<2x1x32xf32>,
    %cst_89 = arith.constant dense<0.000000e+00> : vector<2x512xf32>
    %348 = tpu.matmul %341, %5, %cst_89 {dimension_numbers = #tpu.dot_dimension_numbers<[1], [0], [0], [1], [0, 0, 1, 1], [], []>} : vector<2x128xf32>, vector<128x512xf32>, vector<2x512xf32> -> vector<2x512xf32>
    %349 = vector.broadcast %6 : vector<1x512xf32> to vector<2x512xf32>
    %350 = arith.addf %348, %349 : vector<2x512xf32>
    %351 = vector.extract_strided_slice %350 {offsets = [0, 0], sizes = [2, 256], strides = [1, 1]} : vector<2x512xf32> to vector<2x256xf32>
    %cst_90 = arith.constant 5.000000e-01 : f32
    %352 = vector.broadcast %cst_90 : f32 to vector<2x256xf32>
    %353 = arith.mulf %352, %351 : vector<2x256xf32>
    %354 = math.tanh %353 : vector<2x256xf32>
    %cst_91 = arith.constant 5.000000e-01 : f32
    %355 = vector.broadcast %cst_91 : f32 to vector<2x256xf32>
    %356 = arith.mulf %355, %354 : vector<2x256xf32>
    %cst_92 = arith.constant 5.000000e-01 : f32
    %357 = vector.broadcast %cst_92 : f32 to vector<2x256xf32>
    %358 = arith.addf %356, %357 : vector<2x256xf32>
    %359 = vector.extract_strided_slice %350 {offsets = [0, 256], sizes = [2, 128], strides = [1, 1]} : vector<2x512xf32> to vector<2x128xf32>
    %360 = math.tanh %359 : vector<2x128xf32>
    %361 = vector.extract_strided_slice %350 {offsets = [0, 384], sizes = [2, 128], strides = [1, 1]} : vector<2x512xf32> to vector<2x128xf32>
    %cst_93 = arith.constant 5.000000e-01 : f32
    %362 = vector.broadcast %cst_93 : f32 to vector<2x128xf32>
    %363 = arith.mulf %362, %361 : vector<2x128xf32>
    %364 = math.tanh %363 : vector<2x128xf32>
    %cst_94 = arith.constant 5.000000e-01 : f32
    %365 = vector.broadcast %cst_94 : f32 to vector<2x128xf32>
    %366 = arith.mulf %365, %364 : vector<2x128xf32>
    %cst_95 = arith.constant 5.000000e-01 : f32
    %367 = vector.broadcast %cst_95 : f32 to vector<2x128xf32>
    %368 = arith.addf %366, %367 : vector<2x128xf32>
    %369 = vector.extract_strided_slice %358 {offsets = [0, 0], sizes = [2, 128], strides = [1, 1]} : vector<2x256xf32> to vector<2x128xf32>
    %370 = vector.extract_strided_slice %358 {offsets = [0, 128], sizes = [2, 128], strides = [1, 1]} : vector<2x256xf32> to vector<2x128xf32>
    %371 = arith.mulf %370, %344 : vector<2x128xf32>
    %372 = arith.mulf %369, %360 : vector<2x128xf32>
    %373 = arith.addf %371, %372 : vector<2x128xf32>
    %374 = math.tanh %373 : vector<2x128xf32>
    %375 = arith.mulf %368, %374 : vector<2x128xf32>
    %c64_i32_96 = arith.constant 64 : i32
    %376 = vector.broadcast %c64_i32_96 : i32 to vector<1x128xi32>
    %377 = arith.cmpi sge, %7, %376 : vector<1x128xi32>
    %c128_i32_97 = arith.constant 128 : i32
    %378 = vector.broadcast %c128_i32_97 : i32 to vector<1x128xi32>
    %379 = arith.cmpi slt, %7, %378 : vector<1x128xi32>
    %380 = arith.andi %377, %379 : vector<1x128xi1>
    %381 = vector.shape_cast %380 : vector<1x128xi1> to vector<1x128xi1>
    %382 = vector.broadcast %381 : vector<1x128xi1> to vector<2x128xi1>
    %383 = arith.select %382, %375, %341 : vector<2x128xi1>, vector<2x128xf32>
    %384 = vector.shape_cast %380 : vector<1x128xi1> to vector<1x128xi1>
    %385 = vector.broadcast %384 : vector<1x128xi1> to vector<2x128xi1>
    %386 = arith.select %385, %373, %344 : vector<2x128xi1>, vector<2x128xf32>
    %387 = vector.extract_strided_slice %375 {offsets = [0, 96], sizes = [2, 32], strides = [1, 1]} : vector<2x128xf32> to vector<2x32xf32>
    %388 = vector.shape_cast %387 : vector<2x32xf32> to vector<2x1x32xf32>
    %c0_98 = arith.constant 0 : index
    %c6 = arith.constant 6 : index
    %c0_99 = arith.constant 0 : index
    %389 = vector.load %arg18[%c0_98, %c6, %c0_99] : memref<2x8x32xf32, #tpu.memory_space<vmem>>, vector<2x1x32xf32>
    tpu.vector_store %arg18[%c0_98, %c6, %c0_99], %388 {strides = array<i32>} : memref<2x8x32xf32, #tpu.memory_space<vmem>>, vector<2x1x32xf32>,
    %cst_100 = arith.constant dense<0.000000e+00> : vector<2x512xf32>
    %390 = tpu.matmul %383, %5, %cst_100 {dimension_numbers = #tpu.dot_dimension_numbers<[1], [0], [0], [1], [0, 0, 1, 1], [], []>} : vector<2x128xf32>, vector<128x512xf32>, vector<2x512xf32> -> vector<2x512xf32>
    %391 = vector.broadcast %6 : vector<1x512xf32> to vector<2x512xf32>
    %392 = arith.addf %390, %391 : vector<2x512xf32>
    %393 = vector.extract_strided_slice %392 {offsets = [0, 0], sizes = [2, 256], strides = [1, 1]} : vector<2x512xf32> to vector<2x256xf32>
    %cst_101 = arith.constant 5.000000e-01 : f32
    %394 = vector.broadcast %cst_101 : f32 to vector<2x256xf32>
    %395 = arith.mulf %394, %393 : vector<2x256xf32>
    %396 = math.tanh %395 : vector<2x256xf32>
    %cst_102 = arith.constant 5.000000e-01 : f32
    %397 = vector.broadcast %cst_102 : f32 to vector<2x256xf32>
    %398 = arith.mulf %397, %396 : vector<2x256xf32>
    %cst_103 = arith.constant 5.000000e-01 : f32
    %399 = vector.broadcast %cst_103 : f32 to vector<2x256xf32>
    %400 = arith.addf %398, %399 : vector<2x256xf32>
    %401 = vector.extract_strided_slice %392 {offsets = [0, 256], sizes = [2, 128], strides = [1, 1]} : vector<2x512xf32> to vector<2x128xf32>
    %402 = math.tanh %401 : vector<2x128xf32>
    %403 = vector.extract_strided_slice %392 {offsets = [0, 384], sizes = [2, 128], strides = [1, 1]} : vector<2x512xf32> to vector<2x128xf32>
    %cst_104 = arith.constant 5.000000e-01 : f32
    %404 = vector.broadcast %cst_104 : f32 to vector<2x128xf32>
    %405 = arith.mulf %404, %403 : vector<2x128xf32>
    %406 = math.tanh %405 : vector<2x128xf32>
    %cst_105 = arith.constant 5.000000e-01 : f32
    %407 = vector.broadcast %cst_105 : f32 to vector<2x128xf32>
    %408 = arith.mulf %407, %406 : vector<2x128xf32>
    %cst_106 = arith.constant 5.000000e-01 : f32
    %409 = vector.broadcast %cst_106 : f32 to vector<2x128xf32>
    %410 = arith.addf %408, %409 : vector<2x128xf32>
    %411 = vector.extract_strided_slice %400 {offsets = [0, 0], sizes = [2, 128], strides = [1, 1]} : vector<2x256xf32> to vector<2x128xf32>
    %412 = vector.extract_strided_slice %400 {offsets = [0, 128], sizes = [2, 128], strides = [1, 1]} : vector<2x256xf32> to vector<2x128xf32>
    %413 = arith.mulf %412, %386 : vector<2x128xf32>
    %414 = arith.mulf %411, %402 : vector<2x128xf32>
    %415 = arith.addf %413, %414 : vector<2x128xf32>
    %416 = math.tanh %415 : vector<2x128xf32>
    %417 = arith.mulf %410, %416 : vector<2x128xf32>
    %418 = vector.extract_strided_slice %417 {offsets = [0, 96], sizes = [2, 32], strides = [1, 1]} : vector<2x128xf32> to vector<2x32xf32>
    %419 = vector.shape_cast %418 : vector<2x32xf32> to vector<2x1x32xf32>
    %c0_107 = arith.constant 0 : index
    %c7 = arith.constant 7 : index
    %c0_108 = arith.constant 0 : index
    %420 = vector.load %arg18[%c0_107, %c7, %c0_108] : memref<2x8x32xf32, #tpu.memory_space<vmem>>, vector<2x1x32xf32>
    tpu.vector_store %arg18[%c0_107, %c7, %c0_108], %419 {strides = array<i32>} : memref<2x8x32xf32, #tpu.memory_space<vmem>>, vector<2x1x32xf32>,
    %c0_109 = arith.constant 0 : index
    %c0_110 = arith.constant 0 : index
    %c0_111 = arith.constant 0 : index
    %421 = vector.load %arg18[%c0_109, %c0_110, %c0_111] : memref<2x8x32xf32, #tpu.memory_space<vmem>>, vector<2x8x32xf32>
    %422 = vector.shape_cast %421 : vector<2x8x32xf32> to vector<16x32xf32>
    %cst_112 = arith.constant dense<0.000000e+00> : vector<16xf32>
    %423 = vector.multi_reduction <add>, %422, %cst_112 [1] : vector<16x32xf32> to vector<16xf32>
    %424 = vector.shape_cast %423 : vector<16xf32> to vector<16x1xf32>
    %cst_113 = arith.constant 3.200000e+01 : f32
    %425 = vector.broadcast %cst_113 : f32 to vector<16x1xf32>
    %426 = arith.divf %424, %425 : vector<16x1xf32>
    %427 = vector.broadcast %426 : vector<16x1xf32> to vector<16x32xf32>
    %428 = arith.subf %422, %427 : vector<16x32xf32>
    %429 = arith.mulf %428, %428 : vector<16x32xf32>
    %cst_114 = arith.constant dense<0.000000e+00> : vector<16xf32>
    %430 = vector.multi_reduction <add>, %429, %cst_114 [1] : vector<16x32xf32> to vector<16xf32>
    %431 = vector.shape_cast %430 : vector<16xf32> to vector<16x1xf32>
    %cst_115 = arith.constant 3.200000e+01 : f32
    %432 = vector.broadcast %cst_115 : f32 to vector<16x1xf32>
    %433 = arith.divf %431, %432 : vector<16x1xf32>
    %434 = vector.broadcast %426 : vector<16x1xf32> to vector<16x32xf32>
    %435 = arith.subf %422, %434 : vector<16x32xf32>
    %cst_116 = arith.constant 9.99999974E-6 : f32
    %436 = vector.broadcast %cst_116 : f32 to vector<16x1xf32>
    %437 = arith.addf %433, %436 : vector<16x1xf32>
    %438 = math.rsqrt %437 : vector<16x1xf32>
    %439 = vector.broadcast %438 : vector<16x1xf32> to vector<16x32xf32>
    %440 = arith.mulf %435, %439 : vector<16x32xf32>
    %c0_117 = arith.constant 0 : index
    %c0_118 = arith.constant 0 : index
    %441 = vector.load %arg4[%c0_117, %c0_118] : memref<1x32xf32, #tpu.memory_space<vmem>>, vector<1x32xf32>
    %442 = vector.broadcast %441 : vector<1x32xf32> to vector<16x32xf32>
    %443 = arith.mulf %440, %442 : vector<16x32xf32>
    %c0_119 = arith.constant 0 : index
    %c0_120 = arith.constant 0 : index
    %444 = vector.load %arg5[%c0_119, %c0_120] : memref<1x32xf32, #tpu.memory_space<vmem>>, vector<1x32xf32>
    %445 = vector.broadcast %444 : vector<1x32xf32> to vector<16x32xf32>
    %446 = arith.addf %443, %445 : vector<16x32xf32>
    %c0_121 = arith.constant 0 : index
    %c0_122 = arith.constant 0 : index
    %447 = vector.load %arg6[%c0_121, %c0_122] : memref<32x96xf32, #tpu.memory_space<vmem>>, vector<32x96xf32>
    %cst_123 = arith.constant dense<0.000000e+00> : vector<16x96xf32>
    %448 = tpu.matmul %446, %447, %cst_123 {dimension_numbers = #tpu.dot_dimension_numbers<[1], [0], [0], [1], [0, 0, 1, 1], [], []>} : vector<16x32xf32>, vector<32x96xf32>, vector<16x96xf32> -> vector<16x96xf32>
    %c0_124 = arith.constant 0 : index
    %c0_125 = arith.constant 0 : index
    %449 = vector.load %arg7[%c0_124, %c0_125] : memref<1x96xf32, #tpu.memory_space<vmem>>, vector<1x96xf32>
    %450 = vector.broadcast %449 : vector<1x96xf32> to vector<16x96xf32>
    %451 = arith.addf %448, %450 : vector<16x96xf32>
    %452 = vector.extract_strided_slice %451 {offsets = [0, 0], sizes = [16, 8], strides = [1, 1]} : vector<16x96xf32> to vector<16x8xf32>
    %453 = vector.shape_cast %452 : vector<16x8xf32> to vector<2x8x8xf32>
    %454 = vector.extract_strided_slice %451 {offsets = [0, 32], sizes = [16, 8], strides = [1, 1]} : vector<16x96xf32> to vector<16x8xf32>
    %455 = vector.shape_cast %454 : vector<16x8xf32> to vector<2x8x8xf32>
    %456 = vector.extract_strided_slice %451 {offsets = [0, 64], sizes = [16, 8], strides = [1, 1]} : vector<16x96xf32> to vector<16x8xf32>
    %457 = vector.shape_cast %456 : vector<16x8xf32> to vector<2x8x8xf32>
    "tpu.trace_start"() <{level = 10 : i32, message = "bqd,bkd->bqk"}> : () -> ()
    %cst_126 = arith.constant dense<0.000000e+00> : vector<2x8x8xf32>
    %458 = tpu.matmul %453, %455, %cst_126 {dimension_numbers = #tpu.dot_dimension_numbers<[2], [2], [1], [1], [0, 0, 0, 1, 1, 1], [0], [0]>} : vector<2x8x8xf32>, vector<2x8x8xf32>, vector<2x8x8xf32> -> vector<2x8x8xf32>
    "tpu.trace_stop"() : () -> ()
    %cst_127 = arith.constant 0.353553385 : f32
    %459 = vector.broadcast %cst_127 : f32 to vector<2x8x8xf32>
    %460 = arith.mulf %458, %459 : vector<2x8x8xf32>
    %cst_128 = arith.constant dense<0xFF800000> : vector<2x8xf32>
    %461 = vector.multi_reduction <maximumf>, %460, %cst_128 [2] : vector<2x8x8xf32> to vector<2x8xf32>
    %462 = vector.shape_cast %461 : vector<2x8xf32> to vector<2x8x1xf32>
    %463 = vector.broadcast %462 : vector<2x8x1xf32> to vector<2x8x8xf32>
    %464 = arith.subf %460, %463 : vector<2x8x8xf32>
    %465 = math.exp %464 : vector<2x8x8xf32>
    %cst_129 = arith.constant dense<0.000000e+00> : vector<2x8xf32>
    %466 = vector.multi_reduction <add>, %465, %cst_129 [2] : vector<2x8x8xf32> to vector<2x8xf32>
    %467 = vector.shape_cast %466 : vector<2x8xf32> to vector<2x8x1xf32>
    %468 = vector.broadcast %467 : vector<2x8x1xf32> to vector<2x8x8xf32>
    %469 = arith.divf %465, %468 : vector<2x8x8xf32>
    "tpu.trace_start"() <{level = 10 : i32, message = "bqk,bkd->bqd"}> : () -> ()
    %cst_130 = arith.constant dense<0.000000e+00> : vector<2x8x8xf32>
    %470 = tpu.matmul %469, %457, %cst_130 {dimension_numbers = #tpu.dot_dimension_numbers<[2], [1], [1], [2], [0, 0, 0, 1, 1, 2], [0], [0]>} : vector<2x8x8xf32>, vector<2x8x8xf32>, vector<2x8x8xf32> -> vector<2x8x8xf32>
    "tpu.trace_stop"() : () -> ()
    %471 = vector.shape_cast %470 : vector<2x8x8xf32> to vector<16x8xf32>
    %472 = vector.extract_strided_slice %451 {offsets = [0, 8], sizes = [16, 8], strides = [1, 1]} : vector<16x96xf32> to vector<16x8xf32>
    %473 = vector.shape_cast %472 : vector<16x8xf32> to vector<2x8x8xf32>
    %474 = vector.extract_strided_slice %451 {offsets = [0, 40], sizes = [16, 8], strides = [1, 1]} : vector<16x96xf32> to vector<16x8xf32>
    %475 = vector.shape_cast %474 : vector<16x8xf32> to vector<2x8x8xf32>
    %476 = vector.extract_strided_slice %451 {offsets = [0, 72], sizes = [16, 8], strides = [1, 1]} : vector<16x96xf32> to vector<16x8xf32>
    %477 = vector.shape_cast %476 : vector<16x8xf32> to vector<2x8x8xf32>
    "tpu.trace_start"() <{level = 10 : i32, message = "bqd,bkd->bqk"}> : () -> ()
    %cst_131 = arith.constant dense<0.000000e+00> : vector<2x8x8xf32>
    %478 = tpu.matmul %473, %475, %cst_131 {dimension_numbers = #tpu.dot_dimension_numbers<[2], [2], [1], [1], [0, 0, 0, 1, 1, 1], [0], [0]>} : vector<2x8x8xf32>, vector<2x8x8xf32>, vector<2x8x8xf32> -> vector<2x8x8xf32>
    "tpu.trace_stop"() : () -> ()
    %cst_132 = arith.constant 0.353553385 : f32
    %479 = vector.broadcast %cst_132 : f32 to vector<2x8x8xf32>
    %480 = arith.mulf %478, %479 : vector<2x8x8xf32>
    %cst_133 = arith.constant dense<0xFF800000> : vector<2x8xf32>
    %481 = vector.multi_reduction <maximumf>, %480, %cst_133 [2] : vector<2x8x8xf32> to vector<2x8xf32>
    %482 = vector.shape_cast %481 : vector<2x8xf32> to vector<2x8x1xf32>
    %483 = vector.broadcast %482 : vector<2x8x1xf32> to vector<2x8x8xf32>
    %484 = arith.subf %480, %483 : vector<2x8x8xf32>
    %485 = math.exp %484 : vector<2x8x8xf32>
    %cst_134 = arith.constant dense<0.000000e+00> : vector<2x8xf32>
    %486 = vector.multi_reduction <add>, %485, %cst_134 [2] : vector<2x8x8xf32> to vector<2x8xf32>
    %487 = vector.shape_cast %486 : vector<2x8xf32> to vector<2x8x1xf32>
    %488 = vector.broadcast %487 : vector<2x8x1xf32> to vector<2x8x8xf32>
    %489 = arith.divf %485, %488 : vector<2x8x8xf32>
    "tpu.trace_start"() <{level = 10 : i32, message = "bqk,bkd->bqd"}> : () -> ()
    %cst_135 = arith.constant dense<0.000000e+00> : vector<2x8x8xf32>
    %490 = tpu.matmul %489, %477, %cst_135 {dimension_numbers = #tpu.dot_dimension_numbers<[2], [1], [1], [2], [0, 0, 0, 1, 1, 2], [0], [0]>} : vector<2x8x8xf32>, vector<2x8x8xf32>, vector<2x8x8xf32> -> vector<2x8x8xf32>
    "tpu.trace_stop"() : () -> ()
    %491 = vector.shape_cast %490 : vector<2x8x8xf32> to vector<16x8xf32>
    %492 = vector.extract_strided_slice %451 {offsets = [0, 16], sizes = [16, 8], strides = [1, 1]} : vector<16x96xf32> to vector<16x8xf32>
    %493 = vector.shape_cast %492 : vector<16x8xf32> to vector<2x8x8xf32>
    %494 = vector.extract_strided_slice %451 {offsets = [0, 48], sizes = [16, 8], strides = [1, 1]} : vector<16x96xf32> to vector<16x8xf32>
    %495 = vector.shape_cast %494 : vector<16x8xf32> to vector<2x8x8xf32>
    %496 = vector.extract_strided_slice %451 {offsets = [0, 80], sizes = [16, 8], strides = [1, 1]} : vector<16x96xf32> to vector<16x8xf32>
    %497 = vector.shape_cast %496 : vector<16x8xf32> to vector<2x8x8xf32>
    "tpu.trace_start"() <{level = 10 : i32, message = "bqd,bkd->bqk"}> : () -> ()
    %cst_136 = arith.constant dense<0.000000e+00> : vector<2x8x8xf32>
    %498 = tpu.matmul %493, %495, %cst_136 {dimension_numbers = #tpu.dot_dimension_numbers<[2], [2], [1], [1], [0, 0, 0, 1, 1, 1], [0], [0]>} : vector<2x8x8xf32>, vector<2x8x8xf32>, vector<2x8x8xf32> -> vector<2x8x8xf32>
    "tpu.trace_stop"() : () -> ()
    %cst_137 = arith.constant 0.353553385 : f32
    %499 = vector.broadcast %cst_137 : f32 to vector<2x8x8xf32>
    %500 = arith.mulf %498, %499 : vector<2x8x8xf32>
    %cst_138 = arith.constant dense<0xFF800000> : vector<2x8xf32>
    %501 = vector.multi_reduction <maximumf>, %500, %cst_138 [2] : vector<2x8x8xf32> to vector<2x8xf32>
    %502 = vector.shape_cast %501 : vector<2x8xf32> to vector<2x8x1xf32>
    %503 = vector.broadcast %502 : vector<2x8x1xf32> to vector<2x8x8xf32>
    %504 = arith.subf %500, %503 : vector<2x8x8xf32>
    %505 = math.exp %504 : vector<2x8x8xf32>
    %cst_139 = arith.constant dense<0.000000e+00> : vector<2x8xf32>
    %506 = vector.multi_reduction <add>, %505, %cst_139 [2] : vector<2x8x8xf32> to vector<2x8xf32>
    %507 = vector.shape_cast %506 : vector<2x8xf32> to vector<2x8x1xf32>
    %508 = vector.broadcast %507 : vector<2x8x1xf32> to vector<2x8x8xf32>
    %509 = arith.divf %505, %508 : vector<2x8x8xf32>
    "tpu.trace_start"() <{level = 10 : i32, message = "bqk,bkd->bqd"}> : () -> ()
    %cst_140 = arith.constant dense<0.000000e+00> : vector<2x8x8xf32>
    %510 = tpu.matmul %509, %497, %cst_140 {dimension_numbers = #tpu.dot_dimension_numbers<[2], [1], [1], [2], [0, 0, 0, 1, 1, 2], [0], [0]>} : vector<2x8x8xf32>, vector<2x8x8xf32>, vector<2x8x8xf32> -> vector<2x8x8xf32>
    "tpu.trace_stop"() : () -> ()
    %511 = vector.shape_cast %510 : vector<2x8x8xf32> to vector<16x8xf32>
    %512 = vector.extract_strided_slice %451 {offsets = [0, 24], sizes = [16, 8], strides = [1, 1]} : vector<16x96xf32> to vector<16x8xf32>
    %513 = vector.shape_cast %512 : vector<16x8xf32> to vector<2x8x8xf32>
    %514 = vector.extract_strided_slice %451 {offsets = [0, 56], sizes = [16, 8], strides = [1, 1]} : vector<16x96xf32> to vector<16x8xf32>
    %515 = vector.shape_cast %514 : vector<16x8xf32> to vector<2x8x8xf32>
    %516 = vector.extract_strided_slice %451 {offsets = [0, 88], sizes = [16, 8], strides = [1, 1]} : vector<16x96xf32> to vector<16x8xf32>
    %517 = vector.shape_cast %516 : vector<16x8xf32> to vector<2x8x8xf32>
    "tpu.trace_start"() <{level = 10 : i32, message = "bqd,bkd->bqk"}> : () -> ()
    %cst_141 = arith.constant dense<0.000000e+00> : vector<2x8x8xf32>
    %518 = tpu.matmul %513, %515, %cst_141 {dimension_numbers = #tpu.dot_dimension_numbers<[2], [2], [1], [1], [0, 0, 0, 1, 1, 1], [0], [0]>} : vector<2x8x8xf32>, vector<2x8x8xf32>, vector<2x8x8xf32> -> vector<2x8x8xf32>
    "tpu.trace_stop"() : () -> ()
    %cst_142 = arith.constant 0.353553385 : f32
    %519 = vector.broadcast %cst_142 : f32 to vector<2x8x8xf32>
    %520 = arith.mulf %518, %519 : vector<2x8x8xf32>
    %cst_143 = arith.constant dense<0xFF800000> : vector<2x8xf32>
    %521 = vector.multi_reduction <maximumf>, %520, %cst_143 [2] : vector<2x8x8xf32> to vector<2x8xf32>
    %522 = vector.shape_cast %521 : vector<2x8xf32> to vector<2x8x1xf32>
    %523 = vector.broadcast %522 : vector<2x8x1xf32> to vector<2x8x8xf32>
    %524 = arith.subf %520, %523 : vector<2x8x8xf32>
    %525 = math.exp %524 : vector<2x8x8xf32>
    %cst_144 = arith.constant dense<0.000000e+00> : vector<2x8xf32>
    %526 = vector.multi_reduction <add>, %525, %cst_144 [2] : vector<2x8x8xf32> to vector<2x8xf32>
    %527 = vector.shape_cast %526 : vector<2x8xf32> to vector<2x8x1xf32>
    %528 = vector.broadcast %527 : vector<2x8x1xf32> to vector<2x8x8xf32>
    %529 = arith.divf %525, %528 : vector<2x8x8xf32>
    "tpu.trace_start"() <{level = 10 : i32, message = "bqk,bkd->bqd"}> : () -> ()
    %cst_145 = arith.constant dense<0.000000e+00> : vector<2x8x8xf32>
    %530 = tpu.matmul %529, %517, %cst_145 {dimension_numbers = #tpu.dot_dimension_numbers<[2], [1], [1], [2], [0, 0, 0, 1, 1, 2], [0], [0]>} : vector<2x8x8xf32>, vector<2x8x8xf32>, vector<2x8x8xf32> -> vector<2x8x8xf32>
    "tpu.trace_stop"() : () -> ()
    %531 = vector.shape_cast %530 : vector<2x8x8xf32> to vector<16x8xf32>
    %532 = tpu.concatenate %471, %491, %511, %531 in 1 : vector<16x8xf32>, vector<16x8xf32>, vector<16x8xf32>, vector<16x8xf32> -> vector<16x32xf32>
    %c0_146 = arith.constant 0 : index
    %c0_147 = arith.constant 0 : index
    %533 = vector.load %arg8[%c0_146, %c0_147] : memref<32x32xf32, #tpu.memory_space<vmem>>, vector<32x32xf32>
    %cst_148 = arith.constant dense<0.000000e+00> : vector<16x32xf32>
    %534 = tpu.matmul %532, %533, %cst_148 {dimension_numbers = #tpu.dot_dimension_numbers<[1], [0], [0], [1], [0, 0, 1, 1], [], []>} : vector<16x32xf32>, vector<32x32xf32>, vector<16x32xf32> -> vector<16x32xf32>
    %c0_149 = arith.constant 0 : index
    %c0_150 = arith.constant 0 : index
    %535 = vector.load %arg9[%c0_149, %c0_150] : memref<1x32xf32, #tpu.memory_space<vmem>>, vector<1x32xf32>
    %536 = vector.broadcast %535 : vector<1x32xf32> to vector<16x32xf32>
    %537 = arith.addf %534, %536 : vector<16x32xf32>
    %538 = arith.addf %446, %537 : vector<16x32xf32>
    %c0_151 = arith.constant 0 : index
    %c0_152 = arith.constant 0 : index
    %539 = vector.load %arg10[%c0_151, %c0_152] : memref<32x1xf32, #tpu.memory_space<vmem>>, vector<32x1xf32>
    %cst_153 = arith.constant dense<0.000000e+00> : vector<16x1xf32>
    %540 = tpu.matmul %538, %539, %cst_153 {dimension_numbers = #tpu.dot_dimension_numbers<[1], [0], [0], [1], [0, 0, 1, 1], [], []>} : vector<16x32xf32>, vector<32x1xf32>, vector<16x1xf32> -> vector<16x1xf32>
    %541 = vector.shape_cast %540 : vector<16x1xf32> to vector<2x8x1xf32>
    %cst_154 = arith.constant dense<0xFF800000> : vector<2x1xf32>
    %542 = vector.multi_reduction <maximumf>, %541, %cst_154 [1] : vector<2x8x1xf32> to vector<2x1xf32>
    %543 = vector.shape_cast %542 : vector<2x1xf32> to vector<2x1x1xf32>
    %544 = vector.broadcast %543 : vector<2x1x1xf32> to vector<2x8x1xf32>
    %545 = arith.subf %541, %544 : vector<2x8x1xf32>
    %546 = math.exp %545 : vector<2x8x1xf32>
    %cst_155 = arith.constant dense<0.000000e+00> : vector<2x1xf32>
    %547 = vector.multi_reduction <add>, %546, %cst_155 [1] : vector<2x8x1xf32> to vector<2x1xf32>
    %548 = vector.shape_cast %547 : vector<2x1xf32> to vector<2x1x1xf32>
    %549 = vector.broadcast %548 : vector<2x1x1xf32> to vector<2x8x1xf32>
    %550 = arith.divf %546, %549 : vector<2x8x1xf32>
    %551 = vector.shape_cast %538 : vector<16x32xf32> to vector<2x8x32xf32>
    %552 = vector.broadcast %550 : vector<2x8x1xf32> to vector<2x8x32xf32>
    %553 = arith.mulf %551, %552 : vector<2x8x32xf32>
    %cst_156 = arith.constant dense<0.000000e+00> : vector<2x32xf32>
    %554 = vector.multi_reduction <add>, %553, %cst_156 [1] : vector<2x8x32xf32> to vector<2x32xf32>
    %c0_157 = arith.constant 0 : index
    %c0_158 = arith.constant 0 : index
    %555 = vector.load %arg11[%c0_157, %c0_158] : memref<32x32xf32, #tpu.memory_space<vmem>>, vector<32x32xf32>
    %cst_159 = arith.constant dense<0.000000e+00> : vector<2x32xf32>
    %556 = tpu.matmul %554, %555, %cst_159 {dimension_numbers = #tpu.dot_dimension_numbers<[1], [0], [0], [1], [0, 0, 1, 1], [], []>} : vector<2x32xf32>, vector<32x32xf32>, vector<2x32xf32> -> vector<2x32xf32>
    %c0_160 = arith.constant 0 : index
    %c0_161 = arith.constant 0 : index
    %557 = vector.load %arg12[%c0_160, %c0_161] : memref<1x32xf32, #tpu.memory_space<vmem>>, vector<1x32xf32>
    %558 = vector.broadcast %557 : vector<1x32xf32> to vector<2x32xf32>
    %559 = arith.addf %556, %558 : vector<2x32xf32>
    %cst_162 = arith.constant dense<0.000000e+00> : vector<2xf32>
    %560 = vector.multi_reduction <add>, %559, %cst_162 [1] : vector<2x32xf32> to vector<2xf32>
    %561 = vector.shape_cast %560 : vector<2xf32> to vector<2x1xf32>
    %cst_163 = arith.constant 3.200000e+01 : f32
    %562 = vector.broadcast %cst_163 : f32 to vector<2x1xf32>
    %563 = arith.divf %561, %562 : vector<2x1xf32>
    %564 = vector.broadcast %563 : vector<2x1xf32> to vector<2x32xf32>
    %565 = arith.subf %559, %564 : vector<2x32xf32>
    %566 = arith.mulf %565, %565 : vector<2x32xf32>
    %cst_164 = arith.constant dense<0.000000e+00> : vector<2xf32>
    %567 = vector.multi_reduction <add>, %566, %cst_164 [1] : vector<2x32xf32> to vector<2xf32>
    %568 = vector.shape_cast %567 : vector<2xf32> to vector<2x1xf32>
    %cst_165 = arith.constant 3.200000e+01 : f32
    %569 = vector.broadcast %cst_165 : f32 to vector<2x1xf32>
    %570 = arith.divf %568, %569 : vector<2x1xf32>
    %571 = vector.broadcast %563 : vector<2x1xf32> to vector<2x32xf32>
    %572 = arith.subf %559, %571 : vector<2x32xf32>
    %cst_166 = arith.constant 9.99999974E-6 : f32
    %573 = vector.broadcast %cst_166 : f32 to vector<2x1xf32>
    %574 = arith.addf %570, %573 : vector<2x1xf32>
    %575 = math.rsqrt %574 : vector<2x1xf32>
    %576 = vector.broadcast %575 : vector<2x1xf32> to vector<2x32xf32>
    %577 = arith.mulf %572, %576 : vector<2x32xf32>
    %c0_167 = arith.constant 0 : index
    %c0_168 = arith.constant 0 : index
    %578 = vector.load %arg13[%c0_167, %c0_168] : memref<1x32xf32, #tpu.memory_space<vmem>>, vector<1x32xf32>
    %579 = vector.broadcast %578 : vector<1x32xf32> to vector<2x32xf32>
    %580 = arith.mulf %577, %579 : vector<2x32xf32>
    %c0_169 = arith.constant 0 : index
    %c0_170 = arith.constant 0 : index
    %581 = vector.load %arg14[%c0_169, %c0_170] : memref<1x32xf32, #tpu.memory_space<vmem>>, vector<1x32xf32>
    %582 = vector.broadcast %581 : vector<1x32xf32> to vector<2x32xf32>
    %583 = arith.addf %580, %582 : vector<2x32xf32>
    %cst_171 = arith.constant 0.000000e+00 : f32
    %584 = vector.broadcast %cst_171 : f32 to vector<2x32xf32>
    %585 = arith.maximumf %583, %584 : vector<2x32xf32>
    %c0_172 = arith.constant 0 : index
    %c0_173 = arith.constant 0 : index
    %586 = vector.load %arg15[%c0_172, %c0_173] : memref<32x2xf32, #tpu.memory_space<vmem>>, vector<32x2xf32>
    %cst_174 = arith.constant dense<0.000000e+00> : vector<2x2xf32>
    %587 = tpu.matmul %585, %586, %cst_174 {dimension_numbers = #tpu.dot_dimension_numbers<[1], [0], [0], [1], [0, 0, 1, 1], [], []>} : vector<2x32xf32>, vector<32x2xf32>, vector<2x2xf32> -> vector<2x2xf32>
    %c0_175 = arith.constant 0 : index
    %c0_176 = arith.constant 0 : index
    %588 = vector.load %arg16[%c0_175, %c0_176] : memref<1x2xf32, #tpu.memory_space<vmem>>, vector<1x2xf32>
    %589 = vector.broadcast %588 : vector<1x2xf32> to vector<2x2xf32>
    %590 = arith.addf %587, %589 : vector<2x2xf32>
    %c0_177 = arith.constant 0 : index
    %c0_178 = arith.constant 0 : index
    %591 = vector.load %arg17[%c0_177, %c0_178] : memref<2x2xf32, #tpu.memory_space<vmem>>, vector<2x2xf32>
    tpu.vector_store %arg17[%c0_177, %c0_178], %590 {strides = array<i32>} : memref<2x2xf32, #tpu.memory_space<vmem>>, vector<2x2xf32>,
    return
  }
}

</mosaic_0001>

<llo_original>
// kernel: tpu_custom_call.1
$region0: #{tpu_custom_call.1}
  #allocation0 [shape = 'u32[]', space=smem, size = 0x4, offset = 0x4, fixed_abs, tag = 'smem constant byte address 0x4 - core index']
  #allocation1 [shape = 'u32[144,128]{1,0:T(1,128)}', space=vmem, size = 0x12000, scoped, tag = 'internal scratch']
  #allocation2 [shape = 'f32[2,8,32]{2,1,0:T(8,128)}', space=vmem, size = 0x2000, scoped, tag = 'scratch operand']
  %s0 = inlined_call_operand.hbm [shape: f32[2,8,16], index: 0, kind: input, shape index: {}]
  %s1 = inlined_call_operand.vmem [shape: f32[16,512], index: 1, kind: input, shape index: {}]
  %s2 = inlined_call_operand.hbm [shape: f32[128,512], index: 2, kind: input, shape index: {}]
  %s3 = inlined_call_operand.hbm [shape: f32[1,512], index: 3, kind: input, shape index: {}]
  %s4 = inlined_call_operand.vmem [shape: f32[1,32], index: 4, kind: input, shape index: {}]
  %s5 = inlined_call_operand.hbm [shape: f32[1,32], index: 5, kind: input, shape index: {}]
  %s6 = inlined_call_operand.hbm [shape: f32[32,96], index: 6, kind: input, shape index: {}]
  %s7 = inlined_call_operand.hbm [shape: f32[1,96], index: 7, kind: input, shape index: {}]
  %s8 = inlined_call_operand.vmem [shape: f32[32,32], index: 8, kind: input, shape index: {}]
  %s9 = inlined_call_operand.vmem [shape: f32[1,32], index: 9, kind: input, shape index: {}]
  %s10 = inlined_call_operand.vmem [shape: f32[32,1], index: 10, kind: input, shape index: {}]
  %s11 = inlined_call_operand.hbm [shape: f32[32,32], index: 11, kind: input, shape index: {}]
  %s12 = inlined_call_operand.vmem [shape: f32[1,32], index: 12, kind: input, shape index: {}]
  %s13 = inlined_call_operand.vmem [shape: f32[1,32], index: 13, kind: input, shape index: {}]
  %s14 = inlined_call_operand.vmem [shape: f32[1,32], index: 14, kind: input, shape index: {}]
  %s15 = inlined_call_operand.vmem [shape: f32[32,2], index: 15, kind: input, shape index: {}]
  %s16 = inlined_call_operand.vmem [shape: f32[1,2], index: 16, kind: input, shape index: {}]
  %s17 = inlined_call_operand.hbm [shape: f32[2,2], index: 17, kind: output, shape index: {}]
  %s18 = sld [smem:[#allocation0]]
  $region106: #{tpu_custom_call.1} parent=0
    _
  %s20 = ssub.s32 1, %s18
  %s21 = scalar_select 0, %s20, %s18
  $region1: #{tpu_custom_call.1} parent=0
    #allocation3 [shape = 'u8[8192]{0}', space=vmem, size = 0x2000, scoped, tag = 'input window, operand 0, single buffered']
    #allocation4 [shape = 's32[1]{0}', space=sflag, size = 0x4, scoped, tag = 'scoped memory for tpu_custom_call.1']
    #allocation5 [shape = 's32[1]{0}', space=sflag, size = 0x4, scoped, tag = 'scoped memory for tpu_custom_call.1']
    #allocation6 [shape = 'u8[262144]{0}', space=vmem, size = 0x40000, scoped, tag = 'input window, operand 2, single buffered']
    #allocation7 [shape = 's32[1]{0}', space=sflag, size = 0x4, scoped, tag = 'scoped memory for tpu_custom_call.1']
    #allocation8 [shape = 'u8[2048]{0}', space=vmem, size = 0x800, scoped, tag = 'input window, operand 3, single buffered']
    #allocation9 [shape = 'u8[512]{0}', space=vmem, size = 0x400, scoped, tag = 'input window, operand 5, single buffered']
    #allocation10 [shape = 's32[1]{0}', space=sflag, size = 0x4, scoped, tag = 'scoped memory for tpu_custom_call.1']
    #allocation11 [shape = 'u8[16384]{0}', space=vmem, size = 0x4000, scoped, tag = 'input window, operand 6, single buffered']
    #allocation12 [shape = 'u8[512]{0}', space=vmem, size = 0x400, scoped, tag = 'input window, operand 7, single buffered']
    #allocation13 [shape = 's32[1]{0}', space=sflag, size = 0x4, scoped, tag = 'scoped memory for tpu_custom_call.1']
    #allocation14 [shape = 'u8[16384]{0}', space=vmem, size = 0x4000, scoped, tag = 'input window, operand 11, single buffered']
    #allocation15 [shape = 'u8[1024]{0}', space=vmem, size = 0x400, scoped, tag = 'output window, operand 0, single buffered']
    %22 = vsyncpa [#allocation4], 0
    %23 = vsyncpa [#allocation7], 0
    %24 = vsyncpa [#allocation10], 0
    %25 = vsyncpa [#allocation13], 0
    %26 = vsyncpa [#allocation5], 0
    // Predicated region
    $region2: #{tpu_custom_call.1} parent=1 // pred_check
      _
    $region3: #{tpu_custom_call.1} parent=1 // pred_check_branch
      %28 = sbr.rel (0) target = $region5
    $region4: #{tpu_custom_call.1} parent=1 // pred_region
      %s30 = ssub.s32 256, 256
      %31 = vsyncadd [#allocation4], %s30
      %s32 = sshll.u32 [#allocation3], 4
      %s33 = int_to_ptr.vmem [resolvable:$true] %s32
      %38 = dma.hbm_to_vmem [thread:$0]  %s0, 256, %s33, [#allocation4], 128, 128, 8
    $region5: #{tpu_custom_call.1} parent=1 // pred_fallthru
      _
    // Predicated region
    $region6: #{tpu_custom_call.1} parent=1 // pred_check
      _
    $region7: #{tpu_custom_call.1} parent=1 // pred_check_branch
      %40 = sbr.rel (0) target = $region9
    $region8: #{tpu_custom_call.1} parent=1 // pred_region
      _
    $region9: #{tpu_custom_call.1} parent=1 // pred_fallthru
      _
    // Predicated region
    $region10: #{tpu_custom_call.1} parent=1 // pred_check
      _
    $region11: #{tpu_custom_call.1} parent=1 // pred_check_branch
      %42 = sbr.rel (0) target = $region13
    $region12: #{tpu_custom_call.1} parent=1 // pred_region
      %s44 = ssub.s32 8192, 8192
      %45 = vsyncadd [#allocation7], %s44
      %s46 = sshll.u32 [#allocation6], 4
      %s47 = int_to_ptr.vmem [resolvable:$true] %s46
      %52 = dma.hbm_to_vmem [thread:$0]  %s2, 8192, %s47, [#allocation7], 512, 512, 32
    $region13: #{tpu_custom_call.1} parent=1 // pred_fallthru
      _
    // Predicated region
    $region14: #{tpu_custom_call.1} parent=1 // pred_check
      _
    $region15: #{tpu_custom_call.1} parent=1 // pred_check_branch
      %54 = sbr.rel (0) target = $region17
    $region16: #{tpu_custom_call.1} parent=1 // pred_region
      %s56 = ssub.s32 64, 64
      %57 = vsyncadd [#allocation7], %s56
      %s59 = sshll.u32 [#allocation8], 4
      %s60 = int_to_ptr.vmem [resolvable:$true] %s59
      %62 = dma.hbm_to_vmem [thread:$0]  %s3, 64, %s60, [#allocation7]
    $region17: #{tpu_custom_call.1} parent=1 // pred_fallthru
      _
    // Predicated region
    $region18: #{tpu_custom_call.1} parent=1 // pred_check
      _
    $region19: #{tpu_custom_call.1} parent=1 // pred_check_branch
      %64 = sbr.rel (0) target = $region21
    $region20: #{tpu_custom_call.1} parent=1 // pred_region
      _
    $region21: #{tpu_custom_call.1} parent=1 // pred_fallthru
      _
    // Predicated region
    $region22: #{tpu_custom_call.1} parent=1 // pred_check
      _
    $region23: #{tpu_custom_call.1} parent=1 // pred_check_branch
      %66 = sbr.rel (0) target = $region25
    $region24: #{tpu_custom_call.1} parent=1 // pred_region
      %s68 = ssub.s32 16, 16
      %69 = vsyncadd [#allocation10], %s68
      %s71 = sshll.u32 [#allocation9], 4
      %s72 = int_to_ptr.vmem [resolvable:$true] %s71
      %74 = dma.hbm_to_vmem [thread:$0]  %s5, 16, %s72, [#allocation10]
    $region25: #{tpu_custom_call.1} parent=1 // pred_fallthru
      _
    // Predicated region
    $region26: #{tpu_custom_call.1} parent=1 // pred_check
      _
    $region27: #{tpu_custom_call.1} parent=1 // pred_check_branch
      %76 = sbr.rel (0) target = $region29
    $region28: #{tpu_custom_call.1} parent=1 // pred_region
      %s78 = ssub.s32 512, 512
      %79 = vsyncadd [#allocation10], %s78
      %s80 = sshll.u32 [#allocation11], 4
      %s81 = int_to_ptr.vmem [resolvable:$true] %s80
      %86 = dma.hbm_to_vmem [thread:$0]  %s6, 512, %s81, [#allocation10], 128, 128, 8
    $region29: #{tpu_custom_call.1} parent=1 // pred_fallthru
      _
    // Predicated region
    $region30: #{tpu_custom_call.1} parent=1 // pred_check
      _
    $region31: #{tpu_custom_call.1} parent=1 // pred_check_branch
      %88 = sbr.rel (0) target = $region33
    $region32: #{tpu_custom_call.1} parent=1 // pred_region
      %s90 = ssub.s32 16, 16
      %91 = vsyncadd [#allocation13], %s90
      %s93 = sshll.u32 [#allocation12], 4
      %s94 = int_to_ptr.vmem [resolvable:$true] %s93
      %96 = dma.hbm_to_vmem [thread:$0]  %s7, 16, %s94, [#allocation13]
    $region33: #{tpu_custom_call.1} parent=1 // pred_fallthru
      _
    // Predicated region
    $region34: #{tpu_custom_call.1} parent=1 // pred_check
      _
    $region35: #{tpu_custom_call.1} parent=1 // pred_check_branch
      %98 = sbr.rel (0) target = $region37
    $region36: #{tpu_custom_call.1} parent=1 // pred_region
      _
    $region37: #{tpu_custom_call.1} parent=1 // pred_fallthru
      _
    // Predicated region
    $region38: #{tpu_custom_call.1} parent=1 // pred_check
      _
    $region39: #{tpu_custom_call.1} parent=1 // pred_check_branch
      %100 = sbr.rel (0) target = $region41
    $region40: #{tpu_custom_call.1} parent=1 // pred_region
      _
    $region41: #{tpu_custom_call.1} parent=1 // pred_fallthru
      _
    // Predicated region
    $region42: #{tpu_custom_call.1} parent=1 // pred_check
      _
    $region43: #{tpu_custom_call.1} parent=1 // pred_check_branch
      %102 = sbr.rel (0) target = $region45
    $region44: #{tpu_custom_call.1} parent=1 // pred_region
      _
    $region45: #{tpu_custom_call.1} parent=1 // pred_fallthru
      _
    // Predicated region
    $region46: #{tpu_custom_call.1} parent=1 // pred_check
      _
    $region47: #{tpu_custom_call.1} parent=1 // pred_check_branch
      %104 = sbr.rel (0) target = $region49
    $region48: #{tpu_custom_call.1} parent=1 // pred_region
      %s106 = ssub.s32 512, 512
      %107 = vsyncadd [#allocation13], %s106
      %s108 = sshll.u32 [#allocation14], 4
      %s109 = int_to_ptr.vmem [resolvable:$true] %s108
      %114 = dma.hbm_to_vmem [thread:$0]  %s11, 512, %s109, [#allocation13], 128, 128, 8
    $region49: #{tpu_custom_call.1} parent=1 // pred_fallthru
      _
    // Predicated region
    $region50: #{tpu_custom_call.1} parent=1 // pred_check
      _
    $region51: #{tpu_custom_call.1} parent=1 // pred_check_branch
      %116 = sbr.rel (0) target = $region53
    $region52: #{tpu_custom_call.1} parent=1 // pred_region
      _
    $region53: #{tpu_custom_call.1} parent=1 // pred_fallthru
      _
    // Predicated region
    $region54: #{tpu_custom_call.1} parent=1 // pred_check
      _
    $region55: #{tpu_custom_call.1} parent=1 // pred_check_branch
      %118 = sbr.rel (0) target = $region57
    $region56: #{tpu_custom_call.1} parent=1 // pred_region
      _
    $region57: #{tpu_custom_call.1} parent=1 // pred_fallthru
      _
    // Predicated region
    $region58: #{tpu_custom_call.1} parent=1 // pred_check
      _
    $region59: #{tpu_custom_call.1} parent=1 // pred_check_branch
      %120 = sbr.rel (0) target = $region61
    $region60: #{tpu_custom_call.1} parent=1 // pred_region
      _
    $region61: #{tpu_custom_call.1} parent=1 // pred_fallthru
      _
    // Predicated region
    $region62: #{tpu_custom_call.1} parent=1 // pred_check
      _
    $region63: #{tpu_custom_call.1} parent=1 // pred_check_branch
      %122 = sbr.rel (0) target = $region65
    $region64: #{tpu_custom_call.1} parent=1 // pred_region
      _
    $region65: #{tpu_custom_call.1} parent=1 // pred_fallthru
      _
    // Predicated region
    $region66: #{tpu_custom_call.1} parent=1 // pred_check
      _
    $region67: #{tpu_custom_call.1} parent=1 // pred_check_branch
      %124 = sbr.rel (0) target = $region69
    $region68: #{tpu_custom_call.1} parent=1 // pred_region
      _
    $region69: #{tpu_custom_call.1} parent=1 // pred_fallthru
      _
    // Predicated region
    $region70: #{tpu_custom_call.1} parent=1 // pred_check
      _
    $region71: #{tpu_custom_call.1} parent=1 // pred_check_branch
      %126 = sbr.rel (0) target = $region73
    $region72: #{tpu_custom_call.1} parent=1 // pred_region
      %127 = dma.done [#allocation4], 256
    $region73: #{tpu_custom_call.1} parent=1 // pred_fallthru
      _
    // Predicated region
    $region74: #{tpu_custom_call.1} parent=1 // pred_check
      _
    $region75: #{tpu_custom_call.1} parent=1 // pred_check_branch
      %129 = sbr.rel (0) target = $region77
    $region76: #{tpu_custom_call.1} parent=1 // pred_region
      %130 = dma.done [#allocation7], 8192
    $region77: #{tpu_custom_call.1} parent=1 // pred_fallthru
      _
    // Predicated region
    $region78: #{tpu_custom_call.1} parent=1 // pred_check
      _
    $region79: #{tpu_custom_call.1} parent=1 // pred_check_branch
      %132 = sbr.rel (0) target = $region81
    $region80: #{tpu_custom_call.1} parent=1 // pred_region
      %133 = dma.done [#allocation7], 64
    $region81: #{tpu_custom_call.1} parent=1 // pred_fallthru
      _
    // Predicated region
    $region82: #{tpu_custom_call.1} parent=1 // pred_check
      _
    $region83: #{tpu_custom_call.1} parent=1 // pred_check_branch
      %135 = sbr.rel (0) target = $region85
    $region84: #{tpu_custom_call.1} parent=1 // pred_region
      %136 = dma.done [#allocation10], 16
    $region85: #{tpu_custom_call.1} parent=1 // pred_fallthru
      _
    // Predicated region
    $region86: #{tpu_custom_call.1} parent=1 // pred_check
      _
    $region87: #{tpu_custom_call.1} parent=1 // pred_check_branch
      %138 = sbr.rel (0) target = $region89
    $region88: #{tpu_custom_call.1} parent=1 // pred_region
      %139 = dma.done [#allocation10], 512
    $region89: #{tpu_custom_call.1} parent=1 // pred_fallthru
      _
    // Predicated region
    $region90: #{tpu_custom_call.1} parent=1 // pred_check
      _
    $region91: #{tpu_custom_call.1} parent=1 // pred_check_branch
      %141 = sbr.rel (0) target = $region93
    $region92: #{tpu_custom_call.1} parent=1 // pred_region
      %142 = dma.done [#allocation13], 16
    $region93: #{tpu_custom_call.1} parent=1 // pred_fallthru
      _
    // Predicated region
    $region94: #{tpu_custom_call.1} parent=1 // pred_check
      _
    $region95: #{tpu_custom_call.1} parent=1 // pred_check_branch
      %144 = sbr.rel (0) target = $region97
    $region96: #{tpu_custom_call.1} parent=1 // pred_region
      %145 = dma.done [#allocation13], 512
    $region97: #{tpu_custom_call.1} parent=1 // pred_fallthru
      _
    %v146 = vld [vmem:[#allocation3] sm:$0xff]
    %v147 = vld [vmem:[#allocation3 + $0x8] sm:$0xff]
    %v148 = vld [vmem:[%s1] sm:$0xff]
    %v149 = vld [vmem:[%s1 + $0x8] sm:$0xff]
    %v150 = vld [vmem:[%s1 + $0x10] sm:$0xff]
    %v151 = vld [vmem:[%s1 + $0x18] sm:$0xff]
    %v152 = vld [vmem:[%s1 + $0x20] sm:$0xff]
    %v153 = vld [vmem:[%s1 + $0x28] sm:$0xff]
    %v154 = vld [vmem:[%s1 + $0x30] sm:$0xff]
    %v155 = vld [vmem:[%s1 + $0x38] sm:$0xff]
    %vm156 = vcmask 130048
    %v158 = vsel %vm156, %v146, 0
    %v161 = vsel %vm156, %v147, 0
    %163 = vmatprep.subr.mxu0 %v149
    %164 = vmatpush1.msra.mxu0 %v148
    %165 = vmatprep.subr.mxu0 %v153
    %166 = vmatpush1.msra.mxu0 %v152
    %167 = vmatprep.subr.mxu0 0.0
    %168 = vmatpush1.msra.mxu0 0.0
    %169 = vmatprep.subr.mxu0 0.0
    %170 = vmatpush1.msra.mxu0 0.0
    %171 = vmatprep.subr.mxu0 0.0
    %172 = vmatpush1.msra.mxu0 0.0
    %173 = vmatprep.subr.mxu0 0.0
    %174 = vmatpush1.msra.mxu0 0.0
    %175 = vmatprep.subr.mxu0 0.0
    %176 = vmatpush1.msra.mxu0 0.0
    %177 = vmatprep.subr.mxu0 0.0
    %178 = vmatpush1.msra.mxu0 0.0
    %179 = vmatprep.subr.mxu0 0.0
    %180 = vmatpush1.msra.mxu0 0.0
    %181 = vmatprep.subr.mxu0 0.0
    %182 = vmatpush1.msra.mxu0 0.0
    %183 = vmatprep.subr.mxu0 0.0
    %184 = vmatpush1.msra.mxu0 0.0
    %185 = vmatprep.subr.mxu0 0.0
    %186 = vmatpush1.msra.mxu0 0.0
    %187 = vmatprep.subr.mxu0 0.0
    %188 = vmatpush1.msra.mxu0 0.0
    %189 = vmatprep.subr.mxu0 0.0
    %190 = vmatpush1.msra.mxu0 0.0
    %191 = vmatprep.subr.mxu0 0.0
    %192 = vmatpush1.msra.mxu0 0.0
    %193 = vmatprep.subr.mxu0 0.0
    %194 = vmatpush1.msra.mxu0 0.0
    %195 = vmatprep.subr.mxu0 0.0
    %196 = vmatpush1.msra.mxu0 0.0
    %197 = vmatprep.subr.mxu0 0.0
    %198 = vmatpush1.msra.mxu0 0.0
    %199 = vmatprep.subr.mxu0 0.0
    %200 = vmatpush1.msra.mxu0 0.0
    %201 = vmatprep.subr.mxu0 0.0
    %202 = vmatpush1.msra.mxu0 0.0
    %203 = vmatprep.subr.mxu0 0.0
    %204 = vmatpush1.msra.mxu0 0.0
    %205 = vmatprep.subr.mxu0 0.0
    %206 = vmatpush1.msra.mxu0 0.0
    %207 = vmatprep.subr.mxu0 0.0
    %208 = vmatpush1.msra.mxu0 0.0
    %209 = vmatprep.subr.mxu0 0.0
    %210 = vmatpush1.msra.mxu0 0.0
    %211 = vmatprep.subr.mxu0 0.0
    %212 = vmatpush1.msra.mxu0 0.0
    %213 = vmatprep.subr.mxu0 0.0
    %214 = vmatpush1.msra.mxu0 0.0
    %215 = vmatprep.subr.mxu0 0.0
    %216 = vmatpush1.msra.mxu0 0.0
    %217 = vmatprep.subr.mxu0 0.0
    %218 = vmatpush1.msra.mxu0 0.0
    %219 = vmatprep.subr.mxu0 0.0
    %220 = vmatpush1.msra.mxu0 0.0
    %221 = vmatprep.subr.mxu0 0.0
    %222 = vmatpush1.msra.mxu0 0.0
    %223 = vmatprep.subr.mxu0 0.0
    %224 = vmatpush1.msra.mxu0 0.0
    %225 = vmatprep.subr.mxu0 0.0
    %226 = vmatpush1.msra.mxu0 0.0
    %227 = vmatprep.mubr.f32.mxu0 0.0
    %228 = vmatmul.mubr.f32.gmra.mrb[0].mxu0 %v158
    %v229 = vpop.f32.mrb[0].mxu0
    %v230 = vadd.f32 0.0, %v229
    %v231 = vpop.f32.mrb[0].mxu0
    %v232 = vadd.f32 0.0, %v231
    %233 = vmatprep.mubr.f32.mxu0 0.0
    %234 = vmatmul.mubr.f32.gmra.mrb[0].mxu0 %v161
    %v235 = vpop.f32.mrb[0].mxu0
    %v236 = vadd.f32 0.0, %v235
    %v237 = vpop.f32.mrb[0].mxu0
    %v238 = vadd.f32 0.0, %v237
    %239 = vdwg.mxu0
    %240 = vmatprep.subr.mxu0 %v151
    %241 = vmatpush1.msra.mxu0 %v150
    %242 = vmatprep.subr.mxu0 %v155
    %243 = vmatpush1.msra.mxu0 %v154
    %244 = vmatprep.subr.mxu0 0.0
    %245 = vmatpush1.msra.mxu0 0.0
    %246 = vmatprep.subr.mxu0 0.0
    %247 = vmatpush1.msra.mxu0 0.0
    %248 = vmatprep.subr.mxu0 0.0
    %249 = vmatpush1.msra.mxu0 0.0
    %250 = vmatprep.subr.mxu0 0.0
    %251 = vmatpush1.msra.mxu0 0.0
    %252 = vmatprep.subr.mxu0 0.0
    %253 = vmatpush1.msra.mxu0 0.0
    %254 = vmatprep.subr.mxu0 0.0
    %255 = vmatpush1.msra.mxu0 0.0
    %256 = vmatprep.subr.mxu0 0.0
    %257 = vmatpush1.msra.mxu0 0.0
    %258 = vmatprep.subr.mxu0 0.0
    %259 = vmatpush1.msra.mxu0 0.0
    %260 = vmatprep.subr.mxu0 0.0
    %261 = vmatpush1.msra.mxu0 0.0
    %262 = vmatprep.subr.mxu0 0.0
    %263 = vmatpush1.msra.mxu0 0.0
    %264 = vmatprep.subr.mxu0 0.0
    %265 = vmatpush1.msra.mxu0 0.0
    %266 = vmatprep.subr.mxu0 0.0
    %267 = vmatpush1.msra.mxu0 0.0
    %268 = vmatprep.subr.mxu0 0.0
    %269 = vmatpush1.msra.mxu0 0.0
    %270 = vmatprep.subr.mxu0 0.0
    %271 = vmatpush1.msra.mxu0 0.0
    %272 = vmatprep.subr.mxu0 0.0
    %273 = vmatpush1.msra.mxu0 0.0
    %274 = vmatprep.subr.mxu0 0.0
    %275 = vmatpush1.msra.mxu0 0.0
    %276 = vmatprep.subr.mxu0 0.0
    %277 = vmatpush1.msra.mxu0 0.0
    %278 = vmatprep.subr.mxu0 0.0
    %279 = vmatpush1.msra.mxu0 0.0
    %280 = vmatprep.subr.mxu0 0.0
    %281 = vmatpush1.msra.mxu0 0.0
    %282 = vmatprep.subr.mxu0 0.0
    %283 = vmatpush1.msra.mxu0 0.0
    %284 = vmatprep.subr.mxu0 0.0
    %285 = vmatpush1.msra.mxu0 0.0
    %286 = vmatprep.subr.mxu0 0.0
    %287 = vmatpush1.msra.mxu0 0.0
    %288 = vmatprep.subr.mxu0 0.0
    %289 = vmatpush1.msra.mxu0 0.0
    %290 = vmatprep.subr.mxu0 0.0
    %291 = vmatpush1.msra.mxu0 0.0
    %292 = vmatprep.subr.mxu0 0.0
    %293 = vmatpush1.msra.mxu0 0.0
    %294 = vmatprep.subr.mxu0 0.0
    %295 = vmatpush1.msra.mxu0 0.0
    %296 = vmatprep.subr.mxu0 0.0
    %297 = vmatpush1.msra.mxu0 0.0
    %298 = vmatprep.subr.mxu0 0.0
    %299 = vmatpush1.msra.mxu0 0.0
    %300 = vmatprep.subr.mxu0 0.0
    %301 = vmatpush1.msra.mxu0 0.0
    %302 = vmatprep.subr.mxu0 0.0
    %303 = vmatpush1.msra.mxu0 0.0
    %304 = vmatprep.mubr.f32.mxu0 0.0
    %305 = vmatmul.mubr.f32.gmra.mrb[0].mxu0 %v158
    %v306 = vpop.f32.mrb[0].mxu0
    %v307 = vadd.f32 0.0, %v306
    %v308 = vpop.f32.mrb[0].mxu0
    %v309 = vadd.f32 0.0, %v308
    %310 = vmatprep.mubr.f32.mxu0 0.0
    %311 = vmatmul.mubr.f32.gmra.mrb[0].mxu0 %v161
    %v312 = vpop.f32.mrb[0].mxu0
    %v313 = vadd.f32 0.0, %v312
    %v314 = vpop.f32.mrb[0].mxu0
    %v315 = vadd.f32 0.0, %v314
    %316 = vdwg.mxu0
    %v317 = vld [vmem:[#allocation6] sm:$0xff]
    %v318 = vld [vmem:[#allocation6 + $0x8] sm:$0xff]
    %v319 = vld [vmem:[#allocation6 + $0x10] sm:$0xff]
    %v320 = vld [vmem:[#allocation6 + $0x18] sm:$0xff]
    %v321 = vld [vmem:[#allocation6 + $0x20] sm:$0xff]
    %v322 = vld [vmem:[#allocation6 + $0x28] sm:$0xff]
    %v323 = vld [vmem:[#allocation6 + $0x30] sm:$0xff]
    %v324 = vld [vmem:[#allocation6 + $0x38] sm:$0xff]
    %v325 = vld [vmem:[#allocation6 + $0x40] sm:$0xff]
    %v326 = vld [vmem:[#allocation6 + $0x48] sm:$0xff]
    %v327 = vld [vmem:[#allocation6 + $0x50] sm:$0xff]
    %v328 = vld [vmem:[#allocation6 + $0x58] sm:$0xff]
    %v329 = vld [vmem:[#allocation6 + $0x60] sm:$0xff]
    %v330 = vld [vmem:[#allocation6 + $0x68] sm:$0xff]
    %v331 = vld [vmem:[#allocation6 + $0x70] sm:$0xff]
    %v332 = vld [vmem:[#allocation6 + $0x78] sm:$0xff]
    %v333 = vld [vmem:[#allocation6 + $0x80] sm:$0xff]
    %v334 = vld [vmem:[#allocation6 + $0x88] sm:$0xff]
    %v335 = vld [vmem:[#allocation6 + $0x90] sm:$0xff]
    %v336 = vld [vmem:[#allocation6 + $0x98] sm:$0xff]
    %v337 = vld [vmem:[#allocation6 + $0xa0] sm:$0xff]
    %v338 = vld [vmem:[#allocation6 + $0xa8] sm:$0xff]
    %v339 = vld [vmem:[#allocation6 + $0xb0] sm:$0xff]
    %v340 = vld [vmem:[#allocation6 + $0xb8] sm:$0xff]
    %v341 = vld [vmem:[#allocation6 + $0xc0] sm:$0xff]
    %v342 = vld [vmem:[#allocation6 + $0xc8] sm:$0xff]
    %v343 = vld [vmem:[#allocation6 + $0xd0] sm:$0xff]
    %v344 = vld [vmem:[#allocation6 + $0xd8] sm:$0xff]
    %v345 = vld [vmem:[#allocation6 + $0xe0] sm:$0xff]
    %v346 = vld [vmem:[#allocation6 + $0xe8] sm:$0xff]
    %v347 = vld [vmem:[#allocation6 + $0xf0] sm:$0xff]
    %v348 = vld [vmem:[#allocation6 + $0xf8] sm:$0xff]
    %v349 = vld [vmem:[#allocation6 + $0x100] sm:$0xff]
    %v350 = vld [vmem:[#allocation6 + $0x108] sm:$0xff]
    %v351 = vld [vmem:[#allocation6 + $0x110] sm:$0xff]
    %v352 = vld [vmem:[#allocation6 + $0x118] sm:$0xff]
    %v353 = vld [vmem:[#allocation6 + $0x120] sm:$0xff]
    %v354 = vld [vmem:[#allocation6 + $0x128] sm:$0xff]
    %v355 = vld [vmem:[#allocation6 + $0x130] sm:$0xff]
    %v356 = vld [vmem:[#allocation6 + $0x138] sm:$0xff]
    %v357 = vld [vmem:[#allocation6 + $0x140] sm:$0xff]
    %v358 = vld [vmem:[#allocation6 + $0x148] sm:$0xff]
    %v359 = vld [vmem:[#allocation6 + $0x150] sm:$0xff]
    %v360 = vld [vmem:[#allocation6 + $0x158] sm:$0xff]
    %v361 = vld [vmem:[#allocation6 + $0x160] sm:$0xff]
    %v362 = vld [vmem:[#allocation6 + $0x168] sm:$0xff]
    %v363 = vld [vmem:[#allocation6 + $0x170] sm:$0xff]
    %v364 = vld [vmem:[#allocation6 + $0x178] sm:$0xff]
    %v365 = vld [vmem:[#allocation6 + $0x180] sm:$0xff]
    %v366 = vld [vmem:[#allocation6 + $0x188] sm:$0xff]
    %v367 = vld [vmem:[#allocation6 + $0x190] sm:$0xff]
    %v368 = vld [vmem:[#allocation6 + $0x198] sm:$0xff]
    %v369 = vld [vmem:[#allocation6 + $0x1a0] sm:$0xff]
    %v370 = vld [vmem:[#allocation6 + $0x1a8] sm:$0xff]
    %v371 = vld [vmem:[#allocation6 + $0x1b0] sm:$0xff]
    %v372 = vld [vmem:[#allocation6 + $0x1b8] sm:$0xff]
    %v373 = vld [vmem:[#allocation6 + $0x1c0] sm:$0xff]
    %v374 = vld [vmem:[#allocation6 + $0x1c8] sm:$0xff]
    %v375 = vld [vmem:[#allocation6 + $0x1d0] sm:$0xff]
    %v376 = vld [vmem:[#allocation6 + $0x1d8] sm:$0xff]
    %v377 = vld [vmem:[#allocation6 + $0x1e0] sm:$0xff]
    %v378 = vld [vmem:[#allocation6 + $0x1e8] sm:$0xff]
    %v379 = vld [vmem:[#allocation6 + $0x1f0] sm:$0xff]
    %v380 = vld [vmem:[#allocation6 + $0x1f8] sm:$0xff]
    %v381 = vld [vmem:[#allocation8] sm:$0xf]
    %v382 = vlaneseq
    %v383 = vand.u32 %v382, 127
    %v385 = vlaneseq
    %v386 = vshrl.u32 %v385, 7
    %v387 = vsub.s32 0, %v386
    %v388 = vrot.slane %v381, %v387
    %v389 = vlaneseq
    %v390 = vshrl.u32 %v389, 7
    %v391 = vsub.s32 1, %v390
    %v392 = vrot.slane %v381, %v391
    %v393 = vlaneseq
    %v394 = vshrl.u32 %v393, 7
    %v395 = vsub.s32 2, %v394
    %v396 = vrot.slane %v381, %v395
    %v397 = vlaneseq
    %v398 = vshrl.u32 %v397, 7
    %v399 = vsub.s32 3, %v398
    %v400 = vrot.slane %v381, %v399
    %405 = vmatprep.subr.mxu0 %v318
    %406 = vmatpush1.msra.mxu0 %v317
    %407 = vmatprep.subr.mxu0 %v322
    %408 = vmatpush1.msra.mxu0 %v321
    %409 = vmatprep.subr.mxu0 %v326
    %410 = vmatpush1.msra.mxu0 %v325
    %411 = vmatprep.subr.mxu0 %v330
    %412 = vmatpush1.msra.mxu0 %v329
    %413 = vmatprep.subr.mxu0 %v334
    %414 = vmatpush1.msra.mxu0 %v333
    %415 = vmatprep.subr.mxu0 %v338
    %416 = vmatpush1.msra.mxu0 %v337
    %417 = vmatprep.subr.mxu0 %v342
    %418 = vmatpush1.msra.mxu0 %v341
    %419 = vmatprep.subr.mxu0 %v346
    %420 = vmatpush1.msra.mxu0 %v345
    %421 = vmatprep.subr.mxu0 %v350
    %422 = vmatpush1.msra.mxu0 %v349
    %423 = vmatprep.subr.mxu0 %v354
    %424 = vmatpush1.msra.mxu0 %v353
    %425 = vmatprep.subr.mxu0 %v358
    %426 = vmatpush1.msra.mxu0 %v357
    %427 = vmatprep.subr.mxu0 %v362
    %428 = vmatpush1.msra.mxu0 %v361
    %429 = vmatprep.subr.mxu0 %v366
    %430 = vmatpush1.msra.mxu0 %v365
    %431 = vmatprep.subr.mxu0 %v370
    %432 = vmatpush1.msra.mxu0 %v369
    %433 = vmatprep.subr.mxu0 %v374
    %434 = vmatpush1.msra.mxu0 %v373
    %435 = vmatprep.subr.mxu0 %v378
    %436 = vmatpush1.msra.mxu0 %v377
    %437 = vmatprep.subr.mxu0 0.0
    %438 = vmatpush1.msra.mxu0 0.0
    %439 = vmatprep.subr.mxu0 0.0
    %440 = vmatpush1.msra.mxu0 0.0
    %441 = vmatprep.subr.mxu0 0.0
    %442 = vmatpush1.msra.mxu0 0.0
    %443 = vmatprep.subr.mxu0 0.0
    %444 = vmatpush1.msra.mxu0 0.0
    %445 = vmatprep.subr.mxu0 0.0
    %446 = vmatpush1.msra.mxu0 0.0
    %447 = vmatprep.subr.mxu0 0.0
    %448 = vmatpush1.msra.mxu0 0.0
    %449 = vmatprep.subr.mxu0 0.0
    %450 = vmatpush1.msra.mxu0 0.0
    %451 = vmatprep.subr.mxu0 0.0
    %452 = vmatpush1.msra.mxu0 0.0
    %453 = vmatprep.subr.mxu0 0.0
    %454 = vmatpush1.msra.mxu0 0.0
    %455 = vmatprep.subr.mxu0 0.0
    %456 = vmatpush1.msra.mxu0 0.0
    %457 = vmatprep.subr.mxu0 0.0
    %458 = vmatpush1.msra.mxu0 0.0
    %459 = vmatprep.subr.mxu0 0.0
    %460 = vmatpush1.msra.mxu0 0.0
    %461 = vmatprep.subr.mxu0 0.0
    %462 = vmatpush1.msra.mxu0 0.0
    %463 = vmatprep.subr.mxu0 0.0
    %464 = vmatpush1.msra.mxu0 0.0
    %465 = vmatprep.subr.mxu0 0.0
    %466 = vmatpush1.msra.mxu0 0.0
    %467 = vmatprep.subr.mxu0 0.0
    %468 = vmatpush1.msra.mxu0 0.0
    %469 = vmatprep.mubr.f32.mxu0 0.0
    %470 = vmatmul.mubr.f32.gmra.mrb[0].mxu0 0.0
    %v471 = vpop.f32.mrb[0].mxu0
    %v472 = vadd.f32 %v388, %v471
    %v473 = vpop.f32.mrb[0].mxu0
    %v474 = vadd.f32 %v392, %v473
    %475 = vdwg.mxu0
    %476 = vmatprep.subr.mxu0 %v320
    %477 = vmatpush1.msra.mxu0 %v319
    %478 = vmatprep.subr.mxu0 %v324
    %479 = vmatpush1.msra.mxu0 %v323
    %480 = vmatprep.subr.mxu0 %v328
    %481 = vmatpush1.msra.mxu0 %v327
    %482 = vmatprep.subr.mxu0 %v332
    %483 = vmatpush1.msra.mxu0 %v331
    %484 = vmatprep.subr.mxu0 %v336
    %485 = vmatpush1.msra.mxu0 %v335
    %486 = vmatprep.subr.mxu0 %v340
    %487 = vmatpush1.msra.mxu0 %v339
    %488 = vmatprep.subr.mxu0 %v344
    %489 = vmatpush1.msra.mxu0 %v343
    %490 = vmatprep.subr.mxu0 %v348
    %491 = vmatpush1.msra.mxu0 %v347
    %492 = vmatprep.subr.mxu0 %v352
    %493 = vmatpush1.msra.mxu0 %v351
    %494 = vmatprep.subr.mxu0 %v356
    %495 = vmatpush1.msra.mxu0 %v355
    %496 = vmatprep.subr.mxu0 %v360
    %497 = vmatpush1.msra.mxu0 %v359
    %498 = vmatprep.subr.mxu0 %v364
    %499 = vmatpush1.msra.mxu0 %v363
    %500 = vmatprep.subr.mxu0 %v368
    %501 = vmatpush1.msra.mxu0 %v367
    %502 = vmatprep.subr.mxu0 %v372
    %503 = vmatpush1.msra.mxu0 %v371
    %504 = vmatprep.subr.mxu0 %v376
    %505 = vmatpush1.msra.mxu0 %v375
    %506 = vmatprep.subr.mxu0 %v380
    %507 = vmatpush1.msra.mxu0 %v379
    %508 = vmatprep.subr.mxu0 0.0
    %509 = vmatpush1.msra.mxu0 0.0
    %510 = vmatprep.subr.mxu0 0.0
    %511 = vmatpush1.msra.mxu0 0.0
    %512 = vmatprep.subr.mxu0 0.0
    %513 = vmatpush1.msra.mxu0 0.0
    %514 = vmatprep.subr.mxu0 0.0
    %515 = vmatpush1.msra.mxu0 0.0
    %516 = vmatprep.subr.mxu0 0.0
    %517 = vmatpush1.msra.mxu0 0.0
    %518 = vmatprep.subr.mxu0 0.0
    %519 = vmatpush1.msra.mxu0 0.0
    %520 = vmatprep.subr.mxu0 0.0
    %521 = vmatpush1.msra.mxu0 0.0
    %522 = vmatprep.subr.mxu0 0.0
    %523 = vmatpush1.msra.mxu0 0.0
    %524 = vmatprep.subr.mxu0 0.0
    %525 = vmatpush1.msra.mxu0 0.0
    %526 = vmatprep.subr.mxu0 0.0
    %527 = vmatpush1.msra.mxu0 0.0
    %528 = vmatprep.subr.mxu0 0.0
    %529 = vmatpush1.msra.mxu0 0.0
    %530 = vmatprep.subr.mxu0 0.0
    %531 = vmatpush1.msra.mxu0 0.0
    %532 = vmatprep.subr.mxu0 0.0
    %533 = vmatpush1.msra.mxu0 0.0
    %534 = vmatprep.subr.mxu0 0.0
    %535 = vmatpush1.msra.mxu0 0.0
    %536 = vmatprep.subr.mxu0 0.0
    %537 = vmatpush1.msra.mxu0 0.0
    %538 = vmatprep.subr.mxu0 0.0
    %539 = vmatpush1.msra.mxu0 0.0
    %540 = vmatprep.mubr.f32.mxu0 0.0
    %541 = vmatmul.mubr.f32.gmra.mrb[0].mxu0 0.0
    %v542 = vpop.f32.mrb[0].mxu0
    %v543 = vadd.f32 %v396, %v542
    %v544 = vpop.f32.mrb[0].mxu0
    %v545 = vadd.f32 %v400, %v544
    %546 = vdwg.mxu0
    %v555 = vrot.slane %v236, 7
    %vm556 = vcmask 1041409
    %v557 = vsel %vm556, %v555, %v230
    %v558 = vrot.slane %v238, 7
    %v559 = vsel %vm556, %v558, %v232
    %v560 = vrot.slane %v313, 7
    %v561 = vsel %vm556, %v560, %v307
    %v562 = vrot.slane %v315, 7
    %v563 = vsel %vm556, %v562, %v309
    %v568 = vadd.f32 %v472, %v557
    %v569 = vadd.f32 %v474, %v559
    %v570 = vadd.f32 %v543, %v561
    %v571 = vadd.f32 %v545, %v563
    %v572 = vmul.f32 %v568, 0.5
    %v573 = vmul.f32 %v569, 0.5
    %v574 = vtanh.pop %v572
    %v575 = vtanh.pop %v573
    %v576 = vmul.f32 %v574, 0.5
    %v577 = vmul.f32 %v575, 0.5
    %v578 = vadd.f32 %v576, 0.5
    %v579 = vadd.f32 %v577, 0.5
    %v580 = vtanh.pop %v570
    %v581 = vmul.f32 %v571, 0.5
    %v582 = vtanh.pop %v581
    %v583 = vmul.f32 %v582, 0.5
    %v584 = vadd.f32 %v583, 0.5
    %v585 = vmul.f32 %v579, 0.0
    %v586 = vmul.f32 %v578, %v580
    %v587 = vadd.f32 %v585, %v586
    %v588 = vtanh.pop %v587
    %v589 = vmul.f32 %v584, %v588
    %vm590 = vcmp.ge.s32.totalorder %v383, 0
    %vm591 = vcmp.lt.s32.totalorder %v383, 32
    %vm592 = vmand %vm590, %vm591
    %v593 = vsel %vm592, 1, 0
    %vm594 = vcmp.eq.s32.totalorder %v593, 1
    %v595 = vsel %vm594, %v589, 0.0
    %v596 = vsel %vm594, %v587, 0.0
    %597 = vmatprep.subr.mxu0 %v318
    %598 = vmatpush1.msra.mxu0 %v317
    %599 = vmatprep.subr.mxu0 %v322
    %600 = vmatpush1.msra.mxu0 %v321
    %601 = vmatprep.subr.mxu0 %v326
    %602 = vmatpush1.msra.mxu0 %v325
    %603 = vmatprep.subr.mxu0 %v330
    %604 = vmatpush1.msra.mxu0 %v329
    %605 = vmatprep.subr.mxu0 %v334
    %606 = vmatpush1.msra.mxu0 %v333
    %607 = vmatprep.subr.mxu0 %v338
    %608 = vmatpush1.msra.mxu0 %v337
    %609 = vmatprep.subr.mxu0 %v342
    %610 = vmatpush1.msra.mxu0 %v341
    %611 = vmatprep.subr.mxu0 %v346
    %612 = vmatpush1.msra.mxu0 %v345
    %613 = vmatprep.subr.mxu0 %v350
    %614 = vmatpush1.msra.mxu0 %v349
    %615 = vmatprep.subr.mxu0 %v354
    %616 = vmatpush1.msra.mxu0 %v353
    %617 = vmatprep.subr.mxu0 %v358
    %618 = vmatpush1.msra.mxu0 %v357
    %619 = vmatprep.subr.mxu0 %v362
    %620 = vmatpush1.msra.mxu0 %v361
    %621 = vmatprep.subr.mxu0 %v366
    %622 = vmatpush1.msra.mxu0 %v365
    %623 = vmatprep.subr.mxu0 %v370
    %624 = vmatpush1.msra.mxu0 %v369
    %625 = vmatprep.subr.mxu0 %v374
    %626 = vmatpush1.msra.mxu0 %v373
    %627 = vmatprep.subr.mxu0 %v378
    %628 = vmatpush1.msra.mxu0 %v377
    %629 = vmatprep.subr.mxu0 0.0
    %630 = vmatpush1.msra.mxu0 0.0
    %631 = vmatprep.subr.mxu0 0.0
    %632 = vmatpush1.msra.mxu0 0.0
    %633 = vmatprep.subr.mxu0 0.0
    %634 = vmatpush1.msra.mxu0 0.0
    %635 = vmatprep.subr.mxu0 0.0
    %636 = vmatpush1.msra.mxu0 0.0
    %637 = vmatprep.subr.mxu0 0.0
    %638 = vmatpush1.msra.mxu0 0.0
    %639 = vmatprep.subr.mxu0 0.0
    %640 = vmatpush1.msra.mxu0 0.0
    %641 = vmatprep.subr.mxu0 0.0
    %642 = vmatpush1.msra.mxu0 0.0
    %643 = vmatprep.subr.mxu0 0.0
    %644 = vmatpush1.msra.mxu0 0.0
    %645 = vmatprep.subr.mxu0 0.0
    %646 = vmatpush1.msra.mxu0 0.0
    %647 = vmatprep.subr.mxu0 0.0
    %648 = vmatpush1.msra.mxu0 0.0
    %649 = vmatprep.subr.mxu0 0.0
    %650 = vmatpush1.msra.mxu0 0.0
    %651 = vmatprep.subr.mxu0 0.0
    %652 = vmatpush1.msra.mxu0 0.0
    %653 = vmatprep.subr.mxu0 0.0
    %654 = vmatpush1.msra.mxu0 0.0
    %655 = vmatprep.subr.mxu0 0.0
    %656 = vmatpush1.msra.mxu0 0.0
    %657 = vmatprep.subr.mxu0 0.0
    %658 = vmatpush1.msra.mxu0 0.0
    %659 = vmatprep.subr.mxu0 0.0
    %660 = vmatpush1.msra.mxu0 0.0
    %661 = vmatprep.mubr.f32.mxu0 0.0
    %662 = vmatmul.mubr.f32.gmra.mrb[0].mxu0 %v595
    %v663 = vpop.f32.mrb[0].mxu0
    %v664 = vadd.f32 %v388, %v663
    %v665 = vpop.f32.mrb[0].mxu0
    %v666 = vadd.f32 %v392, %v665
    %667 = vdwg.mxu0
    %668 = vmatprep.subr.mxu0 %v320
    %669 = vmatpush1.msra.mxu0 %v319
    %670 = vmatprep.subr.mxu0 %v324
    %671 = vmatpush1.msra.mxu0 %v323
    %672 = vmatprep.subr.mxu0 %v328
    %673 = vmatpush1.msra.mxu0 %v327
    %674 = vmatprep.subr.mxu0 %v332
    %675 = vmatpush1.msra.mxu0 %v331
    %676 = vmatprep.subr.mxu0 %v336
    %677 = vmatpush1.msra.mxu0 %v335
    %678 = vmatprep.subr.mxu0 %v340
    %679 = vmatpush1.msra.mxu0 %v339
    %680 = vmatprep.subr.mxu0 %v344
    %681 = vmatpush1.msra.mxu0 %v343
    %682 = vmatprep.subr.mxu0 %v348
    %683 = vmatpush1.msra.mxu0 %v347
    %684 = vmatprep.subr.mxu0 %v352
    %685 = vmatpush1.msra.mxu0 %v351
    %686 = vmatprep.subr.mxu0 %v356
    %687 = vmatpush1.msra.mxu0 %v355
    %688 = vmatprep.subr.mxu0 %v360
    %689 = vmatpush1.msra.mxu0 %v359
    %690 = vmatprep.subr.mxu0 %v364
    %691 = vmatpush1.msra.mxu0 %v363
    %692 = vmatprep.subr.mxu0 %v368
    %693 = vmatpush1.msra.mxu0 %v367
    %694 = vmatprep.subr.mxu0 %v372
    %695 = vmatpush1.msra.mxu0 %v371
    %696 = vmatprep.subr.mxu0 %v376
    %697 = vmatpush1.msra.mxu0 %v375
    %698 = vmatprep.subr.mxu0 %v380
    %699 = vmatpush1.msra.mxu0 %v379
    %700 = vmatprep.subr.mxu0 0.0
    %701 = vmatpush1.msra.mxu0 0.0
    %702 = vmatprep.subr.mxu0 0.0
    %703 = vmatpush1.msra.mxu0 0.0
    %704 = vmatprep.subr.mxu0 0.0
    %705 = vmatpush1.msra.mxu0 0.0
    %706 = vmatprep.subr.mxu0 0.0
    %707 = vmatpush1.msra.mxu0 0.0
    %708 = vmatprep.subr.mxu0 0.0
    %709 = vmatpush1.msra.mxu0 0.0
    %710 = vmatprep.subr.mxu0 0.0
    %711 = vmatpush1.msra.mxu0 0.0
    %712 = vmatprep.subr.mxu0 0.0
    %713 = vmatpush1.msra.mxu0 0.0
    %714 = vmatprep.subr.mxu0 0.0
    %715 = vmatpush1.msra.mxu0 0.0
    %716 = vmatprep.subr.mxu0 0.0
    %717 = vmatpush1.msra.mxu0 0.0
    %718 = vmatprep.subr.mxu0 0.0
    %719 = vmatpush1.msra.mxu0 0.0
    %720 = vmatprep.subr.mxu0 0.0
    %721 = vmatpush1.msra.mxu0 0.0
    %722 = vmatprep.subr.mxu0 0.0
    %723 = vmatpush1.msra.mxu0 0.0
    %724 = vmatprep.subr.mxu0 0.0
    %725 = vmatpush1.msra.mxu0 0.0
    %726 = vmatprep.subr.mxu0 0.0
    %727 = vmatpush1.msra.mxu0 0.0
    %728 = vmatprep.subr.mxu0 0.0
    %729 = vmatpush1.msra.mxu0 0.0
    %730 = vmatprep.subr.mxu0 0.0
    %731 = vmatpush1.msra.mxu0 0.0
    %732 = vmatprep.mubr.f32.mxu0 0.0
    %733 = vmatmul.mubr.f32.gmra.mrb[0].mxu0 %v595
    %v734 = vpop.f32.mrb[0].mxu0
    %v735 = vadd.f32 %v396, %v734
    %v736 = vpop.f32.mrb[0].mxu0
    %v737 = vadd.f32 %v400, %v736
    %738 = vdwg.mxu0
    %v739 = vrot.slane %v230, 1
    %v740 = vsel %vm556, %v236, %v739
    %v741 = vrot.slane %v232, 1
    %v742 = vsel %vm556, %v238, %v741
    %v743 = vrot.slane %v307, 1
    %v744 = vsel %vm556, %v313, %v743
    %v745 = vrot.slane %v309, 1
    %v746 = vsel %vm556, %v315, %v745
    %v751 = vadd.f32 %v664, %v740
    %v752 = vadd.f32 %v666, %v742
    %v753 = vadd.f32 %v735, %v744
    %v754 = vadd.f32 %v737, %v746
    %v755 = vmul.f32 %v751, 0.5
    %v756 = vmul.f32 %v752, 0.5
    %v757 = vtanh.pop %v755
    %v758 = vtanh.pop %v756
    %v759 = vmul.f32 %v757, 0.5
    %v760 = vmul.f32 %v758, 0.5
    %v761 = vadd.f32 %v759, 0.5
    %v762 = vadd.f32 %v760, 0.5
    %v763 = vtanh.pop %v753
    %v764 = vmul.f32 %v754, 0.5
    %v765 = vtanh.pop %v764
    %v766 = vmul.f32 %v765, 0.5
    %v767 = vadd.f32 %v766, 0.5
    %v768 = vmul.f32 %v762, %v596
    %v769 = vmul.f32 %v761, %v763
    %v770 = vadd.f32 %v768, %v769
    %v771 = vtanh.pop %v770
    %v772 = vmul.f32 %v767, %v771
    %vm773 = vcmp.lt.s32.totalorder %v383, 64
    %vm774 = vmand %vm590, %vm773
    %v775 = vsel %vm774, 1, 0
    %vm776 = vcmp.eq.s32.totalorder %v775, 1
    %v777 = vsel %vm776, %v772, %v595
    %v778 = vsel %vm776, %v770, %v596
    %779 = vmatprep.subr.mxu0 %v318
    %780 = vmatpush1.msra.mxu0 %v317
    %781 = vmatprep.subr.mxu0 %v322
    %782 = vmatpush1.msra.mxu0 %v321
    %783 = vmatprep.subr.mxu0 %v326
    %784 = vmatpush1.msra.mxu0 %v325
    %785 = vmatprep.subr.mxu0 %v330
    %786 = vmatpush1.msra.mxu0 %v329
    %787 = vmatprep.subr.mxu0 %v334
    %788 = vmatpush1.msra.mxu0 %v333
    %789 = vmatprep.subr.mxu0 %v338
    %790 = vmatpush1.msra.mxu0 %v337
    %791 = vmatprep.subr.mxu0 %v342
    %792 = vmatpush1.msra.mxu0 %v341
    %793 = vmatprep.subr.mxu0 %v346
    %794 = vmatpush1.msra.mxu0 %v345
    %795 = vmatprep.subr.mxu0 %v350
    %796 = vmatpush1.msra.mxu0 %v349
    %797 = vmatprep.subr.mxu0 %v354
    %798 = vmatpush1.msra.mxu0 %v353
    %799 = vmatprep.subr.mxu0 %v358
    %800 = vmatpush1.msra.mxu0 %v357
    %801 = vmatprep.subr.mxu0 %v362
    %802 = vmatpush1.msra.mxu0 %v361
    %803 = vmatprep.subr.mxu0 %v366
    %804 = vmatpush1.msra.mxu0 %v365
    %805 = vmatprep.subr.mxu0 %v370
    %806 = vmatpush1.msra.mxu0 %v369
    %807 = vmatprep.subr.mxu0 %v374
    %808 = vmatpush1.msra.mxu0 %v373
    %809 = vmatprep.subr.mxu0 %v378
    %810 = vmatpush1.msra.mxu0 %v377
    %811 = vmatprep.subr.mxu0 0.0
    %812 = vmatpush1.msra.mxu0 0.0
    %813 = vmatprep.subr.mxu0 0.0
    %814 = vmatpush1.msra.mxu0 0.0
    %815 = vmatprep.subr.mxu0 0.0
    %816 = vmatpush1.msra.mxu0 0.0
    %817 = vmatprep.subr.mxu0 0.0
    %818 = vmatpush1.msra.mxu0 0.0
    %819 = vmatprep.subr.mxu0 0.0
    %820 = vmatpush1.msra.mxu0 0.0
    %821 = vmatprep.subr.mxu0 0.0
    %822 = vmatpush1.msra.mxu0 0.0
    %823 = vmatprep.subr.mxu0 0.0
    %824 = vmatpush1.msra.mxu0 0.0
    %825 = vmatprep.subr.mxu0 0.0
    %826 = vmatpush1.msra.mxu0 0.0
    %827 = vmatprep.subr.mxu0 0.0
    %828 = vmatpush1.msra.mxu0 0.0
    %829 = vmatprep.subr.mxu0 0.0
    %830 = vmatpush1.msra.mxu0 0.0
    %831 = vmatprep.subr.mxu0 0.0
    %832 = vmatpush1.msra.mxu0 0.0
    %833 = vmatprep.subr.mxu0 0.0
    %834 = vmatpush1.msra.mxu0 0.0
    %835 = vmatprep.subr.mxu0 0.0
    %836 = vmatpush1.msra.mxu0 0.0
    %837 = vmatprep.subr.mxu0 0.0
    %838 = vmatpush1.msra.mxu0 0.0
    %839 = vmatprep.subr.mxu0 0.0
    %840 = vmatpush1.msra.mxu0 0.0
    %841 = vmatprep.subr.mxu0 0.0
    %842 = vmatpush1.msra.mxu0 0.0
    %843 = vmatprep.mubr.f32.mxu0 0.0
    %844 = vmatmul.mubr.f32.gmra.mrb[0].mxu0 %v777
    %v845 = vpop.f32.mrb[0].mxu0
    %v846 = vadd.f32 %v388, %v845
    %v847 = vpop.f32.mrb[0].mxu0
    %v848 = vadd.f32 %v392, %v847
    %849 = vdwg.mxu0
    %850 = vmatprep.subr.mxu0 %v320
    %851 = vmatpush1.msra.mxu0 %v319
    %852 = vmatprep.subr.mxu0 %v324
    %853 = vmatpush1.msra.mxu0 %v323
    %854 = vmatprep.subr.mxu0 %v328
    %855 = vmatpush1.msra.mxu0 %v327
    %856 = vmatprep.subr.mxu0 %v332
    %857 = vmatpush1.msra.mxu0 %v331
    %858 = vmatprep.subr.mxu0 %v336
    %859 = vmatpush1.msra.mxu0 %v335
    %860 = vmatprep.subr.mxu0 %v340
    %861 = vmatpush1.msra.mxu0 %v339
    %862 = vmatprep.subr.mxu0 %v344
    %863 = vmatpush1.msra.mxu0 %v343
    %864 = vmatprep.subr.mxu0 %v348
    %865 = vmatpush1.msra.mxu0 %v347
    %866 = vmatprep.subr.mxu0 %v352
    %867 = vmatpush1.msra.mxu0 %v351
    %868 = vmatprep.subr.mxu0 %v356
    %869 = vmatpush1.msra.mxu0 %v355
    %870 = vmatprep.subr.mxu0 %v360
    %871 = vmatpush1.msra.mxu0 %v359
    %872 = vmatprep.subr.mxu0 %v364
    %873 = vmatpush1.msra.mxu0 %v363
    %874 = vmatprep.subr.mxu0 %v368
    %875 = vmatpush1.msra.mxu0 %v367
    %876 = vmatprep.subr.mxu0 %v372
    %877 = vmatpush1.msra.mxu0 %v371
    %878 = vmatprep.subr.mxu0 %v376
    %879 = vmatpush1.msra.mxu0 %v375
    %880 = vmatprep.subr.mxu0 %v380
    %881 = vmatpush1.msra.mxu0 %v379
    %882 = vmatprep.subr.mxu0 0.0
    %883 = vmatpush1.msra.mxu0 0.0
    %884 = vmatprep.subr.mxu0 0.0
    %885 = vmatpush1.msra.mxu0 0.0
    %886 = vmatprep.subr.mxu0 0.0
    %887 = vmatpush1.msra.mxu0 0.0
    %888 = vmatprep.subr.mxu0 0.0
    %889 = vmatpush1.msra.mxu0 0.0
    %890 = vmatprep.subr.mxu0 0.0
    %891 = vmatpush1.msra.mxu0 0.0
    %892 = vmatprep.subr.mxu0 0.0
    %893 = vmatpush1.msra.mxu0 0.0
    %894 = vmatprep.subr.mxu0 0.0
    %895 = vmatpush1.msra.mxu0 0.0
    %896 = vmatprep.subr.mxu0 0.0
    %897 = vmatpush1.msra.mxu0 0.0
    %898 = vmatprep.subr.mxu0 0.0
    %899 = vmatpush1.msra.mxu0 0.0
    %900 = vmatprep.subr.mxu0 0.0
    %901 = vmatpush1.msra.mxu0 0.0
    %902 = vmatprep.subr.mxu0 0.0
    %903 = vmatpush1.msra.mxu0 0.0
    %904 = vmatprep.subr.mxu0 0.0
    %905 = vmatpush1.msra.mxu0 0.0
    %906 = vmatprep.subr.mxu0 0.0
    %907 = vmatpush1.msra.mxu0 0.0
    %908 = vmatprep.subr.mxu0 0.0
    %909 = vmatpush1.msra.mxu0 0.0
    %910 = vmatprep.subr.mxu0 0.0
    %911 = vmatpush1.msra.mxu0 0.0
    %912 = vmatprep.subr.mxu0 0.0
    %913 = vmatpush1.msra.mxu0 0.0
    %914 = vmatprep.mubr.f32.mxu0 0.0
    %915 = vmatmul.mubr.f32.gmra.mrb[0].mxu0 %v777
    %v916 = vpop.f32.mrb[0].mxu0
    %v917 = vadd.f32 %v396, %v916
    %v918 = vpop.f32.mrb[0].mxu0
    %v919 = vadd.f32 %v400, %v918
    %920 = vdwg.mxu0
    %v921 = vrot.slane %v230, 2
    %v922 = vrot.slane %v236, 1
    %v923 = vsel %vm556, %v922, %v921
    %v924 = vrot.slane %v232, 2
    %v925 = vrot.slane %v238, 1
    %v926 = vsel %vm556, %v925, %v924
    %v927 = vrot.slane %v307, 2
    %v928 = vrot.slane %v313, 1
    %v929 = vsel %vm556, %v928, %v927
    %v930 = vrot.slane %v309, 2
    %v931 = vrot.slane %v315, 1
    %v932 = vsel %vm556, %v931, %v930
    %v937 = vadd.f32 %v846, %v923
    %v938 = vadd.f32 %v848, %v926
    %v939 = vadd.f32 %v917, %v929
    %v940 = vadd.f32 %v919, %v932
    %v941 = vmul.f32 %v937, 0.5
    %v942 = vmul.f32 %v938, 0.5
    %v943 = vtanh.pop %v941
    %v944 = vtanh.pop %v942
    %v945 = vmul.f32 %v943, 0.5
    %v946 = vmul.f32 %v944, 0.5
    %v947 = vadd.f32 %v945, 0.5
    %v948 = vadd.f32 %v946, 0.5
    %v949 = vtanh.pop %v939
    %v950 = vmul.f32 %v940, 0.5
    %v951 = vtanh.pop %v950
    %v952 = vmul.f32 %v951, 0.5
    %v953 = vadd.f32 %v952, 0.5
    %v954 = vmul.f32 %v948, %v778
    %v955 = vmul.f32 %v947, %v949
    %v956 = vadd.f32 %v954, %v955
    %v957 = vtanh.pop %v956
    %v958 = vmul.f32 %v953, %v957
    %vm959 = vcmp.lt.s32.totalorder %v383, 96
    %vm960 = vmand %vm590, %vm959
    %v961 = vsel %vm960, 1, 0
    %vm962 = vcmp.eq.s32.totalorder %v961, 1
    %v963 = vsel %vm962, %v958, %v777
    %v964 = vsel %vm962, %v956, %v778
    %965 = vmatprep.subr.mxu0 %v318
    %966 = vmatpush1.msra.mxu0 %v317
    %967 = vmatprep.subr.mxu0 %v322
    %968 = vmatpush1.msra.mxu0 %v321
    %969 = vmatprep.subr.mxu0 %v326
    %970 = vmatpush1.msra.mxu0 %v325
    %971 = vmatprep.subr.mxu0 %v330
    %972 = vmatpush1.msra.mxu0 %v329
    %973 = vmatprep.subr.mxu0 %v334
    %974 = vmatpush1.msra.mxu0 %v333
    %975 = vmatprep.subr.mxu0 %v338
    %976 = vmatpush1.msra.mxu0 %v337
    %977 = vmatprep.subr.mxu0 %v342
    %978 = vmatpush1.msra.mxu0 %v341
    %979 = vmatprep.subr.mxu0 %v346
    %980 = vmatpush1.msra.mxu0 %v345
    %981 = vmatprep.subr.mxu0 %v350
    %982 = vmatpush1.msra.mxu0 %v349
    %983 = vmatprep.subr.mxu0 %v354
    %984 = vmatpush1.msra.mxu0 %v353
    %985 = vmatprep.subr.mxu0 %v358
    %986 = vmatpush1.msra.mxu0 %v357
    %987 = vmatprep.subr.mxu0 %v362
    %988 = vmatpush1.msra.mxu0 %v361
    %989 = vmatprep.subr.mxu0 %v366
    %990 = vmatpush1.msra.mxu0 %v365
    %991 = vmatprep.subr.mxu0 %v370
    %992 = vmatpush1.msra.mxu0 %v369
    %993 = vmatprep.subr.mxu0 %v374
    %994 = vmatpush1.msra.mxu0 %v373
    %995 = vmatprep.subr.mxu0 %v378
    %996 = vmatpush1.msra.mxu0 %v377
    %997 = vmatprep.subr.mxu0 0.0
    %998 = vmatpush1.msra.mxu0 0.0
    %999 = vmatprep.subr.mxu0 0.0
    %1000 = vmatpush1.msra.mxu0 0.0
    %1001 = vmatprep.subr.mxu0 0.0
    %1002 = vmatpush1.msra.mxu0 0.0
    %1003 = vmatprep.subr.mxu0 0.0
    %1004 = vmatpush1.msra.mxu0 0.0
    %1005 = vmatprep.subr.mxu0 0.0
    %1006 = vmatpush1.msra.mxu0 0.0
    %1007 = vmatprep.subr.mxu0 0.0
    %1008 = vmatpush1.msra.mxu0 0.0
    %1009 = vmatprep.subr.mxu0 0.0
    %1010 = vmatpush1.msra.mxu0 0.0
    %1011 = vmatprep.subr.mxu0 0.0
    %1012 = vmatpush1.msra.mxu0 0.0
    %1013 = vmatprep.subr.mxu0 0.0
    %1014 = vmatpush1.msra.mxu0 0.0
    %1015 = vmatprep.subr.mxu0 0.0
    %1016 = vmatpush1.msra.mxu0 0.0
    %1017 = vmatprep.subr.mxu0 0.0
    %1018 = vmatpush1.msra.mxu0 0.0
    %1019 = vmatprep.subr.mxu0 0.0
    %1020 = vmatpush1.msra.mxu0 0.0
    %1021 = vmatprep.subr.mxu0 0.0
    %1022 = vmatpush1.msra.mxu0 0.0
    %1023 = vmatprep.subr.mxu0 0.0
    %1024 = vmatpush1.msra.mxu0 0.0
    %1025 = vmatprep.subr.mxu0 0.0
    %1026 = vmatpush1.msra.mxu0 0.0
    %1027 = vmatprep.subr.mxu0 0.0
    %1028 = vmatpush1.msra.mxu0 0.0
    %1029 = vmatprep.mubr.f32.mxu0 0.0
    %1030 = vmatmul.mubr.f32.gmra.mrb[0].mxu0 %v963
    %v1031 = vpop.f32.mrb[0].mxu0
    %v1032 = vadd.f32 %v388, %v1031
    %v1033 = vpop.f32.mrb[0].mxu0
    %v1034 = vadd.f32 %v392, %v1033
    %1035 = vdwg.mxu0
    %1036 = vmatprep.subr.mxu0 %v320
    %1037 = vmatpush1.msra.mxu0 %v319
    %1038 = vmatprep.subr.mxu0 %v324
    %1039 = vmatpush1.msra.mxu0 %v323
    %1040 = vmatprep.subr.mxu0 %v328
    %1041 = vmatpush1.msra.mxu0 %v327
    %1042 = vmatprep.subr.mxu0 %v332
    %1043 = vmatpush1.msra.mxu0 %v331
    %1044 = vmatprep.subr.mxu0 %v336
    %1045 = vmatpush1.msra.mxu0 %v335
    %1046 = vmatprep.subr.mxu0 %v340
    %1047 = vmatpush1.msra.mxu0 %v339
    %1048 = vmatprep.subr.mxu0 %v344
    %1049 = vmatpush1.msra.mxu0 %v343
    %1050 = vmatprep.subr.mxu0 %v348
    %1051 = vmatpush1.msra.mxu0 %v347
    %1052 = vmatprep.subr.mxu0 %v352
    %1053 = vmatpush1.msra.mxu0 %v351
    %1054 = vmatprep.subr.mxu0 %v356
    %1055 = vmatpush1.msra.mxu0 %v355
    %1056 = vmatprep.subr.mxu0 %v360
    %1057 = vmatpush1.msra.mxu0 %v359
    %1058 = vmatprep.subr.mxu0 %v364
    %1059 = vmatpush1.msra.mxu0 %v363
    %1060 = vmatprep.subr.mxu0 %v368
    %1061 = vmatpush1.msra.mxu0 %v367
    %1062 = vmatprep.subr.mxu0 %v372
    %1063 = vmatpush1.msra.mxu0 %v371
    %1064 = vmatprep.subr.mxu0 %v376
    %1065 = vmatpush1.msra.mxu0 %v375
    %1066 = vmatprep.subr.mxu0 %v380
    %1067 = vmatpush1.msra.mxu0 %v379
    %1068 = vmatprep.subr.mxu0 0.0
    %1069 = vmatpush1.msra.mxu0 0.0
    %1070 = vmatprep.subr.mxu0 0.0
    %1071 = vmatpush1.msra.mxu0 0.0
    %1072 = vmatprep.subr.mxu0 0.0
    %1073 = vmatpush1.msra.mxu0 0.0
    %1074 = vmatprep.subr.mxu0 0.0
    %1075 = vmatpush1.msra.mxu0 0.0
    %1076 = vmatprep.subr.mxu0 0.0
    %1077 = vmatpush1.msra.mxu0 0.0
    %1078 = vmatprep.subr.mxu0 0.0
    %1079 = vmatpush1.msra.mxu0 0.0
    %1080 = vmatprep.subr.mxu0 0.0
    %1081 = vmatpush1.msra.mxu0 0.0
    %1082 = vmatprep.subr.mxu0 0.0
    %1083 = vmatpush1.msra.mxu0 0.0
    %1084 = vmatprep.subr.mxu0 0.0
    %1085 = vmatpush1.msra.mxu0 0.0
    %1086 = vmatprep.subr.mxu0 0.0
    %1087 = vmatpush1.msra.mxu0 0.0
    %1088 = vmatprep.subr.mxu0 0.0
    %1089 = vmatpush1.msra.mxu0 0.0
    %1090 = vmatprep.subr.mxu0 0.0
    %1091 = vmatpush1.msra.mxu0 0.0
    %1092 = vmatprep.subr.mxu0 0.0
    %1093 = vmatpush1.msra.mxu0 0.0
    %1094 = vmatprep.subr.mxu0 0.0
    %1095 = vmatpush1.msra.mxu0 0.0
    %1096 = vmatprep.subr.mxu0 0.0
    %1097 = vmatpush1.msra.mxu0 0.0
    %1098 = vmatprep.subr.mxu0 0.0
    %1099 = vmatpush1.msra.mxu0 0.0
    %1100 = vmatprep.mubr.f32.mxu0 0.0
    %1101 = vmatmul.mubr.f32.gmra.mrb[0].mxu0 %v963
    %v1102 = vpop.f32.mrb[0].mxu0
    %v1103 = vadd.f32 %v396, %v1102
    %v1104 = vpop.f32.mrb[0].mxu0
    %v1105 = vadd.f32 %v400, %v1104
    %1106 = vdwg.mxu0
    %v1107 = vrot.slane %v230, 3
    %v1108 = vrot.slane %v236, 2
    %v1109 = vsel %vm556, %v1108, %v1107
    %v1110 = vrot.slane %v232, 3
    %v1111 = vrot.slane %v238, 2
    %v1112 = vsel %vm556, %v1111, %v1110
    %v1113 = vrot.slane %v307, 3
    %v1114 = vrot.slane %v313, 2
    %v1115 = vsel %vm556, %v1114, %v1113
    %v1116 = vrot.slane %v309, 3
    %v1117 = vrot.slane %v315, 2
    %v1118 = vsel %vm556, %v1117, %v1116
    %v1123 = vadd.f32 %v1032, %v1109
    %v1124 = vadd.f32 %v1034, %v1112
    %v1125 = vadd.f32 %v1103, %v1115
    %v1126 = vadd.f32 %v1105, %v1118
    %v1127 = vmul.f32 %v1123, 0.5
    %v1128 = vmul.f32 %v1124, 0.5
    %v1129 = vtanh.pop %v1127
    %v1130 = vtanh.pop %v1128
    %v1131 = vmul.f32 %v1129, 0.5
    %v1132 = vmul.f32 %v1130, 0.5
    %v1133 = vadd.f32 %v1131, 0.5
    %v1134 = vadd.f32 %v1132, 0.5
    %v1135 = vtanh.pop %v1125
    %v1136 = vmul.f32 %v1126, 0.5
    %v1137 = vtanh.pop %v1136
    %v1138 = vmul.f32 %v1137, 0.5
    %v1139 = vadd.f32 %v1138, 0.5
    %v1140 = vmul.f32 %v1134, %v964
    %v1141 = vmul.f32 %v1133, %v1135
    %v1142 = vadd.f32 %v1140, %v1141
    %v1143 = vtanh.pop %v1142
    %v1144 = vmul.f32 %v1139, %v1143
    %v1147 = vunpack.c.l.s4 1966171168
    %v1148 = vunpack.c.0.s8 %v1147
    %v1149 = vlaneseq
    %v1150 = vshrl.u32 %v1149, 7
    %v1151 = vsub.s32 %v1148, %v1150
    %v1152 = vrot.slane %v1144, %v1151
    %v1153 = vcombine.high %v1152, %v1152
    %v1155 = vunpack.c.l.s4 1966171168
    %v1156 = vunpack.c.0.s8 %v1155
    %v1157 = vlaneseq
    %v1158 = vshrl.u32 %v1157, 7
    %v1159 = vsub.s32 %v1156, %v1158
    %v1160 = vrot.slane %v1152, %v1159
    %v1162 = vunpack.c.l.s4 1966171168
    %v1163 = vunpack.c.0.s8 %v1162
    %v1164 = vlaneseq
    %v1165 = vshrl.u32 %v1164, 7
    %v1166 = vsub.s32 %v1163, %v1165
    %v1167 = vrot.slane %v1153, %v1166
    %v1168 = vlaneseq
    %v1169 = vshrl.u32 %v1168, 7
    %v1170 = vsub.s32 0, %v1169
    %v1171 = vrot.slane %v1160, %v1170
    %v1172 = vlaneseq
    %v1173 = vshrl.u32 %v1172, 7
    %v1174 = vsub.s32 0, %v1173
    %v1175 = vrot.slane %v1167, %v1174
    %1176 = vrot.lane.b32.xlu0 %v1171, 32
    %v1177 = vpop.permute.xlu0 %1176
    %1178 = vrot.lane.b32.xlu0 %v1175, 32
    %v1179 = vpop.permute.xlu0 %1178
    %vm1182 = vcmask 253952
    %1183 = vst.msk [vmem:[#allocation2] sm:$0x1] %vm1182, %v1177
    %1184 = vst.msk [vmem:[#allocation2 + $0x8] sm:$0x1] %vm1182, %v1179
    %1185 = vmatprep.subr.mxu0 %v318
    %1186 = vmatpush1.msra.mxu0 %v317
    %1187 = vmatprep.subr.mxu0 %v322
    %1188 = vmatpush1.msra.mxu0 %v321
    %1189 = vmatprep.subr.mxu0 %v326
    %1190 = vmatpush1.msra.mxu0 %v325
    %1191 = vmatprep.subr.mxu0 %v330
    %1192 = vmatpush1.msra.mxu0 %v329
    %1193 = vmatprep.subr.mxu0 %v334
    %1194 = vmatpush1.msra.mxu0 %v333
    %1195 = vmatprep.subr.mxu0 %v338
    %1196 = vmatpush1.msra.mxu0 %v337
    %1197 = vmatprep.subr.mxu0 %v342
    %1198 = vmatpush1.msra.mxu0 %v341
    %1199 = vmatprep.subr.mxu0 %v346
    %1200 = vmatpush1.msra.mxu0 %v345
    %1201 = vmatprep.subr.mxu0 %v350
    %1202 = vmatpush1.msra.mxu0 %v349
    %1203 = vmatprep.subr.mxu0 %v354
    %1204 = vmatpush1.msra.mxu0 %v353
    %1205 = vmatprep.subr.mxu0 %v358
    %1206 = vmatpush1.msra.mxu0 %v357
    %1207 = vmatprep.subr.mxu0 %v362
    %1208 = vmatpush1.msra.mxu0 %v361
    %1209 = vmatprep.subr.mxu0 %v366
    %1210 = vmatpush1.msra.mxu0 %v365
    %1211 = vmatprep.subr.mxu0 %v370
    %1212 = vmatpush1.msra.mxu0 %v369
    %1213 = vmatprep.subr.mxu0 %v374
    %1214 = vmatpush1.msra.mxu0 %v373
    %1215 = vmatprep.subr.mxu0 %v378
    %1216 = vmatpush1.msra.mxu0 %v377
    %1217 = vmatprep.subr.mxu0 0.0
    %1218 = vmatpush1.msra.mxu0 0.0
    %1219 = vmatprep.subr.mxu0 0.0
    %1220 = vmatpush1.msra.mxu0 0.0
    %1221 = vmatprep.subr.mxu0 0.0
    %1222 = vmatpush1.msra.mxu0 0.0
    %1223 = vmatprep.subr.mxu0 0.0
    %1224 = vmatpush1.msra.mxu0 0.0
    %1225 = vmatprep.subr.mxu0 0.0
    %1226 = vmatpush1.msra.mxu0 0.0
    %1227 = vmatprep.subr.mxu0 0.0
    %1228 = vmatpush1.msra.mxu0 0.0
    %1229 = vmatprep.subr.mxu0 0.0
    %1230 = vmatpush1.msra.mxu0 0.0
    %1231 = vmatprep.subr.mxu0 0.0
    %1232 = vmatpush1.msra.mxu0 0.0
    %1233 = vmatprep.subr.mxu0 0.0
    %1234 = vmatpush1.msra.mxu0 0.0
    %1235 = vmatprep.subr.mxu0 0.0
    %1236 = vmatpush1.msra.mxu0 0.0
    %1237 = vmatprep.subr.mxu0 0.0
    %1238 = vmatpush1.msra.mxu0 0.0
    %1239 = vmatprep.subr.mxu0 0.0
    %1240 = vmatpush1.msra.mxu0 0.0
    %1241 = vmatprep.subr.mxu0 0.0
    %1242 = vmatpush1.msra.mxu0 0.0
    %1243 = vmatprep.subr.mxu0 0.0
    %1244 = vmatpush1.msra.mxu0 0.0
    %1245 = vmatprep.subr.mxu0 0.0
    %1246 = vmatpush1.msra.mxu0 0.0
    %1247 = vmatprep.subr.mxu0 0.0
    %1248 = vmatpush1.msra.mxu0 0.0
    %1249 = vmatprep.mubr.f32.mxu0 0.0
    %1250 = vmatmul.mubr.f32.gmra.mrb[0].mxu0 %v1144
    %v1251 = vpop.f32.mrb[0].mxu0
    %v1252 = vadd.f32 %v388, %v1251
    %v1253 = vpop.f32.mrb[0].mxu0
    %v1254 = vadd.f32 %v392, %v1253
    %1255 = vdwg.mxu0
    %1256 = vmatprep.subr.mxu0 %v320
    %1257 = vmatpush1.msra.mxu0 %v319
    %1258 = vmatprep.subr.mxu0 %v324
    %1259 = vmatpush1.msra.mxu0 %v323
    %1260 = vmatprep.subr.mxu0 %v328
    %1261 = vmatpush1.msra.mxu0 %v327
    %1262 = vmatprep.subr.mxu0 %v332
    %1263 = vmatpush1.msra.mxu0 %v331
    %1264 = vmatprep.subr.mxu0 %v336
    %1265 = vmatpush1.msra.mxu0 %v335
    %1266 = vmatprep.subr.mxu0 %v340
    %1267 = vmatpush1.msra.mxu0 %v339
    %1268 = vmatprep.subr.mxu0 %v344
    %1269 = vmatpush1.msra.mxu0 %v343
    %1270 = vmatprep.subr.mxu0 %v348
    %1271 = vmatpush1.msra.mxu0 %v347
    %1272 = vmatprep.subr.mxu0 %v352
    %1273 = vmatpush1.msra.mxu0 %v351
    %1274 = vmatprep.subr.mxu0 %v356
    %1275 = vmatpush1.msra.mxu0 %v355
    %1276 = vmatprep.subr.mxu0 %v360
    %1277 = vmatpush1.msra.mxu0 %v359
    %1278 = vmatprep.subr.mxu0 %v364
    %1279 = vmatpush1.msra.mxu0 %v363
    %1280 = vmatprep.subr.mxu0 %v368
    %1281 = vmatpush1.msra.mxu0 %v367
    %1282 = vmatprep.subr.mxu0 %v372
    %1283 = vmatpush1.msra.mxu0 %v371
    %1284 = vmatprep.subr.mxu0 %v376
    %1285 = vmatpush1.msra.mxu0 %v375
    %1286 = vmatprep.subr.mxu0 %v380
    %1287 = vmatpush1.msra.mxu0 %v379
    %1288 = vmatprep.subr.mxu0 0.0
    %1289 = vmatpush1.msra.mxu0 0.0
    %1290 = vmatprep.subr.mxu0 0.0
    %1291 = vmatpush1.msra.mxu0 0.0
    %1292 = vmatprep.subr.mxu0 0.0
    %1293 = vmatpush1.msra.mxu0 0.0
    %1294 = vmatprep.subr.mxu0 0.0
    %1295 = vmatpush1.msra.mxu0 0.0
    %1296 = vmatprep.subr.mxu0 0.0
    %1297 = vmatpush1.msra.mxu0 0.0
    %1298 = vmatprep.subr.mxu0 0.0
    %1299 = vmatpush1.msra.mxu0 0.0
    %1300 = vmatprep.subr.mxu0 0.0
    %1301 = vmatpush1.msra.mxu0 0.0
    %1302 = vmatprep.subr.mxu0 0.0
    %1303 = vmatpush1.msra.mxu0 0.0
    %1304 = vmatprep.subr.mxu0 0.0
    %1305 = vmatpush1.msra.mxu0 0.0
    %1306 = vmatprep.subr.mxu0 0.0
    %1307 = vmatpush1.msra.mxu0 0.0
    %1308 = vmatprep.subr.mxu0 0.0
    %1309 = vmatpush1.msra.mxu0 0.0
    %1310 = vmatprep.subr.mxu0 0.0
    %1311 = vmatpush1.msra.mxu0 0.0
    %1312 = vmatprep.subr.mxu0 0.0
    %1313 = vmatpush1.msra.mxu0 0.0
    %1314 = vmatprep.subr.mxu0 0.0
    %1315 = vmatpush1.msra.mxu0 0.0
    %1316 = vmatprep.subr.mxu0 0.0
    %1317 = vmatpush1.msra.mxu0 0.0
    %1318 = vmatprep.subr.mxu0 0.0
    %1319 = vmatpush1.msra.mxu0 0.0
    %1320 = vmatprep.mubr.f32.mxu0 0.0
    %1321 = vmatmul.mubr.f32.gmra.mrb[0].mxu0 %v1144
    %v1322 = vpop.f32.mrb[0].mxu0
    %v1323 = vadd.f32 %v396, %v1322
    %v1324 = vpop.f32.mrb[0].mxu0
    %v1325 = vadd.f32 %v400, %v1324
    %1326 = vdwg.mxu0
    %v1327 = vrot.slane %v230, 4
    %v1328 = vrot.slane %v236, 3
    %v1329 = vsel %vm556, %v1328, %v1327
    %v1330 = vrot.slane %v232, 4
    %v1331 = vrot.slane %v238, 3
    %v1332 = vsel %vm556, %v1331, %v1330
    %v1333 = vrot.slane %v307, 4
    %v1334 = vrot.slane %v313, 3
    %v1335 = vsel %vm556, %v1334, %v1333
    %v1336 = vrot.slane %v309, 4
    %v1337 = vrot.slane %v315, 3
    %v1338 = vsel %vm556, %v1337, %v1336
    %v1343 = vadd.f32 %v1252, %v1329
    %v1344 = vadd.f32 %v1254, %v1332
    %v1345 = vadd.f32 %v1323, %v1335
    %v1346 = vadd.f32 %v1325, %v1338
    %v1347 = vmul.f32 %v1343, 0.5
    %v1348 = vmul.f32 %v1344, 0.5
    %v1349 = vtanh.pop %v1347
    %v1350 = vtanh.pop %v1348
    %v1351 = vmul.f32 %v1349, 0.5
    %v1352 = vmul.f32 %v1350, 0.5
    %v1353 = vadd.f32 %v1351, 0.5
    %v1354 = vadd.f32 %v1352, 0.5
    %v1355 = vtanh.pop %v1345
    %v1356 = vmul.f32 %v1346, 0.5
    %v1357 = vtanh.pop %v1356
    %v1358 = vmul.f32 %v1357, 0.5
    %v1359 = vadd.f32 %v1358, 0.5
    %v1360 = vmul.f32 %v1354, %v1142
    %v1361 = vmul.f32 %v1353, %v1355
    %v1362 = vadd.f32 %v1360, %v1361
    %v1363 = vtanh.pop %v1362
    %v1364 = vmul.f32 %v1359, %v1363
    %v1367 = vunpack.c.l.s4 1966171168
    %v1368 = vunpack.c.0.s8 %v1367
    %v1369 = vlaneseq
    %v1370 = vshrl.u32 %v1369, 7
    %v1371 = vsub.s32 %v1368, %v1370
    %v1372 = vrot.slane %v1364, %v1371
    %v1373 = vcombine.high %v1372, %v1372
    %v1375 = vunpack.c.l.s4 1966171168
    %v1376 = vunpack.c.0.s8 %v1375
    %v1377 = vlaneseq
    %v1378 = vshrl.u32 %v1377, 7
    %v1379 = vsub.s32 %v1376, %v1378
    %v1380 = vrot.slane %v1372, %v1379
    %v1382 = vunpack.c.l.s4 1966171168
    %v1383 = vunpack.c.0.s8 %v1382
    %v1384 = vlaneseq
    %v1385 = vshrl.u32 %v1384, 7
    %v1386 = vsub.s32 %v1383, %v1385
    %v1387 = vrot.slane %v1373, %v1386
    %v1388 = vlaneseq
    %v1389 = vshrl.u32 %v1388, 7
    %v1390 = vsub.s32 0, %v1389
    %v1391 = vrot.slane %v1380, %v1390
    %v1392 = vlaneseq
    %v1393 = vshrl.u32 %v1392, 7
    %v1394 = vsub.s32 0, %v1393
    %v1395 = vrot.slane %v1387, %v1394
    %1396 = vrot.lane.b32.xlu0 %v1391, 32
    %v1397 = vpop.permute.xlu0 %1396
    %1398 = vrot.lane.b32.xlu0 %v1395, 32
    %v1399 = vpop.permute.xlu0 %1398
    %1402 = vst.msk [vmem:[#allocation2 + $0x1] sm:$0x1] %vm1182, %v1397
    %1403 = vst.msk [vmem:[#allocation2 + $0x9] sm:$0x1] %vm1182, %v1399
    %1404 = vmatprep.subr.mxu0 %v318
    %1405 = vmatpush1.msra.mxu0 %v317
    %1406 = vmatprep.subr.mxu0 %v322
    %1407 = vmatpush1.msra.mxu0 %v321
    %1408 = vmatprep.subr.mxu0 %v326
    %1409 = vmatpush1.msra.mxu0 %v325
    %1410 = vmatprep.subr.mxu0 %v330
    %1411 = vmatpush1.msra.mxu0 %v329
    %1412 = vmatprep.subr.mxu0 %v334
    %1413 = vmatpush1.msra.mxu0 %v333
    %1414 = vmatprep.subr.mxu0 %v338
    %1415 = vmatpush1.msra.mxu0 %v337
    %1416 = vmatprep.subr.mxu0 %v342
    %1417 = vmatpush1.msra.mxu0 %v341
    %1418 = vmatprep.subr.mxu0 %v346
    %1419 = vmatpush1.msra.mxu0 %v345
    %1420 = vmatprep.subr.mxu0 %v350
    %1421 = vmatpush1.msra.mxu0 %v349
    %1422 = vmatprep.subr.mxu0 %v354
    %1423 = vmatpush1.msra.mxu0 %v353
    %1424 = vmatprep.subr.mxu0 %v358
    %1425 = vmatpush1.msra.mxu0 %v357
    %1426 = vmatprep.subr.mxu0 %v362
    %1427 = vmatpush1.msra.mxu0 %v361
    %1428 = vmatprep.subr.mxu0 %v366
    %1429 = vmatpush1.msra.mxu0 %v365
    %1430 = vmatprep.subr.mxu0 %v370
    %1431 = vmatpush1.msra.mxu0 %v369
    %1432 = vmatprep.subr.mxu0 %v374
    %1433 = vmatpush1.msra.mxu0 %v373
    %1434 = vmatprep.subr.mxu0 %v378
    %1435 = vmatpush1.msra.mxu0 %v377
    %1436 = vmatprep.subr.mxu0 0.0
    %1437 = vmatpush1.msra.mxu0 0.0
    %1438 = vmatprep.subr.mxu0 0.0
    %1439 = vmatpush1.msra.mxu0 0.0
    %1440 = vmatprep.subr.mxu0 0.0
    %1441 = vmatpush1.msra.mxu0 0.0
    %1442 = vmatprep.subr.mxu0 0.0
    %1443 = vmatpush1.msra.mxu0 0.0
    %1444 = vmatprep.subr.mxu0 0.0
    %1445 = vmatpush1.msra.mxu0 0.0
    %1446 = vmatprep.subr.mxu0 0.0
    %1447 = vmatpush1.msra.mxu0 0.0
    %1448 = vmatprep.subr.mxu0 0.0
    %1449 = vmatpush1.msra.mxu0 0.0
    %1450 = vmatprep.subr.mxu0 0.0
    %1451 = vmatpush1.msra.mxu0 0.0
    %1452 = vmatprep.subr.mxu0 0.0
    %1453 = vmatpush1.msra.mxu0 0.0
    %1454 = vmatprep.subr.mxu0 0.0
    %1455 = vmatpush1.msra.mxu0 0.0
    %1456 = vmatprep.subr.mxu0 0.0
    %1457 = vmatpush1.msra.mxu0 0.0
    %1458 = vmatprep.subr.mxu0 0.0
    %1459 = vmatpush1.msra.mxu0 0.0
    %1460 = vmatprep.subr.mxu0 0.0
    %1461 = vmatpush1.msra.mxu0 0.0
    %1462 = vmatprep.subr.mxu0 0.0
    %1463 = vmatpush1.msra.mxu0 0.0
    %1464 = vmatprep.subr.mxu0 0.0
    %1465 = vmatpush1.msra.mxu0 0.0
    %1466 = vmatprep.subr.mxu0 0.0
    %1467 = vmatpush1.msra.mxu0 0.0
    %1468 = vmatprep.mubr.f32.mxu0 0.0
    %1469 = vmatmul.mubr.f32.gmra.mrb[0].mxu0 %v1364
    %v1470 = vpop.f32.mrb[0].mxu0
    %v1471 = vadd.f32 %v388, %v1470
    %v1472 = vpop.f32.mrb[0].mxu0
    %v1473 = vadd.f32 %v392, %v1472
    %1474 = vdwg.mxu0
    %1475 = vmatprep.subr.mxu0 %v320
    %1476 = vmatpush1.msra.mxu0 %v319
    %1477 = vmatprep.subr.mxu0 %v324
    %1478 = vmatpush1.msra.mxu0 %v323
    %1479 = vmatprep.subr.mxu0 %v328
    %1480 = vmatpush1.msra.mxu0 %v327
    %1481 = vmatprep.subr.mxu0 %v332
    %1482 = vmatpush1.msra.mxu0 %v331
    %1483 = vmatprep.subr.mxu0 %v336
    %1484 = vmatpush1.msra.mxu0 %v335
    %1485 = vmatprep.subr.mxu0 %v340
    %1486 = vmatpush1.msra.mxu0 %v339
    %1487 = vmatprep.subr.mxu0 %v344
    %1488 = vmatpush1.msra.mxu0 %v343
    %1489 = vmatprep.subr.mxu0 %v348
    %1490 = vmatpush1.msra.mxu0 %v347
    %1491 = vmatprep.subr.mxu0 %v352
    %1492 = vmatpush1.msra.mxu0 %v351
    %1493 = vmatprep.subr.mxu0 %v356
    %1494 = vmatpush1.msra.mxu0 %v355
    %1495 = vmatprep.subr.mxu0 %v360
    %1496 = vmatpush1.msra.mxu0 %v359
    %1497 = vmatprep.subr.mxu0 %v364
    %1498 = vmatpush1.msra.mxu0 %v363
    %1499 = vmatprep.subr.mxu0 %v368
    %1500 = vmatpush1.msra.mxu0 %v367
    %1501 = vmatprep.subr.mxu0 %v372
    %1502 = vmatpush1.msra.mxu0 %v371
    %1503 = vmatprep.subr.mxu0 %v376
    %1504 = vmatpush1.msra.mxu0 %v375
    %1505 = vmatprep.subr.mxu0 %v380
    %1506 = vmatpush1.msra.mxu0 %v379
    %1507 = vmatprep.subr.mxu0 0.0
    %1508 = vmatpush1.msra.mxu0 0.0
    %1509 = vmatprep.subr.mxu0 0.0
    %1510 = vmatpush1.msra.mxu0 0.0
    %1511 = vmatprep.subr.mxu0 0.0
    %1512 = vmatpush1.msra.mxu0 0.0
    %1513 = vmatprep.subr.mxu0 0.0
    %1514 = vmatpush1.msra.mxu0 0.0
    %1515 = vmatprep.subr.mxu0 0.0
    %1516 = vmatpush1.msra.mxu0 0.0
    %1517 = vmatprep.subr.mxu0 0.0
    %1518 = vmatpush1.msra.mxu0 0.0
    %1519 = vmatprep.subr.mxu0 0.0
    %1520 = vmatpush1.msra.mxu0 0.0
    %1521 = vmatprep.subr.mxu0 0.0
    %1522 = vmatpush1.msra.mxu0 0.0
    %1523 = vmatprep.subr.mxu0 0.0
    %1524 = vmatpush1.msra.mxu0 0.0
    %1525 = vmatprep.subr.mxu0 0.0
    %1526 = vmatpush1.msra.mxu0 0.0
    %1527 = vmatprep.subr.mxu0 0.0
    %1528 = vmatpush1.msra.mxu0 0.0
    %1529 = vmatprep.subr.mxu0 0.0
    %1530 = vmatpush1.msra.mxu0 0.0
    %1531 = vmatprep.subr.mxu0 0.0
    %1532 = vmatpush1.msra.mxu0 0.0
    %1533 = vmatprep.subr.mxu0 0.0
    %1534 = vmatpush1.msra.mxu0 0.0
    %1535 = vmatprep.subr.mxu0 0.0
    %1536 = vmatpush1.msra.mxu0 0.0
    %1537 = vmatprep.subr.mxu0 0.0
    %1538 = vmatpush1.msra.mxu0 0.0
    %1539 = vmatprep.mubr.f32.mxu0 0.0
    %1540 = vmatmul.mubr.f32.gmra.mrb[0].mxu0 %v1364
    %v1541 = vpop.f32.mrb[0].mxu0
    %v1542 = vadd.f32 %v396, %v1541
    %v1543 = vpop.f32.mrb[0].mxu0
    %v1544 = vadd.f32 %v400, %v1543
    %1545 = vdwg.mxu0
    %v1546 = vrot.slane %v230, 5
    %v1547 = vrot.slane %v236, 4
    %v1548 = vsel %vm556, %v1547, %v1546
    %v1549 = vrot.slane %v232, 5
    %v1550 = vrot.slane %v238, 4
    %v1551 = vsel %vm556, %v1550, %v1549
    %v1552 = vrot.slane %v307, 5
    %v1553 = vrot.slane %v313, 4
    %v1554 = vsel %vm556, %v1553, %v1552
    %v1555 = vrot.slane %v309, 5
    %v1556 = vrot.slane %v315, 4
    %v1557 = vsel %vm556, %v1556, %v1555
    %v1562 = vadd.f32 %v1471, %v1548
    %v1563 = vadd.f32 %v1473, %v1551
    %v1564 = vadd.f32 %v1542, %v1554
    %v1565 = vadd.f32 %v1544, %v1557
    %v1566 = vmul.f32 %v1562, 0.5
    %v1567 = vmul.f32 %v1563, 0.5
    %v1568 = vtanh.pop %v1566
    %v1569 = vtanh.pop %v1567
    %v1570 = vmul.f32 %v1568, 0.5
    %v1571 = vmul.f32 %v1569, 0.5
    %v1572 = vadd.f32 %v1570, 0.5
    %v1573 = vadd.f32 %v1571, 0.5
    %v1574 = vtanh.pop %v1564
    %v1575 = vmul.f32 %v1565, 0.5
    %v1576 = vtanh.pop %v1575
    %v1577 = vmul.f32 %v1576, 0.5
    %v1578 = vadd.f32 %v1577, 0.5
    %v1579 = vmul.f32 %v1573, %v1362
    %v1580 = vmul.f32 %v1572, %v1574
    %v1581 = vadd.f32 %v1579, %v1580
    %v1582 = vtanh.pop %v1581
    %v1583 = vmul.f32 %v1578, %v1582
    %v1586 = vunpack.c.l.s4 1966171168
    %v1587 = vunpack.c.0.s8 %v1586
    %v1588 = vlaneseq
    %v1589 = vshrl.u32 %v1588, 7
    %v1590 = vsub.s32 %v1587, %v1589
    %v1591 = vrot.slane %v1583, %v1590
    %v1592 = vcombine.high %v1591, %v1591
    %v1594 = vunpack.c.l.s4 1966171168
    %v1595 = vunpack.c.0.s8 %v1594
    %v1596 = vlaneseq
    %v1597 = vshrl.u32 %v1596, 7
    %v1598 = vsub.s32 %v1595, %v1597
    %v1599 = vrot.slane %v1591, %v1598
    %v1601 = vunpack.c.l.s4 1966171168
    %v1602 = vunpack.c.0.s8 %v1601
    %v1603 = vlaneseq
    %v1604 = vshrl.u32 %v1603, 7
    %v1605 = vsub.s32 %v1602, %v1604
    %v1606 = vrot.slane %v1592, %v1605
    %v1607 = vlaneseq
    %v1608 = vshrl.u32 %v1607, 7
    %v1609 = vsub.s32 0, %v1608
    %v1610 = vrot.slane %v1599, %v1609
    %v1611 = vlaneseq
    %v1612 = vshrl.u32 %v1611, 7
    %v1613 = vsub.s32 0, %v1612
    %v1614 = vrot.slane %v1606, %v1613
    %1615 = vrot.lane.b32.xlu0 %v1610, 32
    %v1616 = vpop.permute.xlu0 %1615
    %1617 = vrot.lane.b32.xlu0 %v1614, 32
    %v1618 = vpop.permute.xlu0 %1617
    %1621 = vst.msk [vmem:[#allocation2 + $0x2] sm:$0x1] %vm1182, %v1616
    %1622 = vst.msk [vmem:[#allocation2 + $0xa] sm:$0x1] %vm1182, %v1618
    %1623 = vmatprep.subr.mxu0 %v318
    %1624 = vmatpush1.msra.mxu0 %v317
    %1625 = vmatprep.subr.mxu0 %v322
    %1626 = vmatpush1.msra.mxu0 %v321
    %1627 = vmatprep.subr.mxu0 %v326
    %1628 = vmatpush1.msra.mxu0 %v325
    %1629 = vmatprep.subr.mxu0 %v330
    %1630 = vmatpush1.msra.mxu0 %v329
    %1631 = vmatprep.subr.mxu0 %v334
    %1632 = vmatpush1.msra.mxu0 %v333
    %1633 = vmatprep.subr.mxu0 %v338
    %1634 = vmatpush1.msra.mxu0 %v337
    %1635 = vmatprep.subr.mxu0 %v342
    %1636 = vmatpush1.msra.mxu0 %v341
    %1637 = vmatprep.subr.mxu0 %v346
    %1638 = vmatpush1.msra.mxu0 %v345
    %1639 = vmatprep.subr.mxu0 %v350
    %1640 = vmatpush1.msra.mxu0 %v349
    %1641 = vmatprep.subr.mxu0 %v354
    %1642 = vmatpush1.msra.mxu0 %v353
    %1643 = vmatprep.subr.mxu0 %v358
    %1644 = vmatpush1.msra.mxu0 %v357
    %1645 = vmatprep.subr.mxu0 %v362
    %1646 = vmatpush1.msra.mxu0 %v361
    %1647 = vmatprep.subr.mxu0 %v366
    %1648 = vmatpush1.msra.mxu0 %v365
    %1649 = vmatprep.subr.mxu0 %v370
    %1650 = vmatpush1.msra.mxu0 %v369
    %1651 = vmatprep.subr.mxu0 %v374
    %1652 = vmatpush1.msra.mxu0 %v373
    %1653 = vmatprep.subr.mxu0 %v378
    %1654 = vmatpush1.msra.mxu0 %v377
    %1655 = vmatprep.subr.mxu0 0.0
    %1656 = vmatpush1.msra.mxu0 0.0
    %1657 = vmatprep.subr.mxu0 0.0
    %1658 = vmatpush1.msra.mxu0 0.0
    %1659 = vmatprep.subr.mxu0 0.0
    %1660 = vmatpush1.msra.mxu0 0.0
    %1661 = vmatprep.subr.mxu0 0.0
    %1662 = vmatpush1.msra.mxu0 0.0
    %1663 = vmatprep.subr.mxu0 0.0
    %1664 = vmatpush1.msra.mxu0 0.0
    %1665 = vmatprep.subr.mxu0 0.0
    %1666 = vmatpush1.msra.mxu0 0.0
    %1667 = vmatprep.subr.mxu0 0.0
    %1668 = vmatpush1.msra.mxu0 0.0
    %1669 = vmatprep.subr.mxu0 0.0
    %1670 = vmatpush1.msra.mxu0 0.0
    %1671 = vmatprep.subr.mxu0 0.0
    %1672 = vmatpush1.msra.mxu0 0.0
    %1673 = vmatprep.subr.mxu0 0.0
    %1674 = vmatpush1.msra.mxu0 0.0
    %1675 = vmatprep.subr.mxu0 0.0
    %1676 = vmatpush1.msra.mxu0 0.0
    %1677 = vmatprep.subr.mxu0 0.0
    %1678 = vmatpush1.msra.mxu0 0.0
    %1679 = vmatprep.subr.mxu0 0.0
    %1680 = vmatpush1.msra.mxu0 0.0
    %1681 = vmatprep.subr.mxu0 0.0
    %1682 = vmatpush1.msra.mxu0 0.0
    %1683 = vmatprep.subr.mxu0 0.0
    %1684 = vmatpush1.msra.mxu0 0.0
    %1685 = vmatprep.subr.mxu0 0.0
    %1686 = vmatpush1.msra.mxu0 0.0
    %1687 = vmatprep.mubr.f32.mxu0 0.0
    %1688 = vmatmul.mubr.f32.gmra.mrb[0].mxu0 %v1583
    %v1689 = vpop.f32.mrb[0].mxu0
    %v1690 = vadd.f32 %v388, %v1689
    %v1691 = vpop.f32.mrb[0].mxu0
    %v1692 = vadd.f32 %v392, %v1691
    %1693 = vdwg.mxu0
    %1694 = vmatprep.subr.mxu0 %v320
    %1695 = vmatpush1.msra.mxu0 %v319
    %1696 = vmatprep.subr.mxu0 %v324
    %1697 = vmatpush1.msra.mxu0 %v323
    %1698 = vmatprep.subr.mxu0 %v328
    %1699 = vmatpush1.msra.mxu0 %v327
    %1700 = vmatprep.subr.mxu0 %v332
    %1701 = vmatpush1.msra.mxu0 %v331
    %1702 = vmatprep.subr.mxu0 %v336
    %1703 = vmatpush1.msra.mxu0 %v335
    %1704 = vmatprep.subr.mxu0 %v340
    %1705 = vmatpush1.msra.mxu0 %v339
    %1706 = vmatprep.subr.mxu0 %v344
    %1707 = vmatpush1.msra.mxu0 %v343
    %1708 = vmatprep.subr.mxu0 %v348
    %1709 = vmatpush1.msra.mxu0 %v347
    %1710 = vmatprep.subr.mxu0 %v352
    %1711 = vmatpush1.msra.mxu0 %v351
    %1712 = vmatprep.subr.mxu0 %v356
    %1713 = vmatpush1.msra.mxu0 %v355
    %1714 = vmatprep.subr.mxu0 %v360
    %1715 = vmatpush1.msra.mxu0 %v359
    %1716 = vmatprep.subr.mxu0 %v364
    %1717 = vmatpush1.msra.mxu0 %v363
    %1718 = vmatprep.subr.mxu0 %v368
    %1719 = vmatpush1.msra.mxu0 %v367
    %1720 = vmatprep.subr.mxu0 %v372
    %1721 = vmatpush1.msra.mxu0 %v371
    %1722 = vmatprep.subr.mxu0 %v376
    %1723 = vmatpush1.msra.mxu0 %v375
    %1724 = vmatprep.subr.mxu0 %v380
    %1725 = vmatpush1.msra.mxu0 %v379
    %1726 = vmatprep.subr.mxu0 0.0
    %1727 = vmatpush1.msra.mxu0 0.0
    %1728 = vmatprep.subr.mxu0 0.0
    %1729 = vmatpush1.msra.mxu0 0.0
    %1730 = vmatprep.subr.mxu0 0.0
    %1731 = vmatpush1.msra.mxu0 0.0
    %1732 = vmatprep.subr.mxu0 0.0
    %1733 = vmatpush1.msra.mxu0 0.0
    %1734 = vmatprep.subr.mxu0 0.0
    %1735 = vmatpush1.msra.mxu0 0.0
    %1736 = vmatprep.subr.mxu0 0.0
    %1737 = vmatpush1.msra.mxu0 0.0
    %1738 = vmatprep.subr.mxu0 0.0
    %1739 = vmatpush1.msra.mxu0 0.0
    %1740 = vmatprep.subr.mxu0 0.0
    %1741 = vmatpush1.msra.mxu0 0.0
    %1742 = vmatprep.subr.mxu0 0.0
    %1743 = vmatpush1.msra.mxu0 0.0
    %1744 = vmatprep.subr.mxu0 0.0
    %1745 = vmatpush1.msra.mxu0 0.0
    %1746 = vmatprep.subr.mxu0 0.0
    %1747 = vmatpush1.msra.mxu0 0.0
    %1748 = vmatprep.subr.mxu0 0.0
    %1749 = vmatpush1.msra.mxu0 0.0
    %1750 = vmatprep.subr.mxu0 0.0
    %1751 = vmatpush1.msra.mxu0 0.0
    %1752 = vmatprep.subr.mxu0 0.0
    %1753 = vmatpush1.msra.mxu0 0.0
    %1754 = vmatprep.subr.mxu0 0.0
    %1755 = vmatpush1.msra.mxu0 0.0
    %1756 = vmatprep.subr.mxu0 0.0
    %1757 = vmatpush1.msra.mxu0 0.0
    %1758 = vmatprep.mubr.f32.mxu0 0.0
    %1759 = vmatmul.mubr.f32.gmra.mrb[0].mxu0 %v1583
    %v1760 = vpop.f32.mrb[0].mxu0
    %v1761 = vadd.f32 %v396, %v1760
    %v1762 = vpop.f32.mrb[0].mxu0
    %v1763 = vadd.f32 %v400, %v1762
    %1764 = vdwg.mxu0
    %v1765 = vrot.slane %v230, 6
    %v1766 = vrot.slane %v236, 5
    %v1767 = vsel %vm556, %v1766, %v1765
    %v1768 = vrot.slane %v232, 6
    %v1769 = vrot.slane %v238, 5
    %v1770 = vsel %vm556, %v1769, %v1768
    %v1771 = vrot.slane %v307, 6
    %v1772 = vrot.slane %v313, 5
    %v1773 = vsel %vm556, %v1772, %v1771
    %v1774 = vrot.slane %v309, 6
    %v1775 = vrot.slane %v315, 5
    %v1776 = vsel %vm556, %v1775, %v1774
    %v1781 = vadd.f32 %v1690, %v1767
    %v1782 = vadd.f32 %v1692, %v1770
    %v1783 = vadd.f32 %v1761, %v1773
    %v1784 = vadd.f32 %v1763, %v1776
    %v1785 = vmul.f32 %v1781, 0.5
    %v1786 = vmul.f32 %v1782, 0.5
    %v1787 = vtanh.pop %v1785
    %v1788 = vtanh.pop %v1786
    %v1789 = vmul.f32 %v1787, 0.5
    %v1790 = vmul.f32 %v1788, 0.5
    %v1791 = vadd.f32 %v1789, 0.5
    %v1792 = vadd.f32 %v1790, 0.5
    %v1793 = vtanh.pop %v1783
    %v1794 = vmul.f32 %v1784, 0.5
    %v1795 = vtanh.pop %v1794
    %v1796 = vmul.f32 %v1795, 0.5
    %v1797 = vadd.f32 %v1796, 0.5
    %v1798 = vmul.f32 %v1792, %v1581
    %v1799 = vmul.f32 %v1791, %v1793
    %v1800 = vadd.f32 %v1798, %v1799
    %v1801 = vtanh.pop %v1800
    %v1802 = vmul.f32 %v1797, %v1801
    %v1805 = vunpack.c.l.s4 1966171168
    %v1806 = vunpack.c.0.s8 %v1805
    %v1807 = vlaneseq
    %v1808 = vshrl.u32 %v1807, 7
    %v1809 = vsub.s32 %v1806, %v1808
    %v1810 = vrot.slane %v1802, %v1809
    %v1811 = vcombine.high %v1810, %v1810
    %v1813 = vunpack.c.l.s4 1966171168
    %v1814 = vunpack.c.0.s8 %v1813
    %v1815 = vlaneseq
    %v1816 = vshrl.u32 %v1815, 7
    %v1817 = vsub.s32 %v1814, %v1816
    %v1818 = vrot.slane %v1810, %v1817
    %v1820 = vunpack.c.l.s4 1966171168
    %v1821 = vunpack.c.0.s8 %v1820
    %v1822 = vlaneseq
    %v1823 = vshrl.u32 %v1822, 7
    %v1824 = vsub.s32 %v1821, %v1823
    %v1825 = vrot.slane %v1811, %v1824
    %v1826 = vlaneseq
    %v1827 = vshrl.u32 %v1826, 7
    %v1828 = vsub.s32 0, %v1827
    %v1829 = vrot.slane %v1818, %v1828
    %v1830 = vlaneseq
    %v1831 = vshrl.u32 %v1830, 7
    %v1832 = vsub.s32 0, %v1831
    %v1833 = vrot.slane %v1825, %v1832
    %1834 = vrot.lane.b32.xlu0 %v1829, 32
    %v1835 = vpop.permute.xlu0 %1834
    %1836 = vrot.lane.b32.xlu0 %v1833, 32
    %v1837 = vpop.permute.xlu0 %1836
    %1840 = vst.msk [vmem:[#allocation2 + $0x3] sm:$0x1] %vm1182, %v1835
    %1841 = vst.msk [vmem:[#allocation2 + $0xb] sm:$0x1] %vm1182, %v1837
    %1842 = vmatprep.subr.mxu0 %v318
    %1843 = vmatpush1.msra.mxu0 %v317
    %1844 = vmatprep.subr.mxu0 %v322
    %1845 = vmatpush1.msra.mxu0 %v321
    %1846 = vmatprep.subr.mxu0 %v326
    %1847 = vmatpush1.msra.mxu0 %v325
    %1848 = vmatprep.subr.mxu0 %v330
    %1849 = vmatpush1.msra.mxu0 %v329
    %1850 = vmatprep.subr.mxu0 %v334
    %1851 = vmatpush1.msra.mxu0 %v333
    %1852 = vmatprep.subr.mxu0 %v338
    %1853 = vmatpush1.msra.mxu0 %v337
    %1854 = vmatprep.subr.mxu0 %v342
    %1855 = vmatpush1.msra.mxu0 %v341
    %1856 = vmatprep.subr.mxu0 %v346
    %1857 = vmatpush1.msra.mxu0 %v345
    %1858 = vmatprep.subr.mxu0 %v350
    %1859 = vmatpush1.msra.mxu0 %v349
    %1860 = vmatprep.subr.mxu0 %v354
    %1861 = vmatpush1.msra.mxu0 %v353
    %1862 = vmatprep.subr.mxu0 %v358
    %1863 = vmatpush1.msra.mxu0 %v357
    %1864 = vmatprep.subr.mxu0 %v362
    %1865 = vmatpush1.msra.mxu0 %v361
    %1866 = vmatprep.subr.mxu0 %v366
    %1867 = vmatpush1.msra.mxu0 %v365
    %1868 = vmatprep.subr.mxu0 %v370
    %1869 = vmatpush1.msra.mxu0 %v369
    %1870 = vmatprep.subr.mxu0 %v374
    %1871 = vmatpush1.msra.mxu0 %v373
    %1872 = vmatprep.subr.mxu0 %v378
    %1873 = vmatpush1.msra.mxu0 %v377
    %1874 = vmatprep.subr.mxu0 0.0
    %1875 = vmatpush1.msra.mxu0 0.0
    %1876 = vmatprep.subr.mxu0 0.0
    %1877 = vmatpush1.msra.mxu0 0.0
    %1878 = vmatprep.subr.mxu0 0.0
    %1879 = vmatpush1.msra.mxu0 0.0
    %1880 = vmatprep.subr.mxu0 0.0
    %1881 = vmatpush1.msra.mxu0 0.0
    %1882 = vmatprep.subr.mxu0 0.0
    %1883 = vmatpush1.msra.mxu0 0.0
    %1884 = vmatprep.subr.mxu0 0.0
    %1885 = vmatpush1.msra.mxu0 0.0
    %1886 = vmatprep.subr.mxu0 0.0
    %1887 = vmatpush1.msra.mxu0 0.0
    %1888 = vmatprep.subr.mxu0 0.0
    %1889 = vmatpush1.msra.mxu0 0.0
    %1890 = vmatprep.subr.mxu0 0.0
    %1891 = vmatpush1.msra.mxu0 0.0
    %1892 = vmatprep.subr.mxu0 0.0
    %1893 = vmatpush1.msra.mxu0 0.0
    %1894 = vmatprep.subr.mxu0 0.0
    %1895 = vmatpush1.msra.mxu0 0.0
    %1896 = vmatprep.subr.mxu0 0.0
    %1897 = vmatpush1.msra.mxu0 0.0
    %1898 = vmatprep.subr.mxu0 0.0
    %1899 = vmatpush1.msra.mxu0 0.0
    %1900 = vmatprep.subr.mxu0 0.0
    %1901 = vmatpush1.msra.mxu0 0.0
    %1902 = vmatprep.subr.mxu0 0.0
    %1903 = vmatpush1.msra.mxu0 0.0
    %1904 = vmatprep.subr.mxu0 0.0
    %1905 = vmatpush1.msra.mxu0 0.0
    %1906 = vmatprep.mubr.f32.mxu0 0.0
    %1907 = vmatmul.mubr.f32.gmra.mrb[0].mxu0 %v1802
    %v1908 = vpop.f32.mrb[0].mxu0
    %v1909 = vadd.f32 %v388, %v1908
    %v1910 = vpop.f32.mrb[0].mxu0
    %v1911 = vadd.f32 %v392, %v1910
    %1912 = vdwg.mxu0
    %1913 = vmatprep.subr.mxu0 %v320
    %1914 = vmatpush1.msra.mxu0 %v319
    %1915 = vmatprep.subr.mxu0 %v324
    %1916 = vmatpush1.msra.mxu0 %v323
    %1917 = vmatprep.subr.mxu0 %v328
    %1918 = vmatpush1.msra.mxu0 %v327
    %1919 = vmatprep.subr.mxu0 %v332
    %1920 = vmatpush1.msra.mxu0 %v331
    %1921 = vmatprep.subr.mxu0 %v336
    %1922 = vmatpush1.msra.mxu0 %v335
    %1923 = vmatprep.subr.mxu0 %v340
    %1924 = vmatpush1.msra.mxu0 %v339
    %1925 = vmatprep.subr.mxu0 %v344
    %1926 = vmatpush1.msra.mxu0 %v343
    %1927 = vmatprep.subr.mxu0 %v348
    %1928 = vmatpush1.msra.mxu0 %v347
    %1929 = vmatprep.subr.mxu0 %v352
    %1930 = vmatpush1.msra.mxu0 %v351
    %1931 = vmatprep.subr.mxu0 %v356
    %1932 = vmatpush1.msra.mxu0 %v355
    %1933 = vmatprep.subr.mxu0 %v360
    %1934 = vmatpush1.msra.mxu0 %v359
    %1935 = vmatprep.subr.mxu0 %v364
    %1936 = vmatpush1.msra.mxu0 %v363
    %1937 = vmatprep.subr.mxu0 %v368
    %1938 = vmatpush1.msra.mxu0 %v367
    %1939 = vmatprep.subr.mxu0 %v372
    %1940 = vmatpush1.msra.mxu0 %v371
    %1941 = vmatprep.subr.mxu0 %v376
    %1942 = vmatpush1.msra.mxu0 %v375
    %1943 = vmatprep.subr.mxu0 %v380
    %1944 = vmatpush1.msra.mxu0 %v379
    %1945 = vmatprep.subr.mxu0 0.0
    %1946 = vmatpush1.msra.mxu0 0.0
    %1947 = vmatprep.subr.mxu0 0.0
    %1948 = vmatpush1.msra.mxu0 0.0
    %1949 = vmatprep.subr.mxu0 0.0
    %1950 = vmatpush1.msra.mxu0 0.0
    %1951 = vmatprep.subr.mxu0 0.0
    %1952 = vmatpush1.msra.mxu0 0.0
    %1953 = vmatprep.subr.mxu0 0.0
    %1954 = vmatpush1.msra.mxu0 0.0
    %1955 = vmatprep.subr.mxu0 0.0
    %1956 = vmatpush1.msra.mxu0 0.0
    %1957 = vmatprep.subr.mxu0 0.0
    %1958 = vmatpush1.msra.mxu0 0.0
    %1959 = vmatprep.subr.mxu0 0.0
    %1960 = vmatpush1.msra.mxu0 0.0
    %1961 = vmatprep.subr.mxu0 0.0
    %1962 = vmatpush1.msra.mxu0 0.0
    %1963 = vmatprep.subr.mxu0 0.0
    %1964 = vmatpush1.msra.mxu0 0.0
    %1965 = vmatprep.subr.mxu0 0.0
    %1966 = vmatpush1.msra.mxu0 0.0
    %1967 = vmatprep.subr.mxu0 0.0
    %1968 = vmatpush1.msra.mxu0 0.0
    %1969 = vmatprep.subr.mxu0 0.0
    %1970 = vmatpush1.msra.mxu0 0.0
    %1971 = vmatprep.subr.mxu0 0.0
    %1972 = vmatpush1.msra.mxu0 0.0
    %1973 = vmatprep.subr.mxu0 0.0
    %1974 = vmatpush1.msra.mxu0 0.0
    %1975 = vmatprep.subr.mxu0 0.0
    %1976 = vmatpush1.msra.mxu0 0.0
    %1977 = vmatprep.mubr.f32.mxu0 0.0
    %1978 = vmatmul.mubr.f32.gmra.mrb[0].mxu0 %v1802
    %v1979 = vpop.f32.mrb[0].mxu0
    %v1980 = vadd.f32 %v396, %v1979
    %v1981 = vpop.f32.mrb[0].mxu0
    %v1982 = vadd.f32 %v400, %v1981
    %1983 = vdwg.mxu0
    %v1984 = vrot.slane %v230, 7
    %v1985 = vrot.slane %v236, 6
    %v1986 = vsel %vm556, %v1985, %v1984
    %v1987 = vrot.slane %v232, 7
    %v1988 = vrot.slane %v238, 6
    %v1989 = vsel %vm556, %v1988, %v1987
    %v1990 = vrot.slane %v307, 7
    %v1991 = vrot.slane %v313, 6
    %v1992 = vsel %vm556, %v1991, %v1990
    %v1993 = vrot.slane %v309, 7
    %v1994 = vrot.slane %v315, 6
    %v1995 = vsel %vm556, %v1994, %v1993
    %v2000 = vadd.f32 %v1909, %v1986
    %v2001 = vadd.f32 %v1911, %v1989
    %v2002 = vadd.f32 %v1980, %v1992
    %v2003 = vadd.f32 %v1982, %v1995
    %v2004 = vmul.f32 %v2000, 0.5
    %v2005 = vmul.f32 %v2001, 0.5
    %v2006 = vtanh.pop %v2004
    %v2007 = vtanh.pop %v2005
    %v2008 = vmul.f32 %v2006, 0.5
    %v2009 = vmul.f32 %v2007, 0.5
    %v2010 = vadd.f32 %v2008, 0.5
    %v2011 = vadd.f32 %v2009, 0.5
    %v2012 = vtanh.pop %v2002
    %v2013 = vmul.f32 %v2003, 0.5
    %v2014 = vtanh.pop %v2013
    %v2015 = vmul.f32 %v2014, 0.5
    %v2016 = vadd.f32 %v2015, 0.5
    %v2017 = vmul.f32 %v2011, %v1800
    %v2018 = vmul.f32 %v2010, %v2012
    %v2019 = vadd.f32 %v2017, %v2018
    %v2020 = vtanh.pop %v2019
    %v2021 = vmul.f32 %v2016, %v2020
    %v2024 = vunpack.c.l.s4 1966171168
    %v2025 = vunpack.c.0.s8 %v2024
    %v2026 = vlaneseq
    %v2027 = vshrl.u32 %v2026, 7
    %v2028 = vsub.s32 %v2025, %v2027
    %v2029 = vrot.slane %v2021, %v2028
    %v2030 = vcombine.high %v2029, %v2029
    %v2032 = vunpack.c.l.s4 1966171168
    %v2033 = vunpack.c.0.s8 %v2032
    %v2034 = vlaneseq
    %v2035 = vshrl.u32 %v2034, 7
    %v2036 = vsub.s32 %v2033, %v2035
    %v2037 = vrot.slane %v2029, %v2036
    %v2039 = vunpack.c.l.s4 1966171168
    %v2040 = vunpack.c.0.s8 %v2039
    %v2041 = vlaneseq
    %v2042 = vshrl.u32 %v2041, 7
    %v2043 = vsub.s32 %v2040, %v2042
    %v2044 = vrot.slane %v2030, %v2043
    %v2045 = vlaneseq
    %v2046 = vshrl.u32 %v2045, 7
    %v2047 = vsub.s32 0, %v2046
    %v2048 = vrot.slane %v2037, %v2047
    %v2049 = vlaneseq
    %v2050 = vshrl.u32 %v2049, 7
    %v2051 = vsub.s32 0, %v2050
    %v2052 = vrot.slane %v2044, %v2051
    %2053 = vrot.lane.b32.xlu0 %v2048, 32
    %v2054 = vpop.permute.xlu0 %2053
    %2055 = vrot.lane.b32.xlu0 %v2052, 32
    %v2056 = vpop.permute.xlu0 %2055
    %2059 = vst.msk [vmem:[#allocation2 + $0x4] sm:$0x1] %vm1182, %v2054
    %2060 = vst.msk [vmem:[#allocation2 + $0xc] sm:$0x1] %vm1182, %v2056
    %2061 = vmatprep.subr.mxu0 %v318
    %2062 = vmatpush1.msra.mxu0 %v317
    %2063 = vmatprep.subr.mxu0 %v322
    %2064 = vmatpush1.msra.mxu0 %v321
    %2065 = vmatprep.subr.mxu0 %v326
    %2066 = vmatpush1.msra.mxu0 %v325
    %2067 = vmatprep.subr.mxu0 %v330
    %2068 = vmatpush1.msra.mxu0 %v329
    %2069 = vmatprep.subr.mxu0 %v334
    %2070 = vmatpush1.msra.mxu0 %v333
    %2071 = vmatprep.subr.mxu0 %v338
    %2072 = vmatpush1.msra.mxu0 %v337
    %2073 = vmatprep.subr.mxu0 %v342
    %2074 = vmatpush1.msra.mxu0 %v341
    %2075 = vmatprep.subr.mxu0 %v346
    %2076 = vmatpush1.msra.mxu0 %v345
    %2077 = vmatprep.subr.mxu0 %v350
    %2078 = vmatpush1.msra.mxu0 %v349
    %2079 = vmatprep.subr.mxu0 %v354
    %2080 = vmatpush1.msra.mxu0 %v353
    %2081 = vmatprep.subr.mxu0 %v358
    %2082 = vmatpush1.msra.mxu0 %v357
    %2083 = vmatprep.subr.mxu0 %v362
    %2084 = vmatpush1.msra.mxu0 %v361
    %2085 = vmatprep.subr.mxu0 %v366
    %2086 = vmatpush1.msra.mxu0 %v365
    %2087 = vmatprep.subr.mxu0 %v370
    %2088 = vmatpush1.msra.mxu0 %v369
    %2089 = vmatprep.subr.mxu0 %v374
    %2090 = vmatpush1.msra.mxu0 %v373
    %2091 = vmatprep.subr.mxu0 %v378
    %2092 = vmatpush1.msra.mxu0 %v377
    %2093 = vmatprep.subr.mxu0 0.0
    %2094 = vmatpush1.msra.mxu0 0.0
    %2095 = vmatprep.subr.mxu0 0.0
    %2096 = vmatpush1.msra.mxu0 0.0
    %2097 = vmatprep.subr.mxu0 0.0
    %2098 = vmatpush1.msra.mxu0 0.0
    %2099 = vmatprep.subr.mxu0 0.0
    %2100 = vmatpush1.msra.mxu0 0.0
    %2101 = vmatprep.subr.mxu0 0.0
    %2102 = vmatpush1.msra.mxu0 0.0
    %2103 = vmatprep.subr.mxu0 0.0
    %2104 = vmatpush1.msra.mxu0 0.0
    %2105 = vmatprep.subr.mxu0 0.0
    %2106 = vmatpush1.msra.mxu0 0.0
    %2107 = vmatprep.subr.mxu0 0.0
    %2108 = vmatpush1.msra.mxu0 0.0
    %2109 = vmatprep.subr.mxu0 0.0
    %2110 = vmatpush1.msra.mxu0 0.0
    %2111 = vmatprep.subr.mxu0 0.0
    %2112 = vmatpush1.msra.mxu0 0.0
    %2113 = vmatprep.subr.mxu0 0.0
    %2114 = vmatpush1.msra.mxu0 0.0
    %2115 = vmatprep.subr.mxu0 0.0
    %2116 = vmatpush1.msra.mxu0 0.0
    %2117 = vmatprep.subr.mxu0 0.0
    %2118 = vmatpush1.msra.mxu0 0.0
    %2119 = vmatprep.subr.mxu0 0.0
    %2120 = vmatpush1.msra.mxu0 0.0
    %2121 = vmatprep.subr.mxu0 0.0
    %2122 = vmatpush1.msra.mxu0 0.0
    %2123 = vmatprep.subr.mxu0 0.0
    %2124 = vmatpush1.msra.mxu0 0.0
    %2125 = vmatprep.mubr.f32.mxu0 0.0
    %2126 = vmatmul.mubr.f32.gmra.mrb[0].mxu0 %v2021
    %v2127 = vpop.f32.mrb[0].mxu0
    %v2128 = vadd.f32 %v388, %v2127
    %v2129 = vpop.f32.mrb[0].mxu0
    %v2130 = vadd.f32 %v392, %v2129
    %2131 = vdwg.mxu0
    %2132 = vmatprep.subr.mxu0 %v320
    %2133 = vmatpush1.msra.mxu0 %v319
    %2134 = vmatprep.subr.mxu0 %v324
    %2135 = vmatpush1.msra.mxu0 %v323
    %2136 = vmatprep.subr.mxu0 %v328
    %2137 = vmatpush1.msra.mxu0 %v327
    %2138 = vmatprep.subr.mxu0 %v332
    %2139 = vmatpush1.msra.mxu0 %v331
    %2140 = vmatprep.subr.mxu0 %v336
    %2141 = vmatpush1.msra.mxu0 %v335
    %2142 = vmatprep.subr.mxu0 %v340
    %2143 = vmatpush1.msra.mxu0 %v339
    %2144 = vmatprep.subr.mxu0 %v344
    %2145 = vmatpush1.msra.mxu0 %v343
    %2146 = vmatprep.subr.mxu0 %v348
    %2147 = vmatpush1.msra.mxu0 %v347
    %2148 = vmatprep.subr.mxu0 %v352
    %2149 = vmatpush1.msra.mxu0 %v351
    %2150 = vmatprep.subr.mxu0 %v356
    %2151 = vmatpush1.msra.mxu0 %v355
    %2152 = vmatprep.subr.mxu0 %v360
    %2153 = vmatpush1.msra.mxu0 %v359
    %2154 = vmatprep.subr.mxu0 %v364
    %2155 = vmatpush1.msra.mxu0 %v363
    %2156 = vmatprep.subr.mxu0 %v368
    %2157 = vmatpush1.msra.mxu0 %v367
    %2158 = vmatprep.subr.mxu0 %v372
    %2159 = vmatpush1.msra.mxu0 %v371
    %2160 = vmatprep.subr.mxu0 %v376
    %2161 = vmatpush1.msra.mxu0 %v375
    %2162 = vmatprep.subr.mxu0 %v380
    %2163 = vmatpush1.msra.mxu0 %v379
    %2164 = vmatprep.subr.mxu0 0.0
    %2165 = vmatpush1.msra.mxu0 0.0
    %2166 = vmatprep.subr.mxu0 0.0
    %2167 = vmatpush1.msra.mxu0 0.0
    %2168 = vmatprep.subr.mxu0 0.0
    %2169 = vmatpush1.msra.mxu0 0.0
    %2170 = vmatprep.subr.mxu0 0.0
    %2171 = vmatpush1.msra.mxu0 0.0
    %2172 = vmatprep.subr.mxu0 0.0
    %2173 = vmatpush1.msra.mxu0 0.0
    %2174 = vmatprep.subr.mxu0 0.0
    %2175 = vmatpush1.msra.mxu0 0.0
    %2176 = vmatprep.subr.mxu0 0.0
    %2177 = vmatpush1.msra.mxu0 0.0
    %2178 = vmatprep.subr.mxu0 0.0
    %2179 = vmatpush1.msra.mxu0 0.0
    %2180 = vmatprep.subr.mxu0 0.0
    %2181 = vmatpush1.msra.mxu0 0.0
    %2182 = vmatprep.subr.mxu0 0.0
    %2183 = vmatpush1.msra.mxu0 0.0
    %2184 = vmatprep.subr.mxu0 0.0
    %2185 = vmatpush1.msra.mxu0 0.0
    %2186 = vmatprep.subr.mxu0 0.0
    %2187 = vmatpush1.msra.mxu0 0.0
    %2188 = vmatprep.subr.mxu0 0.0
    %2189 = vmatpush1.msra.mxu0 0.0
    %2190 = vmatprep.subr.mxu0 0.0
    %2191 = vmatpush1.msra.mxu0 0.0
    %2192 = vmatprep.subr.mxu0 0.0
    %2193 = vmatpush1.msra.mxu0 0.0
    %2194 = vmatprep.subr.mxu0 0.0
    %2195 = vmatpush1.msra.mxu0 0.0
    %2196 = vmatprep.mubr.f32.mxu0 0.0
    %2197 = vmatmul.mubr.f32.gmra.mrb[0].mxu0 %v2021
    %v2198 = vpop.f32.mrb[0].mxu0
    %v2199 = vadd.f32 %v396, %v2198
    %v2200 = vpop.f32.mrb[0].mxu0
    %v2201 = vadd.f32 %v400, %v2200
    %2202 = vdwg.mxu0
    %v2203 = vmul.f32 %v2128, 0.5
    %v2204 = vmul.f32 %v2130, 0.5
    %v2205 = vtanh.pop %v2203
    %v2206 = vtanh.pop %v2204
    %v2207 = vmul.f32 %v2205, 0.5
    %v2208 = vmul.f32 %v2206, 0.5
    %v2209 = vadd.f32 %v2207, 0.5
    %v2210 = vadd.f32 %v2208, 0.5
    %v2211 = vtanh.pop %v2199
    %v2212 = vmul.f32 %v2201, 0.5
    %v2213 = vtanh.pop %v2212
    %v2214 = vmul.f32 %v2213, 0.5
    %v2215 = vadd.f32 %v2214, 0.5
    %v2216 = vmul.f32 %v2210, %v2019
    %v2217 = vmul.f32 %v2209, %v2211
    %v2218 = vadd.f32 %v2216, %v2217
    %v2219 = vtanh.pop %v2218
    %v2220 = vmul.f32 %v2215, %v2219
    %vm2221 = vcmp.ge.s32.totalorder %v383, 32
    %vm2222 = vcmp.lt.s32.totalorder %v383, 128
    %vm2223 = vmand %vm2221, %vm2222
    %v2224 = vsel %vm2223, 1, 0
    %vm2225 = vcmp.eq.s32.totalorder %v2224, 1
    %v2226 = vsel %vm2225, %v2220, %v2021
    %v2227 = vsel %vm2225, %v2218, %v2019
    %v2230 = vunpack.c.l.s4 1966171168
    %v2231 = vunpack.c.0.s8 %v2230
    %v2232 = vlaneseq
    %v2233 = vshrl.u32 %v2232, 7
    %v2234 = vsub.s32 %v2231, %v2233
    %v2235 = vrot.slane %v2220, %v2234
    %v2236 = vcombine.high %v2235, %v2235
    %v2238 = vunpack.c.l.s4 1966171168
    %v2239 = vunpack.c.0.s8 %v2238
    %v2240 = vlaneseq
    %v2241 = vshrl.u32 %v2240, 7
    %v2242 = vsub.s32 %v2239, %v2241
    %v2243 = vrot.slane %v2235, %v2242
    %v2245 = vunpack.c.l.s4 1966171168
    %v2246 = vunpack.c.0.s8 %v2245
    %v2247 = vlaneseq
    %v2248 = vshrl.u32 %v2247, 7
    %v2249 = vsub.s32 %v2246, %v2248
    %v2250 = vrot.slane %v2236, %v2249
    %v2251 = vlaneseq
    %v2252 = vshrl.u32 %v2251, 7
    %v2253 = vsub.s32 0, %v2252
    %v2254 = vrot.slane %v2243, %v2253
    %v2255 = vlaneseq
    %v2256 = vshrl.u32 %v2255, 7
    %v2257 = vsub.s32 0, %v2256
    %v2258 = vrot.slane %v2250, %v2257
    %2259 = vrot.lane.b32.xlu0 %v2254, 32
    %v2260 = vpop.permute.xlu0 %2259
    %2261 = vrot.lane.b32.xlu0 %v2258, 32
    %v2262 = vpop.permute.xlu0 %2261
    %2265 = vst.msk [vmem:[#allocation2 + $0x5] sm:$0x1] %vm1182, %v2260
    %2266 = vst.msk [vmem:[#allocation2 + $0xd] sm:$0x1] %vm1182, %v2262
    %2267 = vmatprep.subr.mxu0 %v318
    %2268 = vmatpush1.msra.mxu0 %v317
    %2269 = vmatprep.subr.mxu0 %v322
    %2270 = vmatpush1.msra.mxu0 %v321
    %2271 = vmatprep.subr.mxu0 %v326
    %2272 = vmatpush1.msra.mxu0 %v325
    %2273 = vmatprep.subr.mxu0 %v330
    %2274 = vmatpush1.msra.mxu0 %v329
    %2275 = vmatprep.subr.mxu0 %v334
    %2276 = vmatpush1.msra.mxu0 %v333
    %2277 = vmatprep.subr.mxu0 %v338
    %2278 = vmatpush1.msra.mxu0 %v337
    %2279 = vmatprep.subr.mxu0 %v342
    %2280 = vmatpush1.msra.mxu0 %v341
    %2281 = vmatprep.subr.mxu0 %v346
    %2282 = vmatpush1.msra.mxu0 %v345
    %2283 = vmatprep.subr.mxu0 %v350
    %2284 = vmatpush1.msra.mxu0 %v349
    %2285 = vmatprep.subr.mxu0 %v354
    %2286 = vmatpush1.msra.mxu0 %v353
    %2287 = vmatprep.subr.mxu0 %v358
    %2288 = vmatpush1.msra.mxu0 %v357
    %2289 = vmatprep.subr.mxu0 %v362
    %2290 = vmatpush1.msra.mxu0 %v361
    %2291 = vmatprep.subr.mxu0 %v366
    %2292 = vmatpush1.msra.mxu0 %v365
    %2293 = vmatprep.subr.mxu0 %v370
    %2294 = vmatpush1.msra.mxu0 %v369
    %2295 = vmatprep.subr.mxu0 %v374
    %2296 = vmatpush1.msra.mxu0 %v373
    %2297 = vmatprep.subr.mxu0 %v378
    %2298 = vmatpush1.msra.mxu0 %v377
    %2299 = vmatprep.subr.mxu0 0.0
    %2300 = vmatpush1.msra.mxu0 0.0
    %2301 = vmatprep.subr.mxu0 0.0
    %2302 = vmatpush1.msra.mxu0 0.0
    %2303 = vmatprep.subr.mxu0 0.0
    %2304 = vmatpush1.msra.mxu0 0.0
    %2305 = vmatprep.subr.mxu0 0.0
    %2306 = vmatpush1.msra.mxu0 0.0
    %2307 = vmatprep.subr.mxu0 0.0
    %2308 = vmatpush1.msra.mxu0 0.0
    %2309 = vmatprep.subr.mxu0 0.0
    %2310 = vmatpush1.msra.mxu0 0.0
    %2311 = vmatprep.subr.mxu0 0.0
    %2312 = vmatpush1.msra.mxu0 0.0
    %2313 = vmatprep.subr.mxu0 0.0
    %2314 = vmatpush1.msra.mxu0 0.0
    %2315 = vmatprep.subr.mxu0 0.0
    %2316 = vmatpush1.msra.mxu0 0.0
    %2317 = vmatprep.subr.mxu0 0.0
    %2318 = vmatpush1.msra.mxu0 0.0
    %2319 = vmatprep.subr.mxu0 0.0
    %2320 = vmatpush1.msra.mxu0 0.0
    %2321 = vmatprep.subr.mxu0 0.0
    %2322 = vmatpush1.msra.mxu0 0.0
    %2323 = vmatprep.subr.mxu0 0.0
    %2324 = vmatpush1.msra.mxu0 0.0
    %2325 = vmatprep.subr.mxu0 0.0
    %2326 = vmatpush1.msra.mxu0 0.0
    %2327 = vmatprep.subr.mxu0 0.0
    %2328 = vmatpush1.msra.mxu0 0.0
    %2329 = vmatprep.subr.mxu0 0.0
    %2330 = vmatpush1.msra.mxu0 0.0
    %2331 = vmatprep.mubr.f32.mxu0 0.0
    %2332 = vmatmul.mubr.f32.gmra.mrb[0].mxu0 %v2226
    %v2333 = vpop.f32.mrb[0].mxu0
    %v2334 = vadd.f32 %v388, %v2333
    %v2335 = vpop.f32.mrb[0].mxu0
    %v2336 = vadd.f32 %v392, %v2335
    %2337 = vdwg.mxu0
    %2338 = vmatprep.subr.mxu0 %v320
    %2339 = vmatpush1.msra.mxu0 %v319
    %2340 = vmatprep.subr.mxu0 %v324
    %2341 = vmatpush1.msra.mxu0 %v323
    %2342 = vmatprep.subr.mxu0 %v328
    %2343 = vmatpush1.msra.mxu0 %v327
    %2344 = vmatprep.subr.mxu0 %v332
    %2345 = vmatpush1.msra.mxu0 %v331
    %2346 = vmatprep.subr.mxu0 %v336
    %2347 = vmatpush1.msra.mxu0 %v335
    %2348 = vmatprep.subr.mxu0 %v340
    %2349 = vmatpush1.msra.mxu0 %v339
    %2350 = vmatprep.subr.mxu0 %v344
    %2351 = vmatpush1.msra.mxu0 %v343
    %2352 = vmatprep.subr.mxu0 %v348
    %2353 = vmatpush1.msra.mxu0 %v347
    %2354 = vmatprep.subr.mxu0 %v352
    %2355 = vmatpush1.msra.mxu0 %v351
    %2356 = vmatprep.subr.mxu0 %v356
    %2357 = vmatpush1.msra.mxu0 %v355
    %2358 = vmatprep.subr.mxu0 %v360
    %2359 = vmatpush1.msra.mxu0 %v359
    %2360 = vmatprep.subr.mxu0 %v364
    %2361 = vmatpush1.msra.mxu0 %v363
    %2362 = vmatprep.subr.mxu0 %v368
    %2363 = vmatpush1.msra.mxu0 %v367
    %2364 = vmatprep.subr.mxu0 %v372
    %2365 = vmatpush1.msra.mxu0 %v371
    %2366 = vmatprep.subr.mxu0 %v376
    %2367 = vmatpush1.msra.mxu0 %v375
    %2368 = vmatprep.subr.mxu0 %v380
    %2369 = vmatpush1.msra.mxu0 %v379
    %2370 = vmatprep.subr.mxu0 0.0
    %2371 = vmatpush1.msra.mxu0 0.0
    %2372 = vmatprep.subr.mxu0 0.0
    %2373 = vmatpush1.msra.mxu0 0.0
    %2374 = vmatprep.subr.mxu0 0.0
    %2375 = vmatpush1.msra.mxu0 0.0
    %2376 = vmatprep.subr.mxu0 0.0
    %2377 = vmatpush1.msra.mxu0 0.0
    %2378 = vmatprep.subr.mxu0 0.0
    %2379 = vmatpush1.msra.mxu0 0.0
    %2380 = vmatprep.subr.mxu0 0.0
    %2381 = vmatpush1.msra.mxu0 0.0
    %2382 = vmatprep.subr.mxu0 0.0
    %2383 = vmatpush1.msra.mxu0 0.0
    %2384 = vmatprep.subr.mxu0 0.0
    %2385 = vmatpush1.msra.mxu0 0.0
    %2386 = vmatprep.subr.mxu0 0.0
    %2387 = vmatpush1.msra.mxu0 0.0
    %2388 = vmatprep.subr.mxu0 0.0
    %2389 = vmatpush1.msra.mxu0 0.0
    %2390 = vmatprep.subr.mxu0 0.0
    %2391 = vmatpush1.msra.mxu0 0.0
    %2392 = vmatprep.subr.mxu0 0.0
    %2393 = vmatpush1.msra.mxu0 0.0
    %2394 = vmatprep.subr.mxu0 0.0
    %2395 = vmatpush1.msra.mxu0 0.0
    %2396 = vmatprep.subr.mxu0 0.0
    %2397 = vmatpush1.msra.mxu0 0.0
    %2398 = vmatprep.subr.mxu0 0.0
    %2399 = vmatpush1.msra.mxu0 0.0
    %2400 = vmatprep.subr.mxu0 0.0
    %2401 = vmatpush1.msra.mxu0 0.0
    %2402 = vmatprep.mubr.f32.mxu0 0.0
    %2403 = vmatmul.mubr.f32.gmra.mrb[0].mxu0 %v2226
    %v2404 = vpop.f32.mrb[0].mxu0
    %v2405 = vadd.f32 %v396, %v2404
    %v2406 = vpop.f32.mrb[0].mxu0
    %v2407 = vadd.f32 %v400, %v2406
    %2408 = vdwg.mxu0
    %v2409 = vmul.f32 %v2334, 0.5
    %v2410 = vmul.f32 %v2336, 0.5
    %v2411 = vtanh.pop %v2409
    %v2412 = vtanh.pop %v2410
    %v2413 = vmul.f32 %v2411, 0.5
    %v2414 = vmul.f32 %v2412, 0.5
    %v2415 = vadd.f32 %v2413, 0.5
    %v2416 = vadd.f32 %v2414, 0.5
    %v2417 = vtanh.pop %v2405
    %v2418 = vmul.f32 %v2407, 0.5
    %v2419 = vtanh.pop %v2418
    %v2420 = vmul.f32 %v2419, 0.5
    %v2421 = vadd.f32 %v2420, 0.5
    %v2422 = vmul.f32 %v2416, %v2227
    %v2423 = vmul.f32 %v2415, %v2417
    %v2424 = vadd.f32 %v2422, %v2423
    %v2425 = vtanh.pop %v2424
    %v2426 = vmul.f32 %v2421, %v2425
    %vm2427 = vcmp.ge.s32.totalorder %v383, 64
    %vm2428 = vmand %vm2427, %vm2222
    %v2429 = vsel %vm2428, 1, 0
    %vm2430 = vcmp.eq.s32.totalorder %v2429, 1
    %v2431 = vsel %vm2430, %v2426, %v2226
    %v2432 = vsel %vm2430, %v2424, %v2227
    %v2435 = vunpack.c.l.s4 1966171168
    %v2436 = vunpack.c.0.s8 %v2435
    %v2437 = vlaneseq
    %v2438 = vshrl.u32 %v2437, 7
    %v2439 = vsub.s32 %v2436, %v2438
    %v2440 = vrot.slane %v2426, %v2439
    %v2441 = vcombine.high %v2440, %v2440
    %v2443 = vunpack.c.l.s4 1966171168
    %v2444 = vunpack.c.0.s8 %v2443
    %v2445 = vlaneseq
    %v2446 = vshrl.u32 %v2445, 7
    %v2447 = vsub.s32 %v2444, %v2446
    %v2448 = vrot.slane %v2440, %v2447
    %v2450 = vunpack.c.l.s4 1966171168
    %v2451 = vunpack.c.0.s8 %v2450
    %v2452 = vlaneseq
    %v2453 = vshrl.u32 %v2452, 7
    %v2454 = vsub.s32 %v2451, %v2453
    %v2455 = vrot.slane %v2441, %v2454
    %v2456 = vlaneseq
    %v2457 = vshrl.u32 %v2456, 7
    %v2458 = vsub.s32 0, %v2457
    %v2459 = vrot.slane %v2448, %v2458
    %v2460 = vlaneseq
    %v2461 = vshrl.u32 %v2460, 7
    %v2462 = vsub.s32 0, %v2461
    %v2463 = vrot.slane %v2455, %v2462
    %2464 = vrot.lane.b32.xlu0 %v2459, 32
    %v2465 = vpop.permute.xlu0 %2464
    %2466 = vrot.lane.b32.xlu0 %v2463, 32
    %v2467 = vpop.permute.xlu0 %2466
    %2470 = vst.msk [vmem:[#allocation2 + $0x6] sm:$0x1] %vm1182, %v2465
    %2471 = vst.msk [vmem:[#allocation2 + $0xe] sm:$0x1] %vm1182, %v2467
    %2472 = vmatprep.subr.mxu0 %v318
    %2473 = vmatpush1.msra.mxu0 %v317
    %2474 = vmatprep.subr.mxu0 %v322
    %2475 = vmatpush1.msra.mxu0 %v321
    %2476 = vmatprep.subr.mxu0 %v326
    %2477 = vmatpush1.msra.mxu0 %v325
    %2478 = vmatprep.subr.mxu0 %v330
    %2479 = vmatpush1.msra.mxu0 %v329
    %2480 = vmatprep.subr.mxu0 %v334
    %2481 = vmatpush1.msra.mxu0 %v333
    %2482 = vmatprep.subr.mxu0 %v338
    %2483 = vmatpush1.msra.mxu0 %v337
    %2484 = vmatprep.subr.mxu0 %v342
    %2485 = vmatpush1.msra.mxu0 %v341
    %2486 = vmatprep.subr.mxu0 %v346
    %2487 = vmatpush1.msra.mxu0 %v345
    %2488 = vmatprep.subr.mxu0 %v350
    %2489 = vmatpush1.msra.mxu0 %v349
    %2490 = vmatprep.subr.mxu0 %v354
    %2491 = vmatpush1.msra.mxu0 %v353
    %2492 = vmatprep.subr.mxu0 %v358
    %2493 = vmatpush1.msra.mxu0 %v357
    %2494 = vmatprep.subr.mxu0 %v362
    %2495 = vmatpush1.msra.mxu0 %v361
    %2496 = vmatprep.subr.mxu0 %v366
    %2497 = vmatpush1.msra.mxu0 %v365
    %2498 = vmatprep.subr.mxu0 %v370
    %2499 = vmatpush1.msra.mxu0 %v369
    %2500 = vmatprep.subr.mxu0 %v374
    %2501 = vmatpush1.msra.mxu0 %v373
    %2502 = vmatprep.subr.mxu0 %v378
    %2503 = vmatpush1.msra.mxu0 %v377
    %2504 = vmatprep.subr.mxu0 0.0
    %2505 = vmatpush1.msra.mxu0 0.0
    %2506 = vmatprep.subr.mxu0 0.0
    %2507 = vmatpush1.msra.mxu0 0.0
    %2508 = vmatprep.subr.mxu0 0.0
    %2509 = vmatpush1.msra.mxu0 0.0
    %2510 = vmatprep.subr.mxu0 0.0
    %2511 = vmatpush1.msra.mxu0 0.0
    %2512 = vmatprep.subr.mxu0 0.0
    %2513 = vmatpush1.msra.mxu0 0.0
    %2514 = vmatprep.subr.mxu0 0.0
    %2515 = vmatpush1.msra.mxu0 0.0
    %2516 = vmatprep.subr.mxu0 0.0
    %2517 = vmatpush1.msra.mxu0 0.0
    %2518 = vmatprep.subr.mxu0 0.0
    %2519 = vmatpush1.msra.mxu0 0.0
    %2520 = vmatprep.subr.mxu0 0.0
    %2521 = vmatpush1.msra.mxu0 0.0
    %2522 = vmatprep.subr.mxu0 0.0
    %2523 = vmatpush1.msra.mxu0 0.0
    %2524 = vmatprep.subr.mxu0 0.0
    %2525 = vmatpush1.msra.mxu0 0.0
    %2526 = vmatprep.subr.mxu0 0.0
    %2527 = vmatpush1.msra.mxu0 0.0
    %2528 = vmatprep.subr.mxu0 0.0
    %2529 = vmatpush1.msra.mxu0 0.0
    %2530 = vmatprep.subr.mxu0 0.0
    %2531 = vmatpush1.msra.mxu0 0.0
    %2532 = vmatprep.subr.mxu0 0.0
    %2533 = vmatpush1.msra.mxu0 0.0
    %2534 = vmatprep.subr.mxu0 0.0
    %2535 = vmatpush1.msra.mxu0 0.0
    %2536 = vmatprep.mubr.f32.mxu0 0.0
    %2537 = vmatmul.mubr.f32.gmra.mrb[0].mxu0 %v2431
    %v2538 = vpop.f32.mrb[0].mxu0
    %v2539 = vadd.f32 %v388, %v2538
    %v2540 = vpop.f32.mrb[0].mxu0
    %v2541 = vadd.f32 %v392, %v2540
    %2542 = vdwg.mxu0
    %2543 = vmatprep.subr.mxu0 %v320
    %2544 = vmatpush1.msra.mxu0 %v319
    %2545 = vmatprep.subr.mxu0 %v324
    %2546 = vmatpush1.msra.mxu0 %v323
    %2547 = vmatprep.subr.mxu0 %v328
    %2548 = vmatpush1.msra.mxu0 %v327
    %2549 = vmatprep.subr.mxu0 %v332
    %2550 = vmatpush1.msra.mxu0 %v331
    %2551 = vmatprep.subr.mxu0 %v336
    %2552 = vmatpush1.msra.mxu0 %v335
    %2553 = vmatprep.subr.mxu0 %v340
    %2554 = vmatpush1.msra.mxu0 %v339
    %2555 = vmatprep.subr.mxu0 %v344
    %2556 = vmatpush1.msra.mxu0 %v343
    %2557 = vmatprep.subr.mxu0 %v348
    %2558 = vmatpush1.msra.mxu0 %v347
    %2559 = vmatprep.subr.mxu0 %v352
    %2560 = vmatpush1.msra.mxu0 %v351
    %2561 = vmatprep.subr.mxu0 %v356
    %2562 = vmatpush1.msra.mxu0 %v355
    %2563 = vmatprep.subr.mxu0 %v360
    %2564 = vmatpush1.msra.mxu0 %v359
    %2565 = vmatprep.subr.mxu0 %v364
    %2566 = vmatpush1.msra.mxu0 %v363
    %2567 = vmatprep.subr.mxu0 %v368
    %2568 = vmatpush1.msra.mxu0 %v367
    %2569 = vmatprep.subr.mxu0 %v372
    %2570 = vmatpush1.msra.mxu0 %v371
    %2571 = vmatprep.subr.mxu0 %v376
    %2572 = vmatpush1.msra.mxu0 %v375
    %2573 = vmatprep.subr.mxu0 %v380
    %2574 = vmatpush1.msra.mxu0 %v379
    %2575 = vmatprep.subr.mxu0 0.0
    %2576 = vmatpush1.msra.mxu0 0.0
    %2577 = vmatprep.subr.mxu0 0.0
    %2578 = vmatpush1.msra.mxu0 0.0
    %2579 = vmatprep.subr.mxu0 0.0
    %2580 = vmatpush1.msra.mxu0 0.0
    %2581 = vmatprep.subr.mxu0 0.0
    %2582 = vmatpush1.msra.mxu0 0.0
    %2583 = vmatprep.subr.mxu0 0.0
    %2584 = vmatpush1.msra.mxu0 0.0
    %2585 = vmatprep.subr.mxu0 0.0
    %2586 = vmatpush1.msra.mxu0 0.0
    %2587 = vmatprep.subr.mxu0 0.0
    %2588 = vmatpush1.msra.mxu0 0.0
    %2589 = vmatprep.subr.mxu0 0.0
    %2590 = vmatpush1.msra.mxu0 0.0
    %2591 = vmatprep.subr.mxu0 0.0
    %2592 = vmatpush1.msra.mxu0 0.0
    %2593 = vmatprep.subr.mxu0 0.0
    %2594 = vmatpush1.msra.mxu0 0.0
    %2595 = vmatprep.subr.mxu0 0.0
    %2596 = vmatpush1.msra.mxu0 0.0
    %2597 = vmatprep.subr.mxu0 0.0
    %2598 = vmatpush1.msra.mxu0 0.0
    %2599 = vmatprep.subr.mxu0 0.0
    %2600 = vmatpush1.msra.mxu0 0.0
    %2601 = vmatprep.subr.mxu0 0.0
    %2602 = vmatpush1.msra.mxu0 0.0
    %2603 = vmatprep.subr.mxu0 0.0
    %2604 = vmatpush1.msra.mxu0 0.0
    %2605 = vmatprep.subr.mxu0 0.0
    %2606 = vmatpush1.msra.mxu0 0.0
    %2607 = vmatprep.mubr.f32.mxu0 0.0
    %2608 = vmatmul.mubr.f32.gmra.mrb[0].mxu0 %v2431
    %v2609 = vpop.f32.mrb[0].mxu0
    %v2610 = vadd.f32 %v396, %v2609
    %v2611 = vpop.f32.mrb[0].mxu0
    %v2612 = vadd.f32 %v400, %v2611
    %2613 = vdwg.mxu0
    %v2614 = vmul.f32 %v2539, 0.5
    %v2615 = vmul.f32 %v2541, 0.5
    %v2616 = vtanh.pop %v2614
    %v2617 = vtanh.pop %v2615
    %v2618 = vmul.f32 %v2616, 0.5
    %v2619 = vmul.f32 %v2617, 0.5
    %v2620 = vadd.f32 %v2618, 0.5
    %v2621 = vadd.f32 %v2619, 0.5
    %v2622 = vtanh.pop %v2610
    %v2623 = vmul.f32 %v2612, 0.5
    %v2624 = vtanh.pop %v2623
    %v2625 = vmul.f32 %v2624, 0.5
    %v2626 = vadd.f32 %v2625, 0.5
    %v2627 = vmul.f32 %v2621, %v2432
    %v2628 = vmul.f32 %v2620, %v2622
    %v2629 = vadd.f32 %v2627, %v2628
    %v2630 = vtanh.pop %v2629
    %v2631 = vmul.f32 %v2626, %v2630
    %v2634 = vunpack.c.l.s4 1966171168
    %v2635 = vunpack.c.0.s8 %v2634
    %v2636 = vlaneseq
    %v2637 = vshrl.u32 %v2636, 7
    %v2638 = vsub.s32 %v2635, %v2637
    %v2639 = vrot.slane %v2631, %v2638
    %v2640 = vcombine.high %v2639, %v2639
    %v2642 = vunpack.c.l.s4 1966171168
    %v2643 = vunpack.c.0.s8 %v2642
    %v2644 = vlaneseq
    %v2645 = vshrl.u32 %v2644, 7
    %v2646 = vsub.s32 %v2643, %v2645
    %v2647 = vrot.slane %v2639, %v2646
    %v2649 = vunpack.c.l.s4 1966171168
    %v2650 = vunpack.c.0.s8 %v2649
    %v2651 = vlaneseq
    %v2652 = vshrl.u32 %v2651, 7
    %v2653 = vsub.s32 %v2650, %v2652
    %v2654 = vrot.slane %v2640, %v2653
    %v2655 = vlaneseq
    %v2656 = vshrl.u32 %v2655, 7
    %v2657 = vsub.s32 0, %v2656
    %v2658 = vrot.slane %v2647, %v2657
    %v2659 = vlaneseq
    %v2660 = vshrl.u32 %v2659, 7
    %v2661 = vsub.s32 0, %v2660
    %v2662 = vrot.slane %v2654, %v2661
    %2663 = vrot.lane.b32.xlu0 %v2658, 32
    %v2664 = vpop.permute.xlu0 %2663
    %2665 = vrot.lane.b32.xlu0 %v2662, 32
    %v2666 = vpop.permute.xlu0 %2665
    %2669 = vst.msk [vmem:[#allocation2 + $0x7] sm:$0x1] %vm1182, %v2664
    %2670 = vst.msk [vmem:[#allocation2 + $0xf] sm:$0x1] %vm1182, %v2666
    %v2671 = vld [vmem:[#allocation2] sm:$0xff]
    %v2672 = vld [vmem:[#allocation2 + $0x8] sm:$0xff]
    %vm2673 = vcmask 261120
    %v2674 = vsel %vm2673, %v2671, 0.0
    %2675 = vadd.xlane.f32.xlu0 %v2674
    %v2676 = vpop.xlane.xlu0 %2675
    %v2677 = vsel %vm2673, %v2672, 0.0
    %2678 = vadd.xlane.f32.xlu0 %v2677
    %v2679 = vpop.xlane.xlu0 %2678
    %v2680 = vrcp.pop 32.0
    %v2681 = vmul.f32 %v2676, %v2680
    %v2682 = vmul.f32 %v2679, %v2680
    %v2683 = vsub.f32 %v2671, %v2681
    %v2684 = vsub.f32 %v2672, %v2682
    %v2685 = vmul.f32 %v2683, %v2683
    %v2686 = vmul.f32 %v2684, %v2684
    %v2687 = vsel %vm2673, %v2685, 0.0
    %2688 = vadd.xlane.f32.xlu0 %v2687
    %v2689 = vpop.xlane.xlu0 %2688
    %v2690 = vsel %vm2673, %v2686, 0.0
    %2691 = vadd.xlane.f32.xlu0 %v2690
    %v2692 = vpop.xlane.xlu0 %2691
    %v2693 = vmul.f32 %v2689, %v2680
    %v2694 = vmul.f32 %v2692, %v2680
    %v2695 = vadd.f32 %v2693, 1e-05
    %v2696 = vadd.f32 %v2694, 1e-05
    %v2697 = vrsqrt.pop %v2695
    %v2698 = vrsqrt.pop %v2696
    %v2699 = vmul.f32 %v2683, %v2697
    %v2700 = vmul.f32 %v2684, %v2698
    %v2701 = vld [vmem:[%s4] sm:$0x1]
    %v2703 = vlaneseq
    %v2704 = vshrl.u32 %v2703, 7
    %v2705 = vsub.s32 0, %v2704
    %v2706 = vrot.slane %v2701, %v2705
    %v2708 = vmul.f32 %v2699, %v2706
    %v2709 = vmul.f32 %v2700, %v2706
    %v2710 = vld [vmem:[#allocation9] sm:$0x1]
    %v2712 = vlaneseq
    %v2713 = vshrl.u32 %v2712, 7
    %v2714 = vsub.s32 0, %v2713
    %v2715 = vrot.slane %v2710, %v2714
    %v2717 = vadd.f32 %v2708, %v2715
    %v2718 = vadd.f32 %v2709, %v2715
    %v2719 = vld [vmem:[#allocation11] sm:$0xff]
    %v2720 = vld [vmem:[#allocation11 + $0x8] sm:$0xff]
    %v2721 = vld [vmem:[#allocation11 + $0x10] sm:$0xff]
    %v2722 = vld [vmem:[#allocation11 + $0x18] sm:$0xff]
    %v2723 = vld [vmem:[#allocation12] sm:$0x1]
    %v2725 = vlaneseq
    %v2726 = vshrl.u32 %v2725, 7
    %v2727 = vsub.s32 0, %v2726
    %v2728 = vrot.slane %v2723, %v2727
    %v2731 = vsel %vm2673, %v2717, 0
    %v2734 = vsel %vm2673, %v2718, 0
    %2736 = vmatprep.subr.mxu0 0.0
    %2737 = vmatpush1.msra.mxu0 %v2719
    %2738 = vmatprep.subr.mxu0 0.0
    %2739 = vmatpush1.msra.mxu0 %v2720
    %2740 = vmatprep.subr.mxu0 0.0
    %2741 = vmatpush1.msra.mxu0 %v2721
    %2742 = vmatprep.subr.mxu0 0.0
    %2743 = vmatpush1.msra.mxu0 %v2722
    %2744 = vmatprep.subr.mxu0 0.0
    %2745 = vmatpush1.msra.mxu0 0.0
    %2746 = vmatprep.subr.mxu0 0.0
    %2747 = vmatpush1.msra.mxu0 0.0
    %2748 = vmatprep.subr.mxu0 0.0
    %2749 = vmatpush1.msra.mxu0 0.0
    %2750 = vmatprep.subr.mxu0 0.0
    %2751 = vmatpush1.msra.mxu0 0.0
    %2752 = vmatprep.subr.mxu0 0.0
    %2753 = vmatpush1.msra.mxu0 0.0
    %2754 = vmatprep.subr.mxu0 0.0
    %2755 = vmatpush1.msra.mxu0 0.0
    %2756 = vmatprep.subr.mxu0 0.0
    %2757 = vmatpush1.msra.mxu0 0.0
    %2758 = vmatprep.subr.mxu0 0.0
    %2759 = vmatpush1.msra.mxu0 0.0
    %2760 = vmatprep.subr.mxu0 0.0
    %2761 = vmatpush1.msra.mxu0 0.0
    %2762 = vmatprep.subr.mxu0 0.0
    %2763 = vmatpush1.msra.mxu0 0.0
    %2764 = vmatprep.subr.mxu0 0.0
    %2765 = vmatpush1.msra.mxu0 0.0
    %2766 = vmatprep.subr.mxu0 0.0
    %2767 = vmatpush1.msra.mxu0 0.0
    %2768 = vmatprep.subr.mxu0 0.0
    %2769 = vmatpush1.msra.mxu0 0.0
    %2770 = vmatprep.subr.mxu0 0.0
    %2771 = vmatpush1.msra.mxu0 0.0
    %2772 = vmatprep.subr.mxu0 0.0
    %2773 = vmatpush1.msra.mxu0 0.0
    %2774 = vmatprep.subr.mxu0 0.0
    %2775 = vmatpush1.msra.mxu0 0.0
    %2776 = vmatprep.subr.mxu0 0.0
    %2777 = vmatpush1.msra.mxu0 0.0
    %2778 = vmatprep.subr.mxu0 0.0
    %2779 = vmatpush1.msra.mxu0 0.0
    %2780 = vmatprep.subr.mxu0 0.0
    %2781 = vmatpush1.msra.mxu0 0.0
    %2782 = vmatprep.subr.mxu0 0.0
    %2783 = vmatpush1.msra.mxu0 0.0
    %2784 = vmatprep.subr.mxu0 0.0
    %2785 = vmatpush1.msra.mxu0 0.0
    %2786 = vmatprep.subr.mxu0 0.0
    %2787 = vmatpush1.msra.mxu0 0.0
    %2788 = vmatprep.subr.mxu0 0.0
    %2789 = vmatpush1.msra.mxu0 0.0
    %2790 = vmatprep.subr.mxu0 0.0
    %2791 = vmatpush1.msra.mxu0 0.0
    %2792 = vmatprep.subr.mxu0 0.0
    %2793 = vmatpush1.msra.mxu0 0.0
    %2794 = vmatprep.subr.mxu0 0.0
    %2795 = vmatpush1.msra.mxu0 0.0
    %2796 = vmatprep.subr.mxu0 0.0
    %2797 = vmatpush1.msra.mxu0 0.0
    %2798 = vmatprep.subr.mxu0 0.0
    %2799 = vmatpush1.msra.mxu0 0.0
    %2800 = vmatprep.mubr.f32.mxu0 0.0
    %2801 = vmatmul.mubr.f32.gmra.mrb[0].mxu0 %v2731
    %v2802 = vpop.f32.mrb[0].mxu0
    %v2803 = vadd.f32 %v2728, %v2802
    %v2804 = vpop.f32.mrb[0].mxu0
    %2805 = vmatprep.mubr.f32.mxu0 0.0
    %2806 = vmatmul.mubr.f32.gmra.mrb[0].mxu0 %v2734
    %v2807 = vpop.f32.mrb[0].mxu0
    %v2808 = vadd.f32 %v2728, %v2807
    %v2809 = vpop.f32.mrb[0].mxu0
    %2810 = vdwg.mxu0
    %2812 = vrot.lane.b32.xlu0 %v2803, 96
    %v2813 = vpop.permute.xlu0 %2812
    %vm2814 = vcmask 64512
    %v2815 = vsel %vm2814, %v2803, 0
    %v2817 = vsel %vm2814, %v2813, 0
    %2819 = vmatprep.subr.mxu0 0.0
    %2820 = vmatpush1.xpose.msra.mxu0 %v2817
    %2821 = vmatprep.subr.mxu0 0.0
    %2822 = vmatpush1.xpose.msra.mxu0 0.0
    %2823 = vmatprep.subr.mxu0 0.0
    %2824 = vmatpush1.xpose.msra.mxu0 0.0
    %2825 = vmatprep.subr.mxu0 0.0
    %2826 = vmatpush1.xpose.msra.mxu0 0.0
    %2827 = vmatprep.subr.mxu0 0.0
    %2828 = vmatpush1.xpose.msra.mxu0 0.0
    %2829 = vmatprep.subr.mxu0 0.0
    %2830 = vmatpush1.xpose.msra.mxu0 0.0
    %2831 = vmatprep.subr.mxu0 0.0
    %2832 = vmatpush1.xpose.msra.mxu0 0.0
    %2833 = vmatprep.subr.mxu0 0.0
    %2834 = vmatpush1.xpose.msra.mxu0 0.0
    %2835 = vmatprep.subr.mxu0 0.0
    %2836 = vmatpush1.xpose.msra.mxu0 0.0
    %2837 = vmatprep.subr.mxu0 0.0
    %2838 = vmatpush1.xpose.msra.mxu0 0.0
    %2839 = vmatprep.subr.mxu0 0.0
    %2840 = vmatpush1.xpose.msra.mxu0 0.0
    %2841 = vmatprep.subr.mxu0 0.0
    %2842 = vmatpush1.xpose.msra.mxu0 0.0
    %2843 = vmatprep.subr.mxu0 0.0
    %2844 = vmatpush1.xpose.msra.mxu0 0.0
    %2845 = vmatprep.subr.mxu0 0.0
    %2846 = vmatpush1.xpose.msra.mxu0 0.0
    %2847 = vmatprep.subr.mxu0 0.0
    %2848 = vmatpush1.xpose.msra.mxu0 0.0
    %2849 = vmatprep.subr.mxu0 0.0
    %2850 = vmatpush1.xpose.msra.mxu0 0.0
    %2851 = vmatprep.subr.mxu0 0.0
    %2852 = vmatpush1.xpose.msra.mxu0 0.0
    %2853 = vmatprep.subr.mxu0 0.0
    %2854 = vmatpush1.xpose.msra.mxu0 0.0
    %2855 = vmatprep.subr.mxu0 0.0
    %2856 = vmatpush1.xpose.msra.mxu0 0.0
    %2857 = vmatprep.subr.mxu0 0.0
    %2858 = vmatpush1.xpose.msra.mxu0 0.0
    %2859 = vmatprep.subr.mxu0 0.0
    %2860 = vmatpush1.xpose.msra.mxu0 0.0
    %2861 = vmatprep.subr.mxu0 0.0
    %2862 = vmatpush1.xpose.msra.mxu0 0.0
    %2863 = vmatprep.subr.mxu0 0.0
    %2864 = vmatpush1.xpose.msra.mxu0 0.0
    %2865 = vmatprep.subr.mxu0 0.0
    %2866 = vmatpush1.xpose.msra.mxu0 0.0
    %2867 = vmatprep.subr.mxu0 0.0
    %2868 = vmatpush1.xpose.msra.mxu0 0.0
    %2869 = vmatprep.subr.mxu0 0.0
    %2870 = vmatpush1.xpose.msra.mxu0 0.0
    %2871 = vmatprep.subr.mxu0 0.0
    %2872 = vmatpush1.xpose.msra.mxu0 0.0
    %2873 = vmatprep.subr.mxu0 0.0
    %2874 = vmatpush1.xpose.msra.mxu0 0.0
    %2875 = vmatprep.subr.mxu0 0.0
    %2876 = vmatpush1.xpose.msra.mxu0 0.0
    %2877 = vmatprep.subr.mxu0 0.0
    %2878 = vmatpush1.xpose.msra.mxu0 0.0
    %2879 = vmatprep.subr.mxu0 0.0
    %2880 = vmatpush1.xpose.msra.mxu0 0.0
    %2881 = vmatprep.subr.mxu0 0.0
    %2882 = vmatpush1.xpose.msra.mxu0 0.0
    %2883 = vmatprep.mubr.f32.mxu0 0.0
    %2884 = vmatmul.mubr.f32.gmra.mrb[0].mxu0 %v2815
    %v2885 = vpop.f32.mrb[0].mxu0
    %v2886 = vadd.f32 0.0, %v2885
    %v2887 = vpop.f32.mrb[0].mxu0
    %2888 = vdwg.mxu0
    %2890 = vrot.lane.b32.xlu0 %v2808, 96
    %v2891 = vpop.permute.xlu0 %2890
    %v2892 = vsel %vm2814, %v2808, 0
    %v2894 = vsel %vm2814, %v2891, 0
    %2896 = vmatprep.subr.mxu0 0.0
    %2897 = vmatpush1.xpose.msra.mxu0 %v2894
    %2898 = vmatprep.subr.mxu0 0.0
    %2899 = vmatpush1.xpose.msra.mxu0 0.0
    %2900 = vmatprep.subr.mxu0 0.0
    %2901 = vmatpush1.xpose.msra.mxu0 0.0
    %2902 = vmatprep.subr.mxu0 0.0
    %2903 = vmatpush1.xpose.msra.mxu0 0.0
    %2904 = vmatprep.subr.mxu0 0.0
    %2905 = vmatpush1.xpose.msra.mxu0 0.0
    %2906 = vmatprep.subr.mxu0 0.0
    %2907 = vmatpush1.xpose.msra.mxu0 0.0
    %2908 = vmatprep.subr.mxu0 0.0
    %2909 = vmatpush1.xpose.msra.mxu0 0.0
    %2910 = vmatprep.subr.mxu0 0.0
    %2911 = vmatpush1.xpose.msra.mxu0 0.0
    %2912 = vmatprep.subr.mxu0 0.0
    %2913 = vmatpush1.xpose.msra.mxu0 0.0
    %2914 = vmatprep.subr.mxu0 0.0
    %2915 = vmatpush1.xpose.msra.mxu0 0.0
    %2916 = vmatprep.subr.mxu0 0.0
    %2917 = vmatpush1.xpose.msra.mxu0 0.0
    %2918 = vmatprep.subr.mxu0 0.0
    %2919 = vmatpush1.xpose.msra.mxu0 0.0
    %2920 = vmatprep.subr.mxu0 0.0
    %2921 = vmatpush1.xpose.msra.mxu0 0.0
    %2922 = vmatprep.subr.mxu0 0.0
    %2923 = vmatpush1.xpose.msra.mxu0 0.0
    %2924 = vmatprep.subr.mxu0 0.0
    %2925 = vmatpush1.xpose.msra.mxu0 0.0
    %2926 = vmatprep.subr.mxu0 0.0
    %2927 = vmatpush1.xpose.msra.mxu0 0.0
    %2928 = vmatprep.subr.mxu0 0.0
    %2929 = vmatpush1.xpose.msra.mxu0 0.0
    %2930 = vmatprep.subr.mxu0 0.0
    %2931 = vmatpush1.xpose.msra.mxu0 0.0
    %2932 = vmatprep.subr.mxu0 0.0
    %2933 = vmatpush1.xpose.msra.mxu0 0.0
    %2934 = vmatprep.subr.mxu0 0.0
    %2935 = vmatpush1.xpose.msra.mxu0 0.0
    %2936 = vmatprep.subr.mxu0 0.0
    %2937 = vmatpush1.xpose.msra.mxu0 0.0
    %2938 = vmatprep.subr.mxu0 0.0
    %2939 = vmatpush1.xpose.msra.mxu0 0.0
    %2940 = vmatprep.subr.mxu0 0.0
    %2941 = vmatpush1.xpose.msra.mxu0 0.0
    %2942 = vmatprep.subr.mxu0 0.0
    %2943 = vmatpush1.xpose.msra.mxu0 0.0
    %2944 = vmatprep.subr.mxu0 0.0
    %2945 = vmatpush1.xpose.msra.mxu0 0.0
    %2946 = vmatprep.subr.mxu0 0.0
    %2947 = vmatpush1.xpose.msra.mxu0 0.0
    %2948 = vmatprep.subr.mxu0 0.0
    %2949 = vmatpush1.xpose.msra.mxu0 0.0
    %2950 = vmatprep.subr.mxu0 0.0
    %2951 = vmatpush1.xpose.msra.mxu0 0.0
    %2952 = vmatprep.subr.mxu0 0.0
    %2953 = vmatpush1.xpose.msra.mxu0 0.0
    %2954 = vmatprep.subr.mxu0 0.0
    %2955 = vmatpush1.xpose.msra.mxu0 0.0
    %2956 = vmatprep.subr.mxu0 0.0
    %2957 = vmatpush1.xpose.msra.mxu0 0.0
    %2958 = vmatprep.subr.mxu0 0.0
    %2959 = vmatpush1.xpose.msra.mxu0 0.0
    %2960 = vmatprep.mubr.f32.mxu0 0.0
    %2961 = vmatmul.mubr.f32.gmra.mrb[0].mxu0 %v2892
    %v2962 = vpop.f32.mrb[0].mxu0
    %v2963 = vadd.f32 0.0, %v2962
    %v2964 = vpop.f32.mrb[0].mxu0
    %2965 = vdwg.mxu0
    %v2966 = vmul.f32 %v2886, 0.35355338
    %v2967 = vmul.f32 %v2963, 0.35355338
    %v2968 = vsel %vm2814, %v2966, -inf
    %2969 = vmax.xlane.f32.xlu0 %v2968
    %v2970 = vpop.xlane.xlu0 %2969
    %v2971 = vsel %vm2814, %v2967, -inf
    %2972 = vmax.xlane.f32.xlu0 %v2971
    %v2973 = vpop.xlane.xlu0 %2972
    %v2974 = vsub.f32 %v2966, %v2970
    %v2975 = vsub.f32 %v2967, %v2973
    %v2976 = vmul.f32 %v2974, 1.442695
    %v2977 = vpow.pop %v2976
    %v2978 = vmul.f32 %v2975, 1.442695
    %v2979 = vpow.pop %v2978
    %v2980 = vsel %vm2814, %v2977, 0.0
    %2981 = vadd.xlane.f32.xlu0 %v2980
    %v2982 = vpop.xlane.xlu0 %2981
    %v2983 = vsel %vm2814, %v2979, 0.0
    %2984 = vadd.xlane.f32.xlu0 %v2983
    %v2985 = vpop.xlane.xlu0 %2984
    %v2986 = vrcp.pop %v2982
    %v2987 = vmul.f32 %v2977, %v2986
    %v2988 = vrcp.pop %v2985
    %v2989 = vmul.f32 %v2979, %v2988
    %2990 = vrot.lane.b32.xlu0 %v2803, 64
    %v2991 = vpop.permute.xlu0 %2990
    %v2994 = vsel %vm2814, %v2987, 0
    %2996 = vmatprep.subr.mxu0 0.0
    %2997 = vmatpush1.msra.mxu0 %v2991
    %2998 = vmatprep.subr.mxu0 0.0
    %2999 = vmatpush1.msra.mxu0 0.0
    %3000 = vmatprep.subr.mxu0 0.0
    %3001 = vmatpush1.msra.mxu0 0.0
    %3002 = vmatprep.subr.mxu0 0.0
    %3003 = vmatpush1.msra.mxu0 0.0
    %3004 = vmatprep.subr.mxu0 0.0
    %3005 = vmatpush1.msra.mxu0 0.0
    %3006 = vmatprep.subr.mxu0 0.0
    %3007 = vmatpush1.msra.mxu0 0.0
    %3008 = vmatprep.subr.mxu0 0.0
    %3009 = vmatpush1.msra.mxu0 0.0
    %3010 = vmatprep.subr.mxu0 0.0
    %3011 = vmatpush1.msra.mxu0 0.0
    %3012 = vmatprep.subr.mxu0 0.0
    %3013 = vmatpush1.msra.mxu0 0.0
    %3014 = vmatprep.subr.mxu0 0.0
    %3015 = vmatpush1.msra.mxu0 0.0
    %3016 = vmatprep.subr.mxu0 0.0
    %3017 = vmatpush1.msra.mxu0 0.0
    %3018 = vmatprep.subr.mxu0 0.0
    %3019 = vmatpush1.msra.mxu0 0.0
    %3020 = vmatprep.subr.mxu0 0.0
    %3021 = vmatpush1.msra.mxu0 0.0
    %3022 = vmatprep.subr.mxu0 0.0
    %3023 = vmatpush1.msra.mxu0 0.0
    %3024 = vmatprep.subr.mxu0 0.0
    %3025 = vmatpush1.msra.mxu0 0.0
    %3026 = vmatprep.subr.mxu0 0.0
    %3027 = vmatpush1.msra.mxu0 0.0
    %3028 = vmatprep.subr.mxu0 0.0
    %3029 = vmatpush1.msra.mxu0 0.0
    %3030 = vmatprep.subr.mxu0 0.0
    %3031 = vmatpush1.msra.mxu0 0.0
    %3032 = vmatprep.subr.mxu0 0.0
    %3033 = vmatpush1.msra.mxu0 0.0
    %3034 = vmatprep.subr.mxu0 0.0
    %3035 = vmatpush1.msra.mxu0 0.0
    %3036 = vmatprep.subr.mxu0 0.0
    %3037 = vmatpush1.msra.mxu0 0.0
    %3038 = vmatprep.subr.mxu0 0.0
    %3039 = vmatpush1.msra.mxu0 0.0
    %3040 = vmatprep.subr.mxu0 0.0
    %3041 = vmatpush1.msra.mxu0 0.0
    %3042 = vmatprep.subr.mxu0 0.0
    %3043 = vmatpush1.msra.mxu0 0.0
    %3044 = vmatprep.subr.mxu0 0.0
    %3045 = vmatpush1.msra.mxu0 0.0
    %3046 = vmatprep.subr.mxu0 0.0
    %3047 = vmatpush1.msra.mxu0 0.0
    %3048 = vmatprep.subr.mxu0 0.0
    %3049 = vmatpush1.msra.mxu0 0.0
    %3050 = vmatprep.subr.mxu0 0.0
    %3051 = vmatpush1.msra.mxu0 0.0
    %3052 = vmatprep.subr.mxu0 0.0
    %3053 = vmatpush1.msra.mxu0 0.0
    %3054 = vmatprep.subr.mxu0 0.0
    %3055 = vmatpush1.msra.mxu0 0.0
    %3056 = vmatprep.subr.mxu0 0.0
    %3057 = vmatpush1.msra.mxu0 0.0
    %3058 = vmatprep.subr.mxu0 0.0
    %3059 = vmatpush1.msra.mxu0 0.0
    %3060 = vmatprep.mubr.f32.mxu0 0.0
    %3061 = vmatmul.mubr.f32.gmra.mrb[0].mxu0 %v2994
    %v3062 = vpop.f32.mrb[0].mxu0
    %v3063 = vadd.f32 0.0, %v3062
    %v3064 = vpop.f32.mrb[0].mxu0
    %3065 = vdwg.mxu0
    %3066 = vrot.lane.b32.xlu0 %v2808, 64
    %v3067 = vpop.permute.xlu0 %3066
    %v3070 = vsel %vm2814, %v2989, 0
    %3072 = vmatprep.subr.mxu0 0.0
    %3073 = vmatpush1.msra.mxu0 %v3067
    %3074 = vmatprep.subr.mxu0 0.0
    %3075 = vmatpush1.msra.mxu0 0.0
    %3076 = vmatprep.subr.mxu0 0.0
    %3077 = vmatpush1.msra.mxu0 0.0
    %3078 = vmatprep.subr.mxu0 0.0
    %3079 = vmatpush1.msra.mxu0 0.0
    %3080 = vmatprep.subr.mxu0 0.0
    %3081 = vmatpush1.msra.mxu0 0.0
    %3082 = vmatprep.subr.mxu0 0.0
    %3083 = vmatpush1.msra.mxu0 0.0
    %3084 = vmatprep.subr.mxu0 0.0
    %3085 = vmatpush1.msra.mxu0 0.0
    %3086 = vmatprep.subr.mxu0 0.0
    %3087 = vmatpush1.msra.mxu0 0.0
    %3088 = vmatprep.subr.mxu0 0.0
    %3089 = vmatpush1.msra.mxu0 0.0
    %3090 = vmatprep.subr.mxu0 0.0
    %3091 = vmatpush1.msra.mxu0 0.0
    %3092 = vmatprep.subr.mxu0 0.0
    %3093 = vmatpush1.msra.mxu0 0.0
    %3094 = vmatprep.subr.mxu0 0.0
    %3095 = vmatpush1.msra.mxu0 0.0
    %3096 = vmatprep.subr.mxu0 0.0
    %3097 = vmatpush1.msra.mxu0 0.0
    %3098 = vmatprep.subr.mxu0 0.0
    %3099 = vmatpush1.msra.mxu0 0.0
    %3100 = vmatprep.subr.mxu0 0.0
    %3101 = vmatpush1.msra.mxu0 0.0
    %3102 = vmatprep.subr.mxu0 0.0
    %3103 = vmatpush1.msra.mxu0 0.0
    %3104 = vmatprep.subr.mxu0 0.0
    %3105 = vmatpush1.msra.mxu0 0.0
    %3106 = vmatprep.subr.mxu0 0.0
    %3107 = vmatpush1.msra.mxu0 0.0
    %3108 = vmatprep.subr.mxu0 0.0
    %3109 = vmatpush1.msra.mxu0 0.0
    %3110 = vmatprep.subr.mxu0 0.0
    %3111 = vmatpush1.msra.mxu0 0.0
    %3112 = vmatprep.subr.mxu0 0.0
    %3113 = vmatpush1.msra.mxu0 0.0
    %3114 = vmatprep.subr.mxu0 0.0
    %3115 = vmatpush1.msra.mxu0 0.0
    %3116 = vmatprep.subr.mxu0 0.0
    %3117 = vmatpush1.msra.mxu0 0.0
    %3118 = vmatprep.subr.mxu0 0.0
    %3119 = vmatpush1.msra.mxu0 0.0
    %3120 = vmatprep.subr.mxu0 0.0
    %3121 = vmatpush1.msra.mxu0 0.0
    %3122 = vmatprep.subr.mxu0 0.0
    %3123 = vmatpush1.msra.mxu0 0.0
    %3124 = vmatprep.subr.mxu0 0.0
    %3125 = vmatpush1.msra.mxu0 0.0
    %3126 = vmatprep.subr.mxu0 0.0
    %3127 = vmatpush1.msra.mxu0 0.0
    %3128 = vmatprep.subr.mxu0 0.0
    %3129 = vmatpush1.msra.mxu0 0.0
    %3130 = vmatprep.subr.mxu0 0.0
    %3131 = vmatpush1.msra.mxu0 0.0
    %3132 = vmatprep.subr.mxu0 0.0
    %3133 = vmatpush1.msra.mxu0 0.0
    %3134 = vmatprep.subr.mxu0 0.0
    %3135 = vmatpush1.msra.mxu0 0.0
    %3136 = vmatprep.mubr.f32.mxu0 0.0
    %3137 = vmatmul.mubr.f32.gmra.mrb[0].mxu0 %v3070
    %v3138 = vpop.f32.mrb[0].mxu0
    %v3139 = vadd.f32 0.0, %v3138
    %v3140 = vpop.f32.mrb[0].mxu0
    %3141 = vdwg.mxu0
    %3142 = vrot.lane.b32.xlu0 %v2803, 120
    %v3143 = vpop.permute.xlu0 %3142
    %3144 = vrot.lane.b32.xlu0 %v2803, 88
    %v3145 = vpop.permute.xlu0 %3144
    %v3146 = vsel %vm2814, %v3143, 0
    %v3148 = vsel %vm2814, %v3145, 0
    %3150 = vmatprep.subr.mxu0 0.0
    %3151 = vmatpush1.xpose.msra.mxu0 %v3148
    %3152 = vmatprep.subr.mxu0 0.0
    %3153 = vmatpush1.xpose.msra.mxu0 0.0
    %3154 = vmatprep.subr.mxu0 0.0
    %3155 = vmatpush1.xpose.msra.mxu0 0.0
    %3156 = vmatprep.subr.mxu0 0.0
    %3157 = vmatpush1.xpose.msra.mxu0 0.0
    %3158 = vmatprep.subr.mxu0 0.0
    %3159 = vmatpush1.xpose.msra.mxu0 0.0
    %3160 = vmatprep.subr.mxu0 0.0
    %3161 = vmatpush1.xpose.msra.mxu0 0.0
    %3162 = vmatprep.subr.mxu0 0.0
    %3163 = vmatpush1.xpose.msra.mxu0 0.0
    %3164 = vmatprep.subr.mxu0 0.0
    %3165 = vmatpush1.xpose.msra.mxu0 0.0
    %3166 = vmatprep.subr.mxu0 0.0
    %3167 = vmatpush1.xpose.msra.mxu0 0.0
    %3168 = vmatprep.subr.mxu0 0.0
    %3169 = vmatpush1.xpose.msra.mxu0 0.0
    %3170 = vmatprep.subr.mxu0 0.0
    %3171 = vmatpush1.xpose.msra.mxu0 0.0
    %3172 = vmatprep.subr.mxu0 0.0
    %3173 = vmatpush1.xpose.msra.mxu0 0.0
    %3174 = vmatprep.subr.mxu0 0.0
    %3175 = vmatpush1.xpose.msra.mxu0 0.0
    %3176 = vmatprep.subr.mxu0 0.0
    %3177 = vmatpush1.xpose.msra.mxu0 0.0
    %3178 = vmatprep.subr.mxu0 0.0
    %3179 = vmatpush1.xpose.msra.mxu0 0.0
    %3180 = vmatprep.subr.mxu0 0.0
    %3181 = vmatpush1.xpose.msra.mxu0 0.0
    %3182 = vmatprep.subr.mxu0 0.0
    %3183 = vmatpush1.xpose.msra.mxu0 0.0
    %3184 = vmatprep.subr.mxu0 0.0
    %3185 = vmatpush1.xpose.msra.mxu0 0.0
    %3186 = vmatprep.subr.mxu0 0.0
    %3187 = vmatpush1.xpose.msra.mxu0 0.0
    %3188 = vmatprep.subr.mxu0 0.0
    %3189 = vmatpush1.xpose.msra.mxu0 0.0
    %3190 = vmatprep.subr.mxu0 0.0
    %3191 = vmatpush1.xpose.msra.mxu0 0.0
    %3192 = vmatprep.subr.mxu0 0.0
    %3193 = vmatpush1.xpose.msra.mxu0 0.0
    %3194 = vmatprep.subr.mxu0 0.0
    %3195 = vmatpush1.xpose.msra.mxu0 0.0
    %3196 = vmatprep.subr.mxu0 0.0
    %3197 = vmatpush1.xpose.msra.mxu0 0.0
    %3198 = vmatprep.subr.mxu0 0.0
    %3199 = vmatpush1.xpose.msra.mxu0 0.0
    %3200 = vmatprep.subr.mxu0 0.0
    %3201 = vmatpush1.xpose.msra.mxu0 0.0
    %3202 = vmatprep.subr.mxu0 0.0
    %3203 = vmatpush1.xpose.msra.mxu0 0.0
    %3204 = vmatprep.subr.mxu0 0.0
    %3205 = vmatpush1.xpose.msra.mxu0 0.0
    %3206 = vmatprep.subr.mxu0 0.0
    %3207 = vmatpush1.xpose.msra.mxu0 0.0
    %3208 = vmatprep.subr.mxu0 0.0
    %3209 = vmatpush1.xpose.msra.mxu0 0.0
    %3210 = vmatprep.subr.mxu0 0.0
    %3211 = vmatpush1.xpose.msra.mxu0 0.0
    %3212 = vmatprep.subr.mxu0 0.0
    %3213 = vmatpush1.xpose.msra.mxu0 0.0
    %3214 = vmatprep.mubr.f32.mxu0 0.0
    %3215 = vmatmul.mubr.f32.gmra.mrb[0].mxu0 %v3146
    %v3216 = vpop.f32.mrb[0].mxu0
    %v3217 = vadd.f32 0.0, %v3216
    %v3218 = vpop.f32.mrb[0].mxu0
    %3219 = vdwg.mxu0
    %3220 = vrot.lane.b32.xlu0 %v2808, 120
    %v3221 = vpop.permute.xlu0 %3220
    %3222 = vrot.lane.b32.xlu0 %v2808, 88
    %v3223 = vpop.permute.xlu0 %3222
    %v3224 = vsel %vm2814, %v3221, 0
    %v3226 = vsel %vm2814, %v3223, 0
    %3228 = vmatprep.subr.mxu0 0.0
    %3229 = vmatpush1.xpose.msra.mxu0 %v3226
    %3230 = vmatprep.subr.mxu0 0.0
    %3231 = vmatpush1.xpose.msra.mxu0 0.0
    %3232 = vmatprep.subr.mxu0 0.0
    %3233 = vmatpush1.xpose.msra.mxu0 0.0
    %3234 = vmatprep.subr.mxu0 0.0
    %3235 = vmatpush1.xpose.msra.mxu0 0.0
    %3236 = vmatprep.subr.mxu0 0.0
    %3237 = vmatpush1.xpose.msra.mxu0 0.0
    %3238 = vmatprep.subr.mxu0 0.0
    %3239 = vmatpush1.xpose.msra.mxu0 0.0
    %3240 = vmatprep.subr.mxu0 0.0
    %3241 = vmatpush1.xpose.msra.mxu0 0.0
    %3242 = vmatprep.subr.mxu0 0.0
    %3243 = vmatpush1.xpose.msra.mxu0 0.0
    %3244 = vmatprep.subr.mxu0 0.0
    %3245 = vmatpush1.xpose.msra.mxu0 0.0
    %3246 = vmatprep.subr.mxu0 0.0
    %3247 = vmatpush1.xpose.msra.mxu0 0.0
    %3248 = vmatprep.subr.mxu0 0.0
    %3249 = vmatpush1.xpose.msra.mxu0 0.0
    %3250 = vmatprep.subr.mxu0 0.0
    %3251 = vmatpush1.xpose.msra.mxu0 0.0
    %3252 = vmatprep.subr.mxu0 0.0
    %3253 = vmatpush1.xpose.msra.mxu0 0.0
    %3254 = vmatprep.subr.mxu0 0.0
    %3255 = vmatpush1.xpose.msra.mxu0 0.0
    %3256 = vmatprep.subr.mxu0 0.0
    %3257 = vmatpush1.xpose.msra.mxu0 0.0
    %3258 = vmatprep.subr.mxu0 0.0
    %3259 = vmatpush1.xpose.msra.mxu0 0.0
    %3260 = vmatprep.subr.mxu0 0.0
    %3261 = vmatpush1.xpose.msra.mxu0 0.0
    %3262 = vmatprep.subr.mxu0 0.0
    %3263 = vmatpush1.xpose.msra.mxu0 0.0
    %3264 = vmatprep.subr.mxu0 0.0
    %3265 = vmatpush1.xpose.msra.mxu0 0.0
    %3266 = vmatprep.subr.mxu0 0.0
    %3267 = vmatpush1.xpose.msra.mxu0 0.0
    %3268 = vmatprep.subr.mxu0 0.0
    %3269 = vmatpush1.xpose.msra.mxu0 0.0
    %3270 = vmatprep.subr.mxu0 0.0
    %3271 = vmatpush1.xpose.msra.mxu0 0.0
    %3272 = vmatprep.subr.mxu0 0.0
    %3273 = vmatpush1.xpose.msra.mxu0 0.0
    %3274 = vmatprep.subr.mxu0 0.0
    %3275 = vmatpush1.xpose.msra.mxu0 0.0
    %3276 = vmatprep.subr.mxu0 0.0
    %3277 = vmatpush1.xpose.msra.mxu0 0.0
    %3278 = vmatprep.subr.mxu0 0.0
    %3279 = vmatpush1.xpose.msra.mxu0 0.0
    %3280 = vmatprep.subr.mxu0 0.0
    %3281 = vmatpush1.xpose.msra.mxu0 0.0
    %3282 = vmatprep.subr.mxu0 0.0
    %3283 = vmatpush1.xpose.msra.mxu0 0.0
    %3284 = vmatprep.subr.mxu0 0.0
    %3285 = vmatpush1.xpose.msra.mxu0 0.0
    %3286 = vmatprep.subr.mxu0 0.0
    %3287 = vmatpush1.xpose.msra.mxu0 0.0
    %3288 = vmatprep.subr.mxu0 0.0
    %3289 = vmatpush1.xpose.msra.mxu0 0.0
    %3290 = vmatprep.subr.mxu0 0.0
    %3291 = vmatpush1.xpose.msra.mxu0 0.0
    %3292 = vmatprep.mubr.f32.mxu0 0.0
    %3293 = vmatmul.mubr.f32.gmra.mrb[0].mxu0 %v3224
    %v3294 = vpop.f32.mrb[0].mxu0
    %v3295 = vadd.f32 0.0, %v3294
    %v3296 = vpop.f32.mrb[0].mxu0
    %3297 = vdwg.mxu0
    %v3298 = vmul.f32 %v3217, 0.35355338
    %v3299 = vmul.f32 %v3295, 0.35355338
    %v3300 = vsel %vm2814, %v3298, -inf
    %3301 = vmax.xlane.f32.xlu0 %v3300
    %v3302 = vpop.xlane.xlu0 %3301
    %v3303 = vsel %vm2814, %v3299, -inf
    %3304 = vmax.xlane.f32.xlu0 %v3303
    %v3305 = vpop.xlane.xlu0 %3304
    %v3306 = vsub.f32 %v3298, %v3302
    %v3307 = vsub.f32 %v3299, %v3305
    %v3308 = vmul.f32 %v3306, 1.442695
    %v3309 = vpow.pop %v3308
    %v3310 = vmul.f32 %v3307, 1.442695
    %v3311 = vpow.pop %v3310
    %v3312 = vsel %vm2814, %v3309, 0.0
    %3313 = vadd.xlane.f32.xlu0 %v3312
    %v3314 = vpop.xlane.xlu0 %3313
    %v3315 = vsel %vm2814, %v3311, 0.0
    %3316 = vadd.xlane.f32.xlu0 %v3315
    %v3317 = vpop.xlane.xlu0 %3316
    %v3318 = vrcp.pop %v3314
    %v3319 = vmul.f32 %v3309, %v3318
    %v3320 = vrcp.pop %v3317
    %v3321 = vmul.f32 %v3311, %v3320
    %3322 = vrot.lane.b32.xlu0 %v2803, 56
    %v3323 = vpop.permute.xlu0 %3322
    %v3326 = vsel %vm2814, %v3319, 0
    %3328 = vmatprep.subr.mxu0 0.0
    %3329 = vmatpush1.msra.mxu0 %v3323
    %3330 = vmatprep.subr.mxu0 0.0
    %3331 = vmatpush1.msra.mxu0 0.0
    %3332 = vmatprep.subr.mxu0 0.0
    %3333 = vmatpush1.msra.mxu0 0.0
    %3334 = vmatprep.subr.mxu0 0.0
    %3335 = vmatpush1.msra.mxu0 0.0
    %3336 = vmatprep.subr.mxu0 0.0
    %3337 = vmatpush1.msra.mxu0 0.0
    %3338 = vmatprep.subr.mxu0 0.0
    %3339 = vmatpush1.msra.mxu0 0.0
    %3340 = vmatprep.subr.mxu0 0.0
    %3341 = vmatpush1.msra.mxu0 0.0
    %3342 = vmatprep.subr.mxu0 0.0
    %3343 = vmatpush1.msra.mxu0 0.0
    %3344 = vmatprep.subr.mxu0 0.0
    %3345 = vmatpush1.msra.mxu0 0.0
    %3346 = vmatprep.subr.mxu0 0.0
    %3347 = vmatpush1.msra.mxu0 0.0
    %3348 = vmatprep.subr.mxu0 0.0
    %3349 = vmatpush1.msra.mxu0 0.0
    %3350 = vmatprep.subr.mxu0 0.0
    %3351 = vmatpush1.msra.mxu0 0.0
    %3352 = vmatprep.subr.mxu0 0.0
    %3353 = vmatpush1.msra.mxu0 0.0
    %3354 = vmatprep.subr.mxu0 0.0
    %3355 = vmatpush1.msra.mxu0 0.0
    %3356 = vmatprep.subr.mxu0 0.0
    %3357 = vmatpush1.msra.mxu0 0.0
    %3358 = vmatprep.subr.mxu0 0.0
    %3359 = vmatpush1.msra.mxu0 0.0
    %3360 = vmatprep.subr.mxu0 0.0
    %3361 = vmatpush1.msra.mxu0 0.0
    %3362 = vmatprep.subr.mxu0 0.0
    %3363 = vmatpush1.msra.mxu0 0.0
    %3364 = vmatprep.subr.mxu0 0.0
    %3365 = vmatpush1.msra.mxu0 0.0
    %3366 = vmatprep.subr.mxu0 0.0
    %3367 = vmatpush1.msra.mxu0 0.0
    %3368 = vmatprep.subr.mxu0 0.0
    %3369 = vmatpush1.msra.mxu0 0.0
    %3370 = vmatprep.subr.mxu0 0.0
    %3371 = vmatpush1.msra.mxu0 0.0
    %3372 = vmatprep.subr.mxu0 0.0
    %3373 = vmatpush1.msra.mxu0 0.0
    %3374 = vmatprep.subr.mxu0 0.0
    %3375 = vmatpush1.msra.mxu0 0.0
    %3376 = vmatprep.subr.mxu0 0.0
    %3377 = vmatpush1.msra.mxu0 0.0
    %3378 = vmatprep.subr.mxu0 0.0
    %3379 = vmatpush1.msra.mxu0 0.0
    %3380 = vmatprep.subr.mxu0 0.0
    %3381 = vmatpush1.msra.mxu0 0.0
    %3382 = vmatprep.subr.mxu0 0.0
    %3383 = vmatpush1.msra.mxu0 0.0
    %3384 = vmatprep.subr.mxu0 0.0
    %3385 = vmatpush1.msra.mxu0 0.0
    %3386 = vmatprep.subr.mxu0 0.0
    %3387 = vmatpush1.msra.mxu0 0.0
    %3388 = vmatprep.subr.mxu0 0.0
    %3389 = vmatpush1.msra.mxu0 0.0
    %3390 = vmatprep.subr.mxu0 0.0
    %3391 = vmatpush1.msra.mxu0 0.0
    %3392 = vmatprep.mubr.f32.mxu0 0.0
    %3393 = vmatmul.mubr.f32.gmra.mrb[0].mxu0 %v3326
    %v3394 = vpop.f32.mrb[0].mxu0
    %v3395 = vadd.f32 0.0, %v3394
    %v3396 = vpop.f32.mrb[0].mxu0
    %3397 = vdwg.mxu0
    %3398 = vrot.lane.b32.xlu0 %v2808, 56
    %v3399 = vpop.permute.xlu0 %3398
    %v3402 = vsel %vm2814, %v3321, 0
    %3404 = vmatprep.subr.mxu0 0.0
    %3405 = vmatpush1.msra.mxu0 %v3399
    %3406 = vmatprep.subr.mxu0 0.0
    %3407 = vmatpush1.msra.mxu0 0.0
    %3408 = vmatprep.subr.mxu0 0.0
    %3409 = vmatpush1.msra.mxu0 0.0
    %3410 = vmatprep.subr.mxu0 0.0
    %3411 = vmatpush1.msra.mxu0 0.0
    %3412 = vmatprep.subr.mxu0 0.0
    %3413 = vmatpush1.msra.mxu0 0.0
    %3414 = vmatprep.subr.mxu0 0.0
    %3415 = vmatpush1.msra.mxu0 0.0
    %3416 = vmatprep.subr.mxu0 0.0
    %3417 = vmatpush1.msra.mxu0 0.0
    %3418 = vmatprep.subr.mxu0 0.0
    %3419 = vmatpush1.msra.mxu0 0.0
    %3420 = vmatprep.subr.mxu0 0.0
    %3421 = vmatpush1.msra.mxu0 0.0
    %3422 = vmatprep.subr.mxu0 0.0
    %3423 = vmatpush1.msra.mxu0 0.0
    %3424 = vmatprep.subr.mxu0 0.0
    %3425 = vmatpush1.msra.mxu0 0.0
    %3426 = vmatprep.subr.mxu0 0.0
    %3427 = vmatpush1.msra.mxu0 0.0
    %3428 = vmatprep.subr.mxu0 0.0
    %3429 = vmatpush1.msra.mxu0 0.0
    %3430 = vmatprep.subr.mxu0 0.0
    %3431 = vmatpush1.msra.mxu0 0.0
    %3432 = vmatprep.subr.mxu0 0.0
    %3433 = vmatpush1.msra.mxu0 0.0
    %3434 = vmatprep.subr.mxu0 0.0
    %3435 = vmatpush1.msra.mxu0 0.0
    %3436 = vmatprep.subr.mxu0 0.0
    %3437 = vmatpush1.msra.mxu0 0.0
    %3438 = vmatprep.subr.mxu0 0.0
    %3439 = vmatpush1.msra.mxu0 0.0
    %3440 = vmatprep.subr.mxu0 0.0
    %3441 = vmatpush1.msra.mxu0 0.0
    %3442 = vmatprep.subr.mxu0 0.0
    %3443 = vmatpush1.msra.mxu0 0.0
    %3444 = vmatprep.subr.mxu0 0.0
    %3445 = vmatpush1.msra.mxu0 0.0
    %3446 = vmatprep.subr.mxu0 0.0
    %3447 = vmatpush1.msra.mxu0 0.0
    %3448 = vmatprep.subr.mxu0 0.0
    %3449 = vmatpush1.msra.mxu0 0.0
    %3450 = vmatprep.subr.mxu0 0.0
    %3451 = vmatpush1.msra.mxu0 0.0
    %3452 = vmatprep.subr.mxu0 0.0
    %3453 = vmatpush1.msra.mxu0 0.0
    %3454 = vmatprep.subr.mxu0 0.0
    %3455 = vmatpush1.msra.mxu0 0.0
    %3456 = vmatprep.subr.mxu0 0.0
    %3457 = vmatpush1.msra.mxu0 0.0
    %3458 = vmatprep.subr.mxu0 0.0
    %3459 = vmatpush1.msra.mxu0 0.0
    %3460 = vmatprep.subr.mxu0 0.0
    %3461 = vmatpush1.msra.mxu0 0.0
    %3462 = vmatprep.subr.mxu0 0.0
    %3463 = vmatpush1.msra.mxu0 0.0
    %3464 = vmatprep.subr.mxu0 0.0
    %3465 = vmatpush1.msra.mxu0 0.0
    %3466 = vmatprep.subr.mxu0 0.0
    %3467 = vmatpush1.msra.mxu0 0.0
    %3468 = vmatprep.mubr.f32.mxu0 0.0
    %3469 = vmatmul.mubr.f32.gmra.mrb[0].mxu0 %v3402
    %v3470 = vpop.f32.mrb[0].mxu0
    %v3471 = vadd.f32 0.0, %v3470
    %v3472 = vpop.f32.mrb[0].mxu0
    %3473 = vdwg.mxu0
    %3474 = vrot.lane.b32.xlu0 %v2803, 112
    %v3475 = vpop.permute.xlu0 %3474
    %3476 = vrot.lane.b32.xlu0 %v2803, 80
    %v3477 = vpop.permute.xlu0 %3476
    %v3478 = vsel %vm2814, %v3475, 0
    %v3480 = vsel %vm2814, %v3477, 0
    %3482 = vmatprep.subr.mxu0 0.0
    %3483 = vmatpush1.xpose.msra.mxu0 %v3480
    %3484 = vmatprep.subr.mxu0 0.0
    %3485 = vmatpush1.xpose.msra.mxu0 0.0
    %3486 = vmatprep.subr.mxu0 0.0
    %3487 = vmatpush1.xpose.msra.mxu0 0.0
    %3488 = vmatprep.subr.mxu0 0.0
    %3489 = vmatpush1.xpose.msra.mxu0 0.0
    %3490 = vmatprep.subr.mxu0 0.0
    %3491 = vmatpush1.xpose.msra.mxu0 0.0
    %3492 = vmatprep.subr.mxu0 0.0
    %3493 = vmatpush1.xpose.msra.mxu0 0.0
    %3494 = vmatprep.subr.mxu0 0.0
    %3495 = vmatpush1.xpose.msra.mxu0 0.0
    %3496 = vmatprep.subr.mxu0 0.0
    %3497 = vmatpush1.xpose.msra.mxu0 0.0
    %3498 = vmatprep.subr.mxu0 0.0
    %3499 = vmatpush1.xpose.msra.mxu0 0.0
    %3500 = vmatprep.subr.mxu0 0.0
    %3501 = vmatpush1.xpose.msra.mxu0 0.0
    %3502 = vmatprep.subr.mxu0 0.0
    %3503 = vmatpush1.xpose.msra.mxu0 0.0
    %3504 = vmatprep.subr.mxu0 0.0
    %3505 = vmatpush1.xpose.msra.mxu0 0.0
    %3506 = vmatprep.subr.mxu0 0.0
    %3507 = vmatpush1.xpose.msra.mxu0 0.0
    %3508 = vmatprep.subr.mxu0 0.0
    %3509 = vmatpush1.xpose.msra.mxu0 0.0
    %3510 = vmatprep.subr.mxu0 0.0
    %3511 = vmatpush1.xpose.msra.mxu0 0.0
    %3512 = vmatprep.subr.mxu0 0.0
    %3513 = vmatpush1.xpose.msra.mxu0 0.0
    %3514 = vmatprep.subr.mxu0 0.0
    %3515 = vmatpush1.xpose.msra.mxu0 0.0
    %3516 = vmatprep.subr.mxu0 0.0
    %3517 = vmatpush1.xpose.msra.mxu0 0.0
    %3518 = vmatprep.subr.mxu0 0.0
    %3519 = vmatpush1.xpose.msra.mxu0 0.0
    %3520 = vmatprep.subr.mxu0 0.0
    %3521 = vmatpush1.xpose.msra.mxu0 0.0
    %3522 = vmatprep.subr.mxu0 0.0
    %3523 = vmatpush1.xpose.msra.mxu0 0.0
    %3524 = vmatprep.subr.mxu0 0.0
    %3525 = vmatpush1.xpose.msra.mxu0 0.0
    %3526 = vmatprep.subr.mxu0 0.0
    %3527 = vmatpush1.xpose.msra.mxu0 0.0
    %3528 = vmatprep.subr.mxu0 0.0
    %3529 = vmatpush1.xpose.msra.mxu0 0.0
    %3530 = vmatprep.subr.mxu0 0.0
    %3531 = vmatpush1.xpose.msra.mxu0 0.0
    %3532 = vmatprep.subr.mxu0 0.0
    %3533 = vmatpush1.xpose.msra.mxu0 0.0
    %3534 = vmatprep.subr.mxu0 0.0
    %3535 = vmatpush1.xpose.msra.mxu0 0.0
    %3536 = vmatprep.subr.mxu0 0.0
    %3537 = vmatpush1.xpose.msra.mxu0 0.0
    %3538 = vmatprep.subr.mxu0 0.0
    %3539 = vmatpush1.xpose.msra.mxu0 0.0
    %3540 = vmatprep.subr.mxu0 0.0
    %3541 = vmatpush1.xpose.msra.mxu0 0.0
    %3542 = vmatprep.subr.mxu0 0.0
    %3543 = vmatpush1.xpose.msra.mxu0 0.0
    %3544 = vmatprep.subr.mxu0 0.0
    %3545 = vmatpush1.xpose.msra.mxu0 0.0
    %3546 = vmatprep.mubr.f32.mxu0 0.0
    %3547 = vmatmul.mubr.f32.gmra.mrb[0].mxu0 %v3478
    %v3548 = vpop.f32.mrb[0].mxu0
    %v3549 = vadd.f32 0.0, %v3548
    %v3550 = vpop.f32.mrb[0].mxu0
    %3551 = vdwg.mxu0
    %3552 = vrot.lane.b32.xlu0 %v2808, 112
    %v3553 = vpop.permute.xlu0 %3552
    %3554 = vrot.lane.b32.xlu0 %v2808, 80
    %v3555 = vpop.permute.xlu0 %3554
    %v3556 = vsel %vm2814, %v3553, 0
    %v3558 = vsel %vm2814, %v3555, 0
    %3560 = vmatprep.subr.mxu0 0.0
    %3561 = vmatpush1.xpose.msra.mxu0 %v3558
    %3562 = vmatprep.subr.mxu0 0.0
    %3563 = vmatpush1.xpose.msra.mxu0 0.0
    %3564 = vmatprep.subr.mxu0 0.0
    %3565 = vmatpush1.xpose.msra.mxu0 0.0
    %3566 = vmatprep.subr.mxu0 0.0
    %3567 = vmatpush1.xpose.msra.mxu0 0.0
    %3568 = vmatprep.subr.mxu0 0.0
    %3569 = vmatpush1.xpose.msra.mxu0 0.0
    %3570 = vmatprep.subr.mxu0 0.0
    %3571 = vmatpush1.xpose.msra.mxu0 0.0
    %3572 = vmatprep.subr.mxu0 0.0
    %3573 = vmatpush1.xpose.msra.mxu0 0.0
    %3574 = vmatprep.subr.mxu0 0.0
    %3575 = vmatpush1.xpose.msra.mxu0 0.0
    %3576 = vmatprep.subr.mxu0 0.0
    %3577 = vmatpush1.xpose.msra.mxu0 0.0
    %3578 = vmatprep.subr.mxu0 0.0
    %3579 = vmatpush1.xpose.msra.mxu0 0.0
    %3580 = vmatprep.subr.mxu0 0.0
    %3581 = vmatpush1.xpose.msra.mxu0 0.0
    %3582 = vmatprep.subr.mxu0 0.0
    %3583 = vmatpush1.xpose.msra.mxu0 0.0
    %3584 = vmatprep.subr.mxu0 0.0
    %3585 = vmatpush1.xpose.msra.mxu0 0.0
    %3586 = vmatprep.subr.mxu0 0.0
    %3587 = vmatpush1.xpose.msra.mxu0 0.0
    %3588 = vmatprep.subr.mxu0 0.0
    %3589 = vmatpush1.xpose.msra.mxu0 0.0
    %3590 = vmatprep.subr.mxu0 0.0
    %3591 = vmatpush1.xpose.msra.mxu0 0.0
    %3592 = vmatprep.subr.mxu0 0.0
    %3593 = vmatpush1.xpose.msra.mxu0 0.0
    %3594 = vmatprep.subr.mxu0 0.0
    %3595 = vmatpush1.xpose.msra.mxu0 0.0
    %3596 = vmatprep.subr.mxu0 0.0
    %3597 = vmatpush1.xpose.msra.mxu0 0.0
    %3598 = vmatprep.subr.mxu0 0.0
    %3599 = vmatpush1.xpose.msra.mxu0 0.0
    %3600 = vmatprep.subr.mxu0 0.0
    %3601 = vmatpush1.xpose.msra.mxu0 0.0
    %3602 = vmatprep.subr.mxu0 0.0
    %3603 = vmatpush1.xpose.msra.mxu0 0.0
    %3604 = vmatprep.subr.mxu0 0.0
    %3605 = vmatpush1.xpose.msra.mxu0 0.0
    %3606 = vmatprep.subr.mxu0 0.0
    %3607 = vmatpush1.xpose.msra.mxu0 0.0
    %3608 = vmatprep.subr.mxu0 0.0
    %3609 = vmatpush1.xpose.msra.mxu0 0.0
    %3610 = vmatprep.subr.mxu0 0.0
    %3611 = vmatpush1.xpose.msra.mxu0 0.0
    %3612 = vmatprep.subr.mxu0 0.0
    %3613 = vmatpush1.xpose.msra.mxu0 0.0
    %3614 = vmatprep.subr.mxu0 0.0
    %3615 = vmatpush1.xpose.msra.mxu0 0.0
    %3616 = vmatprep.subr.mxu0 0.0
    %3617 = vmatpush1.xpose.msra.mxu0 0.0
    %3618 = vmatprep.subr.mxu0 0.0
    %3619 = vmatpush1.xpose.msra.mxu0 0.0
    %3620 = vmatprep.subr.mxu0 0.0
    %3621 = vmatpush1.xpose.msra.mxu0 0.0
    %3622 = vmatprep.subr.mxu0 0.0
    %3623 = vmatpush1.xpose.msra.mxu0 0.0
    %3624 = vmatprep.mubr.f32.mxu0 0.0
    %3625 = vmatmul.mubr.f32.gmra.mrb[0].mxu0 %v3556
    %v3626 = vpop.f32.mrb[0].mxu0
    %v3627 = vadd.f32 0.0, %v3626
    %v3628 = vpop.f32.mrb[0].mxu0
    %3629 = vdwg.mxu0
    %v3630 = vmul.f32 %v3549, 0.35355338
    %v3631 = vmul.f32 %v3627, 0.35355338
    %v3632 = vsel %vm2814, %v3630, -inf
    %3633 = vmax.xlane.f32.xlu0 %v3632
    %v3634 = vpop.xlane.xlu0 %3633
    %v3635 = vsel %vm2814, %v3631, -inf
    %3636 = vmax.xlane.f32.xlu0 %v3635
    %v3637 = vpop.xlane.xlu0 %3636
    %v3638 = vsub.f32 %v3630, %v3634
    %v3639 = vsub.f32 %v3631, %v3637
    %v3640 = vmul.f32 %v3638, 1.442695
    %v3641 = vpow.pop %v3640
    %v3642 = vmul.f32 %v3639, 1.442695
    %v3643 = vpow.pop %v3642
    %v3644 = vsel %vm2814, %v3641, 0.0
    %3645 = vadd.xlane.f32.xlu0 %v3644
    %v3646 = vpop.xlane.xlu0 %3645
    %v3647 = vsel %vm2814, %v3643, 0.0
    %3648 = vadd.xlane.f32.xlu0 %v3647
    %v3649 = vpop.xlane.xlu0 %3648
    %v3650 = vrcp.pop %v3646
    %v3651 = vmul.f32 %v3641, %v3650
    %v3652 = vrcp.pop %v3649
    %v3653 = vmul.f32 %v3643, %v3652
    %3654 = vrot.lane.b32.xlu0 %v2803, 48
    %v3655 = vpop.permute.xlu0 %3654
    %v3658 = vsel %vm2814, %v3651, 0
    %3660 = vmatprep.subr.mxu0 0.0
    %3661 = vmatpush1.msra.mxu0 %v3655
    %3662 = vmatprep.subr.mxu0 0.0
    %3663 = vmatpush1.msra.mxu0 0.0
    %3664 = vmatprep.subr.mxu0 0.0
    %3665 = vmatpush1.msra.mxu0 0.0
    %3666 = vmatprep.subr.mxu0 0.0
    %3667 = vmatpush1.msra.mxu0 0.0
    %3668 = vmatprep.subr.mxu0 0.0
    %3669 = vmatpush1.msra.mxu0 0.0
    %3670 = vmatprep.subr.mxu0 0.0
    %3671 = vmatpush1.msra.mxu0 0.0
    %3672 = vmatprep.subr.mxu0 0.0
    %3673 = vmatpush1.msra.mxu0 0.0
    %3674 = vmatprep.subr.mxu0 0.0
    %3675 = vmatpush1.msra.mxu0 0.0
    %3676 = vmatprep.subr.mxu0 0.0
    %3677 = vmatpush1.msra.mxu0 0.0
    %3678 = vmatprep.subr.mxu0 0.0
    %3679 = vmatpush1.msra.mxu0 0.0
    %3680 = vmatprep.subr.mxu0 0.0
    %3681 = vmatpush1.msra.mxu0 0.0
    %3682 = vmatprep.subr.mxu0 0.0
    %3683 = vmatpush1.msra.mxu0 0.0
    %3684 = vmatprep.subr.mxu0 0.0
    %3685 = vmatpush1.msra.mxu0 0.0
    %3686 = vmatprep.subr.mxu0 0.0
    %3687 = vmatpush1.msra.mxu0 0.0
    %3688 = vmatprep.subr.mxu0 0.0
    %3689 = vmatpush1.msra.mxu0 0.0
    %3690 = vmatprep.subr.mxu0 0.0
    %3691 = vmatpush1.msra.mxu0 0.0
    %3692 = vmatprep.subr.mxu0 0.0
    %3693 = vmatpush1.msra.mxu0 0.0
    %3694 = vmatprep.subr.mxu0 0.0
    %3695 = vmatpush1.msra.mxu0 0.0
    %3696 = vmatprep.subr.mxu0 0.0
    %3697 = vmatpush1.msra.mxu0 0.0
    %3698 = vmatprep.subr.mxu0 0.0
    %3699 = vmatpush1.msra.mxu0 0.0
    %3700 = vmatprep.subr.mxu0 0.0
    %3701 = vmatpush1.msra.mxu0 0.0
    %3702 = vmatprep.subr.mxu0 0.0
    %3703 = vmatpush1.msra.mxu0 0.0
    %3704 = vmatprep.subr.mxu0 0.0
    %3705 = vmatpush1.msra.mxu0 0.0
    %3706 = vmatprep.subr.mxu0 0.0
    %3707 = vmatpush1.msra.mxu0 0.0
    %3708 = vmatprep.subr.mxu0 0.0
    %3709 = vmatpush1.msra.mxu0 0.0
    %3710 = vmatprep.subr.mxu0 0.0
    %3711 = vmatpush1.msra.mxu0 0.0
    %3712 = vmatprep.subr.mxu0 0.0
    %3713 = vmatpush1.msra.mxu0 0.0
    %3714 = vmatprep.subr.mxu0 0.0
    %3715 = vmatpush1.msra.mxu0 0.0
    %3716 = vmatprep.subr.mxu0 0.0
    %3717 = vmatpush1.msra.mxu0 0.0
    %3718 = vmatprep.subr.mxu0 0.0
    %3719 = vmatpush1.msra.mxu0 0.0
    %3720 = vmatprep.subr.mxu0 0.0
    %3721 = vmatpush1.msra.mxu0 0.0
    %3722 = vmatprep.subr.mxu0 0.0
    %3723 = vmatpush1.msra.mxu0 0.0
    %3724 = vmatprep.mubr.f32.mxu0 0.0
    %3725 = vmatmul.mubr.f32.gmra.mrb[0].mxu0 %v3658
    %v3726 = vpop.f32.mrb[0].mxu0
    %v3727 = vadd.f32 0.0, %v3726
    %v3728 = vpop.f32.mrb[0].mxu0
    %3729 = vdwg.mxu0
    %3730 = vrot.lane.b32.xlu0 %v2808, 48
    %v3731 = vpop.permute.xlu0 %3730
    %v3734 = vsel %vm2814, %v3653, 0
    %3736 = vmatprep.subr.mxu0 0.0
    %3737 = vmatpush1.msra.mxu0 %v3731
    %3738 = vmatprep.subr.mxu0 0.0
    %3739 = vmatpush1.msra.mxu0 0.0
    %3740 = vmatprep.subr.mxu0 0.0
    %3741 = vmatpush1.msra.mxu0 0.0
    %3742 = vmatprep.subr.mxu0 0.0
    %3743 = vmatpush1.msra.mxu0 0.0
    %3744 = vmatprep.subr.mxu0 0.0
    %3745 = vmatpush1.msra.mxu0 0.0
    %3746 = vmatprep.subr.mxu0 0.0
    %3747 = vmatpush1.msra.mxu0 0.0
    %3748 = vmatprep.subr.mxu0 0.0
    %3749 = vmatpush1.msra.mxu0 0.0
    %3750 = vmatprep.subr.mxu0 0.0
    %3751 = vmatpush1.msra.mxu0 0.0
    %3752 = vmatprep.subr.mxu0 0.0
    %3753 = vmatpush1.msra.mxu0 0.0
    %3754 = vmatprep.subr.mxu0 0.0
    %3755 = vmatpush1.msra.mxu0 0.0
    %3756 = vmatprep.subr.mxu0 0.0
    %3757 = vmatpush1.msra.mxu0 0.0
    %3758 = vmatprep.subr.mxu0 0.0
    %3759 = vmatpush1.msra.mxu0 0.0
    %3760 = vmatprep.subr.mxu0 0.0
    %3761 = vmatpush1.msra.mxu0 0.0
    %3762 = vmatprep.subr.mxu0 0.0
    %3763 = vmatpush1.msra.mxu0 0.0
    %3764 = vmatprep.subr.mxu0 0.0
    %3765 = vmatpush1.msra.mxu0 0.0
    %3766 = vmatprep.subr.mxu0 0.0
    %3767 = vmatpush1.msra.mxu0 0.0
    %3768 = vmatprep.subr.mxu0 0.0
    %3769 = vmatpush1.msra.mxu0 0.0
    %3770 = vmatprep.subr.mxu0 0.0
    %3771 = vmatpush1.msra.mxu0 0.0
    %3772 = vmatprep.subr.mxu0 0.0
    %3773 = vmatpush1.msra.mxu0 0.0
    %3774 = vmatprep.subr.mxu0 0.0
    %3775 = vmatpush1.msra.mxu0 0.0
    %3776 = vmatprep.subr.mxu0 0.0
    %3777 = vmatpush1.msra.mxu0 0.0
    %3778 = vmatprep.subr.mxu0 0.0
    %3779 = vmatpush1.msra.mxu0 0.0
    %3780 = vmatprep.subr.mxu0 0.0
    %3781 = vmatpush1.msra.mxu0 0.0
    %3782 = vmatprep.subr.mxu0 0.0
    %3783 = vmatpush1.msra.mxu0 0.0
    %3784 = vmatprep.subr.mxu0 0.0
    %3785 = vmatpush1.msra.mxu0 0.0
    %3786 = vmatprep.subr.mxu0 0.0
    %3787 = vmatpush1.msra.mxu0 0.0
    %3788 = vmatprep.subr.mxu0 0.0
    %3789 = vmatpush1.msra.mxu0 0.0
    %3790 = vmatprep.subr.mxu0 0.0
    %3791 = vmatpush1.msra.mxu0 0.0
    %3792 = vmatprep.subr.mxu0 0.0
    %3793 = vmatpush1.msra.mxu0 0.0
    %3794 = vmatprep.subr.mxu0 0.0
    %3795 = vmatpush1.msra.mxu0 0.0
    %3796 = vmatprep.subr.mxu0 0.0
    %3797 = vmatpush1.msra.mxu0 0.0
    %3798 = vmatprep.subr.mxu0 0.0
    %3799 = vmatpush1.msra.mxu0 0.0
    %3800 = vmatprep.mubr.f32.mxu0 0.0
    %3801 = vmatmul.mubr.f32.gmra.mrb[0].mxu0 %v3734
    %v3802 = vpop.f32.mrb[0].mxu0
    %v3803 = vadd.f32 0.0, %v3802
    %v3804 = vpop.f32.mrb[0].mxu0
    %3805 = vdwg.mxu0
    %3806 = vrot.lane.b32.xlu0 %v2803, 104
    %v3807 = vpop.permute.xlu0 %3806
    %3808 = vrot.lane.b32.xlu0 %v2803, 72
    %v3809 = vpop.permute.xlu0 %3808
    %v3810 = vsel %vm2814, %v3807, 0
    %v3812 = vsel %vm2814, %v3809, 0
    %3814 = vmatprep.subr.mxu0 0.0
    %3815 = vmatpush1.xpose.msra.mxu0 %v3812
    %3816 = vmatprep.subr.mxu0 0.0
    %3817 = vmatpush1.xpose.msra.mxu0 0.0
    %3818 = vmatprep.subr.mxu0 0.0
    %3819 = vmatpush1.xpose.msra.mxu0 0.0
    %3820 = vmatprep.subr.mxu0 0.0
    %3821 = vmatpush1.xpose.msra.mxu0 0.0
    %3822 = vmatprep.subr.mxu0 0.0
    %3823 = vmatpush1.xpose.msra.mxu0 0.0
    %3824 = vmatprep.subr.mxu0 0.0
    %3825 = vmatpush1.xpose.msra.mxu0 0.0
    %3826 = vmatprep.subr.mxu0 0.0
    %3827 = vmatpush1.xpose.msra.mxu0 0.0
    %3828 = vmatprep.subr.mxu0 0.0
    %3829 = vmatpush1.xpose.msra.mxu0 0.0
    %3830 = vmatprep.subr.mxu0 0.0
    %3831 = vmatpush1.xpose.msra.mxu0 0.0
    %3832 = vmatprep.subr.mxu0 0.0
    %3833 = vmatpush1.xpose.msra.mxu0 0.0
    %3834 = vmatprep.subr.mxu0 0.0
    %3835 = vmatpush1.xpose.msra.mxu0 0.0
    %3836 = vmatprep.subr.mxu0 0.0
    %3837 = vmatpush1.xpose.msra.mxu0 0.0
    %3838 = vmatprep.subr.mxu0 0.0
    %3839 = vmatpush1.xpose.msra.mxu0 0.0
    %3840 = vmatprep.subr.mxu0 0.0
    %3841 = vmatpush1.xpose.msra.mxu0 0.0
    %3842 = vmatprep.subr.mxu0 0.0
    %3843 = vmatpush1.xpose.msra.mxu0 0.0
    %3844 = vmatprep.subr.mxu0 0.0
    %3845 = vmatpush1.xpose.msra.mxu0 0.0
    %3846 = vmatprep.subr.mxu0 0.0
    %3847 = vmatpush1.xpose.msra.mxu0 0.0
    %3848 = vmatprep.subr.mxu0 0.0
    %3849 = vmatpush1.xpose.msra.mxu0 0.0
    %3850 = vmatprep.subr.mxu0 0.0
    %3851 = vmatpush1.xpose.msra.mxu0 0.0
    %3852 = vmatprep.subr.mxu0 0.0
    %3853 = vmatpush1.xpose.msra.mxu0 0.0
    %3854 = vmatprep.subr.mxu0 0.0
    %3855 = vmatpush1.xpose.msra.mxu0 0.0
    %3856 = vmatprep.subr.mxu0 0.0
    %3857 = vmatpush1.xpose.msra.mxu0 0.0
    %3858 = vmatprep.subr.mxu0 0.0
    %3859 = vmatpush1.xpose.msra.mxu0 0.0
    %3860 = vmatprep.subr.mxu0 0.0
    %3861 = vmatpush1.xpose.msra.mxu0 0.0
    %3862 = vmatprep.subr.mxu0 0.0
    %3863 = vmatpush1.xpose.msra.mxu0 0.0
    %3864 = vmatprep.subr.mxu0 0.0
    %3865 = vmatpush1.xpose.msra.mxu0 0.0
    %3866 = vmatprep.subr.mxu0 0.0
    %3867 = vmatpush1.xpose.msra.mxu0 0.0
    %3868 = vmatprep.subr.mxu0 0.0
    %3869 = vmatpush1.xpose.msra.mxu0 0.0
    %3870 = vmatprep.subr.mxu0 0.0
    %3871 = vmatpush1.xpose.msra.mxu0 0.0
    %3872 = vmatprep.subr.mxu0 0.0
    %3873 = vmatpush1.xpose.msra.mxu0 0.0
    %3874 = vmatprep.subr.mxu0 0.0
    %3875 = vmatpush1.xpose.msra.mxu0 0.0
    %3876 = vmatprep.subr.mxu0 0.0
    %3877 = vmatpush1.xpose.msra.mxu0 0.0
    %3878 = vmatprep.mubr.f32.mxu0 0.0
    %3879 = vmatmul.mubr.f32.gmra.mrb[0].mxu0 %v3810
    %v3880 = vpop.f32.mrb[0].mxu0
    %v3881 = vadd.f32 0.0, %v3880
    %v3882 = vpop.f32.mrb[0].mxu0
    %3883 = vdwg.mxu0
    %3884 = vrot.lane.b32.xlu0 %v2808, 104
    %v3885 = vpop.permute.xlu0 %3884
    %3886 = vrot.lane.b32.xlu0 %v2808, 72
    %v3887 = vpop.permute.xlu0 %3886
    %v3888 = vsel %vm2814, %v3885, 0
    %v3890 = vsel %vm2814, %v3887, 0
    %3892 = vmatprep.subr.mxu0 0.0
    %3893 = vmatpush1.xpose.msra.mxu0 %v3890
    %3894 = vmatprep.subr.mxu0 0.0
    %3895 = vmatpush1.xpose.msra.mxu0 0.0
    %3896 = vmatprep.subr.mxu0 0.0
    %3897 = vmatpush1.xpose.msra.mxu0 0.0
    %3898 = vmatprep.subr.mxu0 0.0
    %3899 = vmatpush1.xpose.msra.mxu0 0.0
    %3900 = vmatprep.subr.mxu0 0.0
    %3901 = vmatpush1.xpose.msra.mxu0 0.0
    %3902 = vmatprep.subr.mxu0 0.0
    %3903 = vmatpush1.xpose.msra.mxu0 0.0
    %3904 = vmatprep.subr.mxu0 0.0
    %3905 = vmatpush1.xpose.msra.mxu0 0.0
    %3906 = vmatprep.subr.mxu0 0.0
    %3907 = vmatpush1.xpose.msra.mxu0 0.0
    %3908 = vmatprep.subr.mxu0 0.0
    %3909 = vmatpush1.xpose.msra.mxu0 0.0
    %3910 = vmatprep.subr.mxu0 0.0
    %3911 = vmatpush1.xpose.msra.mxu0 0.0
    %3912 = vmatprep.subr.mxu0 0.0
    %3913 = vmatpush1.xpose.msra.mxu0 0.0
    %3914 = vmatprep.subr.mxu0 0.0
    %3915 = vmatpush1.xpose.msra.mxu0 0.0
    %3916 = vmatprep.subr.mxu0 0.0
    %3917 = vmatpush1.xpose.msra.mxu0 0.0
    %3918 = vmatprep.subr.mxu0 0.0
    %3919 = vmatpush1.xpose.msra.mxu0 0.0
    %3920 = vmatprep.subr.mxu0 0.0
    %3921 = vmatpush1.xpose.msra.mxu0 0.0
    %3922 = vmatprep.subr.mxu0 0.0
    %3923 = vmatpush1.xpose.msra.mxu0 0.0
    %3924 = vmatprep.subr.mxu0 0.0
    %3925 = vmatpush1.xpose.msra.mxu0 0.0
    %3926 = vmatprep.subr.mxu0 0.0
    %3927 = vmatpush1.xpose.msra.mxu0 0.0
    %3928 = vmatprep.subr.mxu0 0.0
    %3929 = vmatpush1.xpose.msra.mxu0 0.0
    %3930 = vmatprep.subr.mxu0 0.0
    %3931 = vmatpush1.xpose.msra.mxu0 0.0
    %3932 = vmatprep.subr.mxu0 0.0
    %3933 = vmatpush1.xpose.msra.mxu0 0.0
    %3934 = vmatprep.subr.mxu0 0.0
    %3935 = vmatpush1.xpose.msra.mxu0 0.0
    %3936 = vmatprep.subr.mxu0 0.0
    %3937 = vmatpush1.xpose.msra.mxu0 0.0
    %3938 = vmatprep.subr.mxu0 0.0
    %3939 = vmatpush1.xpose.msra.mxu0 0.0
    %3940 = vmatprep.subr.mxu0 0.0
    %3941 = vmatpush1.xpose.msra.mxu0 0.0
    %3942 = vmatprep.subr.mxu0 0.0
    %3943 = vmatpush1.xpose.msra.mxu0 0.0
    %3944 = vmatprep.subr.mxu0 0.0
    %3945 = vmatpush1.xpose.msra.mxu0 0.0
    %3946 = vmatprep.subr.mxu0 0.0
    %3947 = vmatpush1.xpose.msra.mxu0 0.0
    %3948 = vmatprep.subr.mxu0 0.0
    %3949 = vmatpush1.xpose.msra.mxu0 0.0
    %3950 = vmatprep.subr.mxu0 0.0
    %3951 = vmatpush1.xpose.msra.mxu0 0.0
    %3952 = vmatprep.subr.mxu0 0.0
    %3953 = vmatpush1.xpose.msra.mxu0 0.0
    %3954 = vmatprep.subr.mxu0 0.0
    %3955 = vmatpush1.xpose.msra.mxu0 0.0
    %3956 = vmatprep.mubr.f32.mxu0 0.0
    %3957 = vmatmul.mubr.f32.gmra.mrb[0].mxu0 %v3888
    %v3958 = vpop.f32.mrb[0].mxu0
    %v3959 = vadd.f32 0.0, %v3958
    %v3960 = vpop.f32.mrb[0].mxu0
    %3961 = vdwg.mxu0
    %v3962 = vmul.f32 %v3881, 0.35355338
    %v3963 = vmul.f32 %v3959, 0.35355338
    %v3964 = vsel %vm2814, %v3962, -inf
    %3965 = vmax.xlane.f32.xlu0 %v3964
    %v3966 = vpop.xlane.xlu0 %3965
    %v3967 = vsel %vm2814, %v3963, -inf
    %3968 = vmax.xlane.f32.xlu0 %v3967
    %v3969 = vpop.xlane.xlu0 %3968
    %v3970 = vsub.f32 %v3962, %v3966
    %v3971 = vsub.f32 %v3963, %v3969
    %v3972 = vmul.f32 %v3970, 1.442695
    %v3973 = vpow.pop %v3972
    %v3974 = vmul.f32 %v3971, 1.442695
    %v3975 = vpow.pop %v3974
    %v3976 = vsel %vm2814, %v3973, 0.0
    %3977 = vadd.xlane.f32.xlu0 %v3976
    %v3978 = vpop.xlane.xlu0 %3977
    %v3979 = vsel %vm2814, %v3975, 0.0
    %3980 = vadd.xlane.f32.xlu0 %v3979
    %v3981 = vpop.xlane.xlu0 %3980
    %v3982 = vrcp.pop %v3978
    %v3983 = vmul.f32 %v3973, %v3982
    %v3984 = vrcp.pop %v3981
    %v3985 = vmul.f32 %v3975, %v3984
    %3986 = vrot.lane.b32.xlu0 %v2803, 40
    %v3987 = vpop.permute.xlu0 %3986
    %v3990 = vsel %vm2814, %v3983, 0
    %3992 = vmatprep.subr.mxu0 0.0
    %3993 = vmatpush1.msra.mxu0 %v3987
    %3994 = vmatprep.subr.mxu0 0.0
    %3995 = vmatpush1.msra.mxu0 0.0
    %3996 = vmatprep.subr.mxu0 0.0
    %3997 = vmatpush1.msra.mxu0 0.0
    %3998 = vmatprep.subr.mxu0 0.0
    %3999 = vmatpush1.msra.mxu0 0.0
    %4000 = vmatprep.subr.mxu0 0.0
    %4001 = vmatpush1.msra.mxu0 0.0
    %4002 = vmatprep.subr.mxu0 0.0
    %4003 = vmatpush1.msra.mxu0 0.0
    %4004 = vmatprep.subr.mxu0 0.0
    %4005 = vmatpush1.msra.mxu0 0.0
    %4006 = vmatprep.subr.mxu0 0.0
    %4007 = vmatpush1.msra.mxu0 0.0
    %4008 = vmatprep.subr.mxu0 0.0
    %4009 = vmatpush1.msra.mxu0 0.0
    %4010 = vmatprep.subr.mxu0 0.0
    %4011 = vmatpush1.msra.mxu0 0.0
    %4012 = vmatprep.subr.mxu0 0.0
    %4013 = vmatpush1.msra.mxu0 0.0
    %4014 = vmatprep.subr.mxu0 0.0
    %4015 = vmatpush1.msra.mxu0 0.0
    %4016 = vmatprep.subr.mxu0 0.0
    %4017 = vmatpush1.msra.mxu0 0.0
    %4018 = vmatprep.subr.mxu0 0.0
    %4019 = vmatpush1.msra.mxu0 0.0
    %4020 = vmatprep.subr.mxu0 0.0
    %4021 = vmatpush1.msra.mxu0 0.0
    %4022 = vmatprep.subr.mxu0 0.0
    %4023 = vmatpush1.msra.mxu0 0.0
    %4024 = vmatprep.subr.mxu0 0.0
    %4025 = vmatpush1.msra.mxu0 0.0
    %4026 = vmatprep.subr.mxu0 0.0
    %4027 = vmatpush1.msra.mxu0 0.0
    %4028 = vmatprep.subr.mxu0 0.0
    %4029 = vmatpush1.msra.mxu0 0.0
    %4030 = vmatprep.subr.mxu0 0.0
    %4031 = vmatpush1.msra.mxu0 0.0
    %4032 = vmatprep.subr.mxu0 0.0
    %4033 = vmatpush1.msra.mxu0 0.0
    %4034 = vmatprep.subr.mxu0 0.0
    %4035 = vmatpush1.msra.mxu0 0.0
    %4036 = vmatprep.subr.mxu0 0.0
    %4037 = vmatpush1.msra.mxu0 0.0
    %4038 = vmatprep.subr.mxu0 0.0
    %4039 = vmatpush1.msra.mxu0 0.0
    %4040 = vmatprep.subr.mxu0 0.0
    %4041 = vmatpush1.msra.mxu0 0.0
    %4042 = vmatprep.subr.mxu0 0.0
    %4043 = vmatpush1.msra.mxu0 0.0
    %4044 = vmatprep.subr.mxu0 0.0
    %4045 = vmatpush1.msra.mxu0 0.0
    %4046 = vmatprep.subr.mxu0 0.0
    %4047 = vmatpush1.msra.mxu0 0.0
    %4048 = vmatprep.subr.mxu0 0.0
    %4049 = vmatpush1.msra.mxu0 0.0
    %4050 = vmatprep.subr.mxu0 0.0
    %4051 = vmatpush1.msra.mxu0 0.0
    %4052 = vmatprep.subr.mxu0 0.0
    %4053 = vmatpush1.msra.mxu0 0.0
    %4054 = vmatprep.subr.mxu0 0.0
    %4055 = vmatpush1.msra.mxu0 0.0
    %4056 = vmatprep.mubr.f32.mxu0 0.0
    %4057 = vmatmul.mubr.f32.gmra.mrb[0].mxu0 %v3990
    %v4058 = vpop.f32.mrb[0].mxu0
    %v4059 = vadd.f32 0.0, %v4058
    %v4060 = vpop.f32.mrb[0].mxu0
    %4061 = vdwg.mxu0
    %4062 = vrot.lane.b32.xlu0 %v2808, 40
    %v4063 = vpop.permute.xlu0 %4062
    %v4066 = vsel %vm2814, %v3985, 0
    %4068 = vmatprep.subr.mxu0 0.0
    %4069 = vmatpush1.msra.mxu0 %v4063
    %4070 = vmatprep.subr.mxu0 0.0
    %4071 = vmatpush1.msra.mxu0 0.0
    %4072 = vmatprep.subr.mxu0 0.0
    %4073 = vmatpush1.msra.mxu0 0.0
    %4074 = vmatprep.subr.mxu0 0.0
    %4075 = vmatpush1.msra.mxu0 0.0
    %4076 = vmatprep.subr.mxu0 0.0
    %4077 = vmatpush1.msra.mxu0 0.0
    %4078 = vmatprep.subr.mxu0 0.0
    %4079 = vmatpush1.msra.mxu0 0.0
    %4080 = vmatprep.subr.mxu0 0.0
    %4081 = vmatpush1.msra.mxu0 0.0
    %4082 = vmatprep.subr.mxu0 0.0
    %4083 = vmatpush1.msra.mxu0 0.0
    %4084 = vmatprep.subr.mxu0 0.0
    %4085 = vmatpush1.msra.mxu0 0.0
    %4086 = vmatprep.subr.mxu0 0.0
    %4087 = vmatpush1.msra.mxu0 0.0
    %4088 = vmatprep.subr.mxu0 0.0
    %4089 = vmatpush1.msra.mxu0 0.0
    %4090 = vmatprep.subr.mxu0 0.0
    %4091 = vmatpush1.msra.mxu0 0.0
    %4092 = vmatprep.subr.mxu0 0.0
    %4093 = vmatpush1.msra.mxu0 0.0
    %4094 = vmatprep.subr.mxu0 0.0
    %4095 = vmatpush1.msra.mxu0 0.0
    %4096 = vmatprep.subr.mxu0 0.0
    %4097 = vmatpush1.msra.mxu0 0.0
    %4098 = vmatprep.subr.mxu0 0.0
    %4099 = vmatpush1.msra.mxu0 0.0
    %4100 = vmatprep.subr.mxu0 0.0
    %4101 = vmatpush1.msra.mxu0 0.0
    %4102 = vmatprep.subr.mxu0 0.0
    %4103 = vmatpush1.msra.mxu0 0.0
    %4104 = vmatprep.subr.mxu0 0.0
    %4105 = vmatpush1.msra.mxu0 0.0
    %4106 = vmatprep.subr.mxu0 0.0
    %4107 = vmatpush1.msra.mxu0 0.0
    %4108 = vmatprep.subr.mxu0 0.0
    %4109 = vmatpush1.msra.mxu0 0.0
    %4110 = vmatprep.subr.mxu0 0.0
    %4111 = vmatpush1.msra.mxu0 0.0
    %4112 = vmatprep.subr.mxu0 0.0
    %4113 = vmatpush1.msra.mxu0 0.0
    %4114 = vmatprep.subr.mxu0 0.0
    %4115 = vmatpush1.msra.mxu0 0.0
    %4116 = vmatprep.subr.mxu0 0.0
    %4117 = vmatpush1.msra.mxu0 0.0
    %4118 = vmatprep.subr.mxu0 0.0
    %4119 = vmatpush1.msra.mxu0 0.0
    %4120 = vmatprep.subr.mxu0 0.0
    %4121 = vmatpush1.msra.mxu0 0.0
    %4122 = vmatprep.subr.mxu0 0.0
    %4123 = vmatpush1.msra.mxu0 0.0
    %4124 = vmatprep.subr.mxu0 0.0
    %4125 = vmatpush1.msra.mxu0 0.0
    %4126 = vmatprep.subr.mxu0 0.0
    %4127 = vmatpush1.msra.mxu0 0.0
    %4128 = vmatprep.subr.mxu0 0.0
    %4129 = vmatpush1.msra.mxu0 0.0
    %4130 = vmatprep.subr.mxu0 0.0
    %4131 = vmatpush1.msra.mxu0 0.0
    %4132 = vmatprep.mubr.f32.mxu0 0.0
    %4133 = vmatmul.mubr.f32.gmra.mrb[0].mxu0 %v4066
    %v4134 = vpop.f32.mrb[0].mxu0
    %v4135 = vadd.f32 0.0, %v4134
    %v4136 = vpop.f32.mrb[0].mxu0
    %4137 = vdwg.mxu0
    %4140 = vrot.lane.b32.xlu0 %v3395, 8
    %v4141 = vpop.permute.xlu0 %4140
    %4142 = vrot.lane.b32.xlu0 %v3471, 8
    %v4143 = vpop.permute.xlu0 %4142
    %4148 = vrot.lane.b32.xlu0 %v3727, 16
    %v4149 = vpop.permute.xlu0 %4148
    %4150 = vrot.lane.b32.xlu0 %v3803, 16
    %v4151 = vpop.permute.xlu0 %4150
    %4156 = vrot.lane.b32.xlu0 %v4059, 24
    %v4157 = vpop.permute.xlu0 %4156
    %4158 = vrot.lane.b32.xlu0 %v4135, 24
    %v4159 = vpop.permute.xlu0 %4158
    %v4162 = vsel %vm2814, %v3063, %v4141
    %v4163 = vsel %vm2814, %v3139, %v4143
    %v4164 = vsel %vm156, %v4162, %v4149
    %v4165 = vsel %vm156, %v4163, %v4151
    %vm4166 = vcmask 195584
    %v4167 = vsel %vm4166, %v4164, %v4157
    %v4168 = vsel %vm4166, %v4165, %v4159
    %v4169 = vld [vmem:[%s8] sm:$0xff]
    %v4170 = vld [vmem:[%s8 + $0x8] sm:$0xff]
    %v4171 = vld [vmem:[%s8 + $0x10] sm:$0xff]
    %v4172 = vld [vmem:[%s8 + $0x18] sm:$0xff]
    %v4173 = vld [vmem:[%s9] sm:$0x1]
    %v4175 = vlaneseq
    %v4176 = vshrl.u32 %v4175, 7
    %v4177 = vsub.s32 0, %v4176
    %v4178 = vrot.slane %v4173, %v4177
    %v4181 = vsel %vm2673, %v4167, 0
    %v4184 = vsel %vm2673, %v4168, 0
    %4186 = vmatprep.subr.mxu0 0.0
    %4187 = vmatpush1.msra.mxu0 %v4169
    %4188 = vmatprep.subr.mxu0 0.0
    %4189 = vmatpush1.msra.mxu0 %v4170
    %4190 = vmatprep.subr.mxu0 0.0
    %4191 = vmatpush1.msra.mxu0 %v4171
    %4192 = vmatprep.subr.mxu0 0.0
    %4193 = vmatpush1.msra.mxu0 %v4172
    %4194 = vmatprep.subr.mxu0 0.0
    %4195 = vmatpush1.msra.mxu0 0.0
    %4196 = vmatprep.subr.mxu0 0.0
    %4197 = vmatpush1.msra.mxu0 0.0
    %4198 = vmatprep.subr.mxu0 0.0
    %4199 = vmatpush1.msra.mxu0 0.0
    %4200 = vmatprep.subr.mxu0 0.0
    %4201 = vmatpush1.msra.mxu0 0.0
    %4202 = vmatprep.subr.mxu0 0.0
    %4203 = vmatpush1.msra.mxu0 0.0
    %4204 = vmatprep.subr.mxu0 0.0
    %4205 = vmatpush1.msra.mxu0 0.0
    %4206 = vmatprep.subr.mxu0 0.0
    %4207 = vmatpush1.msra.mxu0 0.0
    %4208 = vmatprep.subr.mxu0 0.0
    %4209 = vmatpush1.msra.mxu0 0.0
    %4210 = vmatprep.subr.mxu0 0.0
    %4211 = vmatpush1.msra.mxu0 0.0
    %4212 = vmatprep.subr.mxu0 0.0
    %4213 = vmatpush1.msra.mxu0 0.0
    %4214 = vmatprep.subr.mxu0 0.0
    %4215 = vmatpush1.msra.mxu0 0.0
    %4216 = vmatprep.subr.mxu0 0.0
    %4217 = vmatpush1.msra.mxu0 0.0
    %4218 = vmatprep.subr.mxu0 0.0
    %4219 = vmatpush1.msra.mxu0 0.0
    %4220 = vmatprep.subr.mxu0 0.0
    %4221 = vmatpush1.msra.mxu0 0.0
    %4222 = vmatprep.subr.mxu0 0.0
    %4223 = vmatpush1.msra.mxu0 0.0
    %4224 = vmatprep.subr.mxu0 0.0
    %4225 = vmatpush1.msra.mxu0 0.0
    %4226 = vmatprep.subr.mxu0 0.0
    %4227 = vmatpush1.msra.mxu0 0.0
    %4228 = vmatprep.subr.mxu0 0.0
    %4229 = vmatpush1.msra.mxu0 0.0
    %4230 = vmatprep.subr.mxu0 0.0
    %4231 = vmatpush1.msra.mxu0 0.0
    %4232 = vmatprep.subr.mxu0 0.0
    %4233 = vmatpush1.msra.mxu0 0.0
    %4234 = vmatprep.subr.mxu0 0.0
    %4235 = vmatpush1.msra.mxu0 0.0
    %4236 = vmatprep.subr.mxu0 0.0
    %4237 = vmatpush1.msra.mxu0 0.0
    %4238 = vmatprep.subr.mxu0 0.0
    %4239 = vmatpush1.msra.mxu0 0.0
    %4240 = vmatprep.subr.mxu0 0.0
    %4241 = vmatpush1.msra.mxu0 0.0
    %4242 = vmatprep.subr.mxu0 0.0
    %4243 = vmatpush1.msra.mxu0 0.0
    %4244 = vmatprep.subr.mxu0 0.0
    %4245 = vmatpush1.msra.mxu0 0.0
    %4246 = vmatprep.subr.mxu0 0.0
    %4247 = vmatpush1.msra.mxu0 0.0
    %4248 = vmatprep.subr.mxu0 0.0
    %4249 = vmatpush1.msra.mxu0 0.0
    %4250 = vmatprep.mubr.f32.mxu0 0.0
    %4251 = vmatmul.mubr.f32.gmra.mrb[0].mxu0 %v4181
    %v4252 = vpop.f32.mrb[0].mxu0
    %v4253 = vadd.f32 %v4178, %v4252
    %v4254 = vpop.f32.mrb[0].mxu0
    %4255 = vmatprep.mubr.f32.mxu0 0.0
    %4256 = vmatmul.mubr.f32.gmra.mrb[0].mxu0 %v4184
    %v4257 = vpop.f32.mrb[0].mxu0
    %v4258 = vadd.f32 %v4178, %v4257
    %v4259 = vpop.f32.mrb[0].mxu0
    %4260 = vdwg.mxu0
    %v4261 = vadd.f32 %v2717, %v4253
    %v4262 = vadd.f32 %v2718, %v4258
    %v4263 = vld [vmem:[%s10] sm:$0xff]
    %v4264 = vld [vmem:[%s10 + $0x8] sm:$0xff]
    %v4265 = vld [vmem:[%s10 + $0x10] sm:$0xff]
    %v4266 = vld [vmem:[%s10 + $0x18] sm:$0xff]
    %v4268 = vsel %vm2673, %v4261, 0
    %v4271 = vsel %vm2673, %v4262, 0
    %4273 = vmatprep.subr.mxu0 0.0
    %4274 = vmatpush1.msra.mxu0 %v4263
    %4275 = vmatprep.subr.mxu0 0.0
    %4276 = vmatpush1.msra.mxu0 %v4264
    %4277 = vmatprep.subr.mxu0 0.0
    %4278 = vmatpush1.msra.mxu0 %v4265
    %4279 = vmatprep.subr.mxu0 0.0
    %4280 = vmatpush1.msra.mxu0 %v4266
    %4281 = vmatprep.subr.mxu0 0.0
    %4282 = vmatpush1.msra.mxu0 0.0
    %4283 = vmatprep.subr.mxu0 0.0
    %4284 = vmatpush1.msra.mxu0 0.0
    %4285 = vmatprep.subr.mxu0 0.0
    %4286 = vmatpush1.msra.mxu0 0.0
    %4287 = vmatprep.subr.mxu0 0.0
    %4288 = vmatpush1.msra.mxu0 0.0
    %4289 = vmatprep.subr.mxu0 0.0
    %4290 = vmatpush1.msra.mxu0 0.0
    %4291 = vmatprep.subr.mxu0 0.0
    %4292 = vmatpush1.msra.mxu0 0.0
    %4293 = vmatprep.subr.mxu0 0.0
    %4294 = vmatpush1.msra.mxu0 0.0
    %4295 = vmatprep.subr.mxu0 0.0
    %4296 = vmatpush1.msra.mxu0 0.0
    %4297 = vmatprep.subr.mxu0 0.0
    %4298 = vmatpush1.msra.mxu0 0.0
    %4299 = vmatprep.subr.mxu0 0.0
    %4300 = vmatpush1.msra.mxu0 0.0
    %4301 = vmatprep.subr.mxu0 0.0
    %4302 = vmatpush1.msra.mxu0 0.0
    %4303 = vmatprep.subr.mxu0 0.0
    %4304 = vmatpush1.msra.mxu0 0.0
    %4305 = vmatprep.subr.mxu0 0.0
    %4306 = vmatpush1.msra.mxu0 0.0
    %4307 = vmatprep.subr.mxu0 0.0
    %4308 = vmatpush1.msra.mxu0 0.0
    %4309 = vmatprep.subr.mxu0 0.0
    %4310 = vmatpush1.msra.mxu0 0.0
    %4311 = vmatprep.subr.mxu0 0.0
    %4312 = vmatpush1.msra.mxu0 0.0
    %4313 = vmatprep.subr.mxu0 0.0
    %4314 = vmatpush1.msra.mxu0 0.0
    %4315 = vmatprep.subr.mxu0 0.0
    %4316 = vmatpush1.msra.mxu0 0.0
    %4317 = vmatprep.subr.mxu0 0.0
    %4318 = vmatpush1.msra.mxu0 0.0
    %4319 = vmatprep.subr.mxu0 0.0
    %4320 = vmatpush1.msra.mxu0 0.0
    %4321 = vmatprep.subr.mxu0 0.0
    %4322 = vmatpush1.msra.mxu0 0.0
    %4323 = vmatprep.subr.mxu0 0.0
    %4324 = vmatpush1.msra.mxu0 0.0
    %4325 = vmatprep.subr.mxu0 0.0
    %4326 = vmatpush1.msra.mxu0 0.0
    %4327 = vmatprep.subr.mxu0 0.0
    %4328 = vmatpush1.msra.mxu0 0.0
    %4329 = vmatprep.subr.mxu0 0.0
    %4330 = vmatpush1.msra.mxu0 0.0
    %4331 = vmatprep.subr.mxu0 0.0
    %4332 = vmatpush1.msra.mxu0 0.0
    %4333 = vmatprep.subr.mxu0 0.0
    %4334 = vmatpush1.msra.mxu0 0.0
    %4335 = vmatprep.subr.mxu0 0.0
    %4336 = vmatpush1.msra.mxu0 0.0
    %4337 = vmatprep.mubr.f32.mxu0 0.0
    %4338 = vmatmul.mubr.f32.gmra.mrb[0].mxu0 %v4268
    %v4339 = vpop.f32.mrb[0].mxu0
    %v4340 = vadd.f32 0.0, %v4339
    %v4341 = vpop.f32.mrb[0].mxu0
    %4342 = vmatprep.mubr.f32.mxu0 0.0
    %4343 = vmatmul.mubr.f32.gmra.mrb[0].mxu0 %v4271
    %v4344 = vpop.f32.mrb[0].mxu0
    %v4345 = vadd.f32 0.0, %v4344
    %v4346 = vpop.f32.mrb[0].mxu0
    %4347 = vdwg.mxu0
    %vm4348 = vcmask 7168
    %v4349 = vsel %vm4348, %v4340, -inf
    %v4350 = vrot.slane %v4349, 4
    %v4351 = vmax.f32 %v4349, %v4350
    %v4352 = vrot.slane %v4351, 2
    %v4353 = vmax.f32 %v4351, %v4352
    %v4354 = vrot.slane %v4353, 1
    %v4355 = vmax.f32 %v4353, %v4354
    %v4356 = vsel %vm4348, %v4345, -inf
    %v4357 = vrot.slane %v4356, 4
    %v4358 = vmax.f32 %v4356, %v4357
    %v4359 = vrot.slane %v4358, 2
    %v4360 = vmax.f32 %v4358, %v4359
    %v4361 = vrot.slane %v4360, 1
    %v4362 = vmax.f32 %v4360, %v4361
    %v4363 = vsub.f32 %v4340, %v4355
    %v4364 = vsub.f32 %v4345, %v4362
    %v4365 = vmul.f32 %v4363, 1.442695
    %v4366 = vpow.pop %v4365
    %v4367 = vmul.f32 %v4364, 1.442695
    %v4368 = vpow.pop %v4367
    %v4369 = vsel %vm4348, %v4366, 0.0
    %v4370 = vrot.slane %v4369, 4
    %v4371 = vadd.f32 %v4369, %v4370
    %v4372 = vrot.slane %v4371, 2
    %v4373 = vadd.f32 %v4371, %v4372
    %v4374 = vrot.slane %v4373, 1
    %v4375 = vadd.f32 %v4373, %v4374
    %v4376 = vsel %vm4348, %v4368, 0.0
    %v4377 = vrot.slane %v4376, 4
    %v4378 = vadd.f32 %v4376, %v4377
    %v4379 = vrot.slane %v4378, 2
    %v4380 = vadd.f32 %v4378, %v4379
    %v4381 = vrot.slane %v4380, 1
    %v4382 = vadd.f32 %v4380, %v4381
    %v4383 = vrcp.pop %v4375
    %v4384 = vmul.f32 %v4366, %v4383
    %v4385 = vrcp.pop %v4382
    %v4386 = vmul.f32 %v4368, %v4385
    %4388 = vset.pattern.permute.xlu0 0
    %4389 = vperm.xlu0 %4388, %v4384
    %v4390 = vpop.permute.xlu0 %4389
    %4393 = vset.pattern.permute.xlu0 0
    %4394 = vperm.xlu0 %4393, %v4386
    %v4395 = vpop.permute.xlu0 %4394
    %v4397 = vmul.f32 %v4261, %v4390
    %v4398 = vmul.f32 %v4262, %v4395
    %v4399 = vsel %vm2673, %v4397, 0.0
    %v4400 = vrot.slane %v4399, 4
    %v4401 = vadd.f32 %v4399, %v4400
    %v4402 = vrot.slane %v4401, 2
    %v4403 = vadd.f32 %v4401, %v4402
    %v4404 = vrot.slane %v4403, 1
    %v4405 = vadd.f32 %v4403, %v4404
    %v4406 = vsel %vm2673, %v4398, 0.0
    %v4407 = vrot.slane %v4406, 4
    %v4408 = vadd.f32 %v4406, %v4407
    %v4409 = vrot.slane %v4408, 2
    %v4410 = vadd.f32 %v4408, %v4409
    %v4411 = vrot.slane %v4410, 1
    %v4412 = vadd.f32 %v4410, %v4411
    %v4413 = vld [vmem:[#allocation14] sm:$0xff]
    %v4414 = vld [vmem:[#allocation14 + $0x8] sm:$0xff]
    %v4415 = vld [vmem:[#allocation14 + $0x10] sm:$0xff]
    %v4416 = vld [vmem:[#allocation14 + $0x18] sm:$0xff]
    %v4417 = vld [vmem:[%s12] sm:$0x1]
    %v4419 = vlaneseq
    %v4420 = vshrl.u32 %v4419, 7
    %v4421 = vsub.s32 0, %v4420
    %v4422 = vrot.slane %v4417, %v4421
    %v4426 = vsel %vm556, %v4412, %v4405
    %v4427 = vsel %vm2673, %v4426, 0
    %4429 = vmatprep.subr.mxu0 0.0
    %4430 = vmatpush1.msra.mxu0 %v4413
    %4431 = vmatprep.subr.mxu0 0.0
    %4432 = vmatpush1.msra.mxu0 %v4414
    %4433 = vmatprep.subr.mxu0 0.0
    %4434 = vmatpush1.msra.mxu0 %v4415
    %4435 = vmatprep.subr.mxu0 0.0
    %4436 = vmatpush1.msra.mxu0 %v4416
    %4437 = vmatprep.subr.mxu0 0.0
    %4438 = vmatpush1.msra.mxu0 0.0
    %4439 = vmatprep.subr.mxu0 0.0
    %4440 = vmatpush1.msra.mxu0 0.0
    %4441 = vmatprep.subr.mxu0 0.0
    %4442 = vmatpush1.msra.mxu0 0.0
    %4443 = vmatprep.subr.mxu0 0.0
    %4444 = vmatpush1.msra.mxu0 0.0
    %4445 = vmatprep.subr.mxu0 0.0
    %4446 = vmatpush1.msra.mxu0 0.0
    %4447 = vmatprep.subr.mxu0 0.0
    %4448 = vmatpush1.msra.mxu0 0.0
    %4449 = vmatprep.subr.mxu0 0.0
    %4450 = vmatpush1.msra.mxu0 0.0
    %4451 = vmatprep.subr.mxu0 0.0
    %4452 = vmatpush1.msra.mxu0 0.0
    %4453 = vmatprep.subr.mxu0 0.0
    %4454 = vmatpush1.msra.mxu0 0.0
    %4455 = vmatprep.subr.mxu0 0.0
    %4456 = vmatpush1.msra.mxu0 0.0
    %4457 = vmatprep.subr.mxu0 0.0
    %4458 = vmatpush1.msra.mxu0 0.0
    %4459 = vmatprep.subr.mxu0 0.0
    %4460 = vmatpush1.msra.mxu0 0.0
    %4461 = vmatprep.subr.mxu0 0.0
    %4462 = vmatpush1.msra.mxu0 0.0
    %4463 = vmatprep.subr.mxu0 0.0
    %4464 = vmatpush1.msra.mxu0 0.0
    %4465 = vmatprep.subr.mxu0 0.0
    %4466 = vmatpush1.msra.mxu0 0.0
    %4467 = vmatprep.subr.mxu0 0.0
    %4468 = vmatpush1.msra.mxu0 0.0
    %4469 = vmatprep.subr.mxu0 0.0
    %4470 = vmatpush1.msra.mxu0 0.0
    %4471 = vmatprep.subr.mxu0 0.0
    %4472 = vmatpush1.msra.mxu0 0.0
    %4473 = vmatprep.subr.mxu0 0.0
    %4474 = vmatpush1.msra.mxu0 0.0
    %4475 = vmatprep.subr.mxu0 0.0
    %4476 = vmatpush1.msra.mxu0 0.0
    %4477 = vmatprep.subr.mxu0 0.0
    %4478 = vmatpush1.msra.mxu0 0.0
    %4479 = vmatprep.subr.mxu0 0.0
    %4480 = vmatpush1.msra.mxu0 0.0
    %4481 = vmatprep.subr.mxu0 0.0
    %4482 = vmatpush1.msra.mxu0 0.0
    %4483 = vmatprep.subr.mxu0 0.0
    %4484 = vmatpush1.msra.mxu0 0.0
    %4485 = vmatprep.subr.mxu0 0.0
    %4486 = vmatpush1.msra.mxu0 0.0
    %4487 = vmatprep.subr.mxu0 0.0
    %4488 = vmatpush1.msra.mxu0 0.0
    %4489 = vmatprep.subr.mxu0 0.0
    %4490 = vmatpush1.msra.mxu0 0.0
    %4491 = vmatprep.subr.mxu0 0.0
    %4492 = vmatpush1.msra.mxu0 0.0
    %4493 = vmatprep.mubr.f32.mxu0 0.0
    %4494 = vmatmul.mubr.f32.gmra.mrb[0].mxu0 %v4427
    %v4495 = vpop.f32.mrb[0].mxu0
    %v4496 = vadd.f32 %v4422, %v4495
    %v4497 = vpop.f32.mrb[0].mxu0
    %4498 = vdwg.mxu0
    %vm4499 = vcmask 254976
    %v4500 = vsel %vm4499, %v4496, 0.0
    %4501 = vadd.xlane.f32.xlu0 %v4500
    %v4502 = vpop.xlane.xlu0 %4501
    %v4503 = vmul.f32 %v4502, %v2680
    %v4504 = vsub.f32 %v4496, %v4503
    %v4505 = vmul.f32 %v4504, %v4504
    %v4506 = vsel %vm4499, %v4505, 0.0
    %4507 = vadd.xlane.f32.xlu0 %v4506
    %v4508 = vpop.xlane.xlu0 %4507
    %v4509 = vmul.f32 %v4508, %v2680
    %v4510 = vadd.f32 %v4509, 1e-05
    %v4511 = vrsqrt.pop %v4510
    %v4512 = vmul.f32 %v4504, %v4511
    %v4513 = vld [vmem:[%s13] sm:$0x1]
    %v4515 = vlaneseq
    %v4516 = vshrl.u32 %v4515, 7
    %v4517 = vsub.s32 0, %v4516
    %v4518 = vrot.slane %v4513, %v4517
    %v4520 = vmul.f32 %v4512, %v4518
    %v4521 = vld [vmem:[%s14] sm:$0x1]
    %v4523 = vlaneseq
    %v4524 = vshrl.u32 %v4523, 7
    %v4525 = vsub.s32 0, %v4524
    %v4526 = vrot.slane %v4521, %v4525
    %v4528 = vadd.f32 %v4520, %v4526
    %v4529 = vmax.f32 %v4528, 0.0
    %v4530 = vld [vmem:[%s15] sm:$0xff]
    %v4531 = vld [vmem:[%s15 + $0x8] sm:$0xff]
    %v4532 = vld [vmem:[%s15 + $0x10] sm:$0xff]
    %v4533 = vld [vmem:[%s15 + $0x18] sm:$0xff]
    %v4534 = vld [vmem:[%s16] sm:$0x1]
    %v4536 = vlaneseq
    %v4537 = vshrl.u32 %v4536, 7
    %v4538 = vsub.s32 0, %v4537
    %v4539 = vrot.slane %v4534, %v4538
    %v4542 = vsel %vm2673, %v4529, 0
    %4544 = vmatprep.subr.mxu0 0.0
    %4545 = vmatpush1.msra.mxu0 %v4530
    %4546 = vmatprep.subr.mxu0 0.0
    %4547 = vmatpush1.msra.mxu0 %v4531
    %4548 = vmatprep.subr.mxu0 0.0
    %4549 = vmatpush1.msra.mxu0 %v4532
    %4550 = vmatprep.subr.mxu0 0.0
    %4551 = vmatpush1.msra.mxu0 %v4533
    %4552 = vmatprep.subr.mxu0 0.0
    %4553 = vmatpush1.msra.mxu0 0.0
    %4554 = vmatprep.subr.mxu0 0.0
    %4555 = vmatpush1.msra.mxu0 0.0
    %4556 = vmatprep.subr.mxu0 0.0
    %4557 = vmatpush1.msra.mxu0 0.0
    %4558 = vmatprep.subr.mxu0 0.0
    %4559 = vmatpush1.msra.mxu0 0.0
    %4560 = vmatprep.subr.mxu0 0.0
    %4561 = vmatpush1.msra.mxu0 0.0
    %4562 = vmatprep.subr.mxu0 0.0
    %4563 = vmatpush1.msra.mxu0 0.0
    %4564 = vmatprep.subr.mxu0 0.0
    %4565 = vmatpush1.msra.mxu0 0.0
    %4566 = vmatprep.subr.mxu0 0.0
    %4567 = vmatpush1.msra.mxu0 0.0
    %4568 = vmatprep.subr.mxu0 0.0
    %4569 = vmatpush1.msra.mxu0 0.0
    %4570 = vmatprep.subr.mxu0 0.0
    %4571 = vmatpush1.msra.mxu0 0.0
    %4572 = vmatprep.subr.mxu0 0.0
    %4573 = vmatpush1.msra.mxu0 0.0
    %4574 = vmatprep.subr.mxu0 0.0
    %4575 = vmatpush1.msra.mxu0 0.0
    %4576 = vmatprep.subr.mxu0 0.0
    %4577 = vmatpush1.msra.mxu0 0.0
    %4578 = vmatprep.subr.mxu0 0.0
    %4579 = vmatpush1.msra.mxu0 0.0
    %4580 = vmatprep.subr.mxu0 0.0
    %4581 = vmatpush1.msra.mxu0 0.0
    %4582 = vmatprep.subr.mxu0 0.0
    %4583 = vmatpush1.msra.mxu0 0.0
    %4584 = vmatprep.subr.mxu0 0.0
    %4585 = vmatpush1.msra.mxu0 0.0
    %4586 = vmatprep.subr.mxu0 0.0
    %4587 = vmatpush1.msra.mxu0 0.0
    %4588 = vmatprep.subr.mxu0 0.0
    %4589 = vmatpush1.msra.mxu0 0.0
    %4590 = vmatprep.subr.mxu0 0.0
    %4591 = vmatpush1.msra.mxu0 0.0
    %4592 = vmatprep.subr.mxu0 0.0
    %4593 = vmatpush1.msra.mxu0 0.0
    %4594 = vmatprep.subr.mxu0 0.0
    %4595 = vmatpush1.msra.mxu0 0.0
    %4596 = vmatprep.subr.mxu0 0.0
    %4597 = vmatpush1.msra.mxu0 0.0
    %4598 = vmatprep.subr.mxu0 0.0
    %4599 = vmatpush1.msra.mxu0 0.0
    %4600 = vmatprep.subr.mxu0 0.0
    %4601 = vmatpush1.msra.mxu0 0.0
    %4602 = vmatprep.subr.mxu0 0.0
    %4603 = vmatpush1.msra.mxu0 0.0
    %4604 = vmatprep.subr.mxu0 0.0
    %4605 = vmatpush1.msra.mxu0 0.0
    %4606 = vmatprep.subr.mxu0 0.0
    %4607 = vmatpush1.msra.mxu0 0.0
    %4608 = vmatprep.mubr.f32.mxu0 0.0
    %4609 = vmatmul.mubr.f32.gmra.mrb[0].mxu0 %v4542
    %v4610 = vpop.f32.mrb[0].mxu0
    %v4611 = vadd.f32 %v4539, %v4610
    %v4612 = vpop.f32.mrb[0].mxu0
    %4613 = vdwg.mxu0
    %vm4614 = vcmask 9216
    %4615 = vst.msk [vmem:[#allocation15] sm:$0x3] %vm4614, %v4611
    // Predicated region
    $region98: #{tpu_custom_call.1} parent=1 // pred_check
      _
    $region99: #{tpu_custom_call.1} parent=1 // pred_check_branch
      %4617 = sbr.rel (0) target = $region101
    $region100: #{tpu_custom_call.1} parent=1 // pred_region
      %s4619 = ssub.s32 32, 32
      %4620 = vsyncadd [#allocation5], %s4619
      %s4622 = sshll.u32 [#allocation15], 4
      %s4623 = int_to_ptr.vmem [resolvable:$true] %s4622
      %4625 = dma.vmem_to_hbm [thread:$0]  %s4623, 32, %s17, [#allocation5]
    $region101: #{tpu_custom_call.1} parent=1 // pred_fallthru
      _
    // Predicated region
    $region102: #{tpu_custom_call.1} parent=1 // pred_check
      _
    $region103: #{tpu_custom_call.1} parent=1 // pred_check_branch
      %4627 = sbr.rel (0) target = $region105
    $region104: #{tpu_custom_call.1} parent=1 // pred_region
      %4628 = dma.done [#allocation5], 32
    $region105: #{tpu_custom_call.1} parent=1 // pred_fallthru
      _
    %4629 = vsyncpa [#allocation4], 1
    %4630 = vsyncpa [#allocation7], 1
    %4631 = vsyncpa [#allocation10], 1
    %4632 = vsyncpa [#allocation13], 1
    %4633 = vsyncpa [#allocation5], 1

</llo_original>
